<compile_context>
chip_gen: v7x
topology: tpu7x:2x2x1
jax: 0.10.0
libtpu: 0.0.40
codegen_flags: <defaults>
</compile_context>

<pallas_src>
import jax
import jax.numpy as jnp
from jax import lax
from jax.experimental import pallas as pl
from jax.experimental.pallas import tpu as pltpu


NUM_CLASSES = 10
LANE = 128          # FC class dim padded up to one full lane tile
BN_EPS = 1e-5
# >= scoped default on v5e(16M)/v6e(32M)/v7x(32M), <= physical on all gens;
# actual per-step usage is only a few MB, so there is ample headroom everywhere.
_VMEM_LIMIT = 32 * 1024 * 1024


# ---------------------------------------------------------------------------
# Pallas kernels
# ---------------------------------------------------------------------------
def _conv_bn_relu_pool_kernel(p_ref, w_ref, shift_ref, o_ref):
    """Fused conv-as-matmul + folded BatchNorm + ReLU + 2x2 max-pool.

    p_ref:     (G, 4, M4, Kf)  im2col patches, pre-split into the 4 pool phases
    w_ref:     (Kf, Cout)      conv weight in matmul layout, BN scale folded in
    shift_ref: (1, Cout)       beta + (conv_bias - mean) * scale
    o_ref:     (G, M4, Cout)   pooled output (M4 = H/2 * W/2)

    max_ph relu(acc_ph + shift) == relu(max_ph(acc_ph) + shift) because
    x -> relu(x + shift) is monotone and all phases share scale/shift.
    """
    G = o_ref.shape[0]
    w = w_ref[...]
    shift = shift_ref[...]
    for g in range(G):                       # static unroll over the batch chunk
        m = jnp.dot(p_ref[g, 0], w, preferred_element_type=jnp.float32)
        for ph in range(1, 4):
            acc = jnp.dot(p_ref[g, ph], w, preferred_element_type=jnp.float32)
            m = jnp.maximum(m, acc)
        o_ref[g] = jnp.maximum(m + shift, 0.0).astype(o_ref.dtype)


def _linear_kernel(x_ref, w_ref, b_ref, o_ref):
    """out = x @ W + b with a lane-dense (classes padded to 128) output store."""
    acc = jnp.dot(x_ref[...], w_ref[...], preferred_element_type=jnp.float32)
    o_ref[...] = (acc + b_ref[...]).astype(o_ref.dtype)


# ---------------------------------------------------------------------------
# pallas_call wrappers
# ---------------------------------------------------------------------------
def _conv_bn_relu_pool(patches, w_mat, shift, *, batch_chunk):
    B, P, M4, Kf = patches.shape            # P == 4 pool phases
    Cout = w_mat.shape[1]
    G = batch_chunk
    return pl.pallas_call(
        _conv_bn_relu_pool_kernel,
        out_shape=jax.ShapeDtypeStruct((B, M4, Cout), patches.dtype),
        grid_spec=pltpu.PrefetchScalarGridSpec(
            num_scalar_prefetch=0,
            grid=(B // G,),
            in_specs=[
                pl.BlockSpec((G, P, M4, Kf), lambda b: (b, 0, 0, 0)),
                pl.BlockSpec((Kf, Cout), lambda b: (0, 0)),
                pl.BlockSpec((1, Cout), lambda b: (0, 0)),
            ],
            out_specs=pl.BlockSpec((G, M4, Cout), lambda b: (b, 0, 0)),
        ),
        compiler_params=pltpu.CompilerParams(
            dimension_semantics=("parallel",),      # batch chunks shard across TCs
            vmem_limit_bytes=_VMEM_LIMIT,
        ),
    )(patches, w_mat, shift)


def _linear(x, w, b, *, row_block):
    B, D = x.shape
    C = w.shape[1]
    TB = row_block
    return pl.pallas_call(
        _linear_kernel,
        out_shape=jax.ShapeDtypeStruct((B, C), x.dtype),
        grid_spec=pltpu.PrefetchScalarGridSpec(
            num_scalar_prefetch=0,
            grid=(B // TB,),
            in_specs=[
                pl.BlockSpec((TB, D), lambda i: (i, 0)),
                pl.BlockSpec((D, C), lambda i: (0, 0)),
                pl.BlockSpec((1, C), lambda i: (0, 0)),
            ],
            out_specs=pl.BlockSpec((TB, C), lambda i: (i, 0)),
        ),
        compiler_params=pltpu.CompilerParams(
            dimension_semantics=("parallel",),
            vmem_limit_bytes=_VMEM_LIMIT,
        ),
    )(x, w, b)


# ---------------------------------------------------------------------------
# Block-size selection (static, derived from the batch size at trace time)
# ---------------------------------------------------------------------------
def _conv_batch_chunk(B):
    """Largest G <= 8 dividing B that still leaves a grid of >= 2 steps."""
    best = 1
    for g in range(1, min(8, B) + 1):
        if B % g == 0 and B // g >= 2:
            best = g
    return best


def _fc_row_block(B):
    """Largest 8-aligned row block dividing B, preferring a grid of >= 2 steps."""
    for tb in (256, 128, 64, 32, 16, 8):
        if B % tb == 0 and B // tb >= 2:
            return tb
    for tb in (256, 128, 64, 32, 16, 8):
        if B % tb == 0:
            return tb
    return B      # small / odd batches: whole batch in one (full-dim) block


# ---------------------------------------------------------------------------
# Layout glue (phase-split im2col) and one-time parameter preparation
# ---------------------------------------------------------------------------
def _im2col_pooled(x_nhwc, k=5, pad=2):
    """k x k 'same' patches, pre-split into the four 2x2 max-pool phases.

    Returns (B, 4, H/2*W/2, k*k*C).  Phase order (hp, wp) in
    [(0,0), (0,1), (1,0), (1,1)]; feature order (dy, dx, ci) matching
    _conv_weight_matrix.  Only pads / strided slices / concats / reshapes —
    cheap XLA data movement, no FLOPs.
    """
    B, H, W, C = x_nhwc.shape
    H2, W2 = H // 2, W // 2
    xp = jnp.pad(x_nhwc, ((0, 0), (pad, pad), (pad, pad), (0, 0)))
    phases = []
    for hp in range(2):
        for wp in range(2):
            taps = [
                xp[:, dy + hp:dy + hp + H:2, dx + wp:dx + wp + W:2, :]
                for dy in range(k) for dx in range(k)
            ]
            ph = jnp.concatenate(taps, axis=-1)            # (B, H2, W2, k*k*C)
            phases.append(ph.reshape(B, H2 * W2, k * k * C))
    return jnp.stack(phases, axis=1)                       # (B, 4, H2*W2, k*k*C)


def _conv_weight_matrix(w_oihw):
    """PyTorch (Cout, Cin, k, k) -> (k*k*Cin, Cout) in (dy, dx, ci) row order."""
    cout, cin, k, _ = w_oihw.shape
    return jnp.transpose(w_oihw, (2, 3, 1, 0)).reshape(k * k * cin, cout)


def _fold_bn(gamma, beta, mean, var, conv_bias, eps=BN_EPS):
    scale = gamma / jnp.sqrt(var + eps)
    shift = (conv_bias - mean) * scale + beta
    return scale.reshape(1, -1), shift.reshape(1, -1)


def prepare_params(p):
    """One-time conversion of PyTorch-layout parameters to the TPU kernel layout.

    Runs once outside the forward pass: conv weights go to matmul layout with the
    eval-mode BatchNorm scale folded into the columns (only the shift remains for
    the kernel), and the FC weight is permuted to the (h, w, c) flatten order,
    pre-transposed to (D, C) and zero-padded 10 -> 128 classes for lane-dense stores.
    """
    s1, t1 = _fold_bn(p["bn1_gamma"], p["bn1_beta"], p["bn1_mean"], p["bn1_var"], p["b1"])
    s2, t2 = _fold_bn(p["bn2_gamma"], p["bn2_beta"], p["bn2_mean"], p["bn2_var"], p["b2"])
    w1 = _conv_weight_matrix(p["w1"]) * s1        # BN scale folded into columns
    w2 = _conv_weight_matrix(p["w2"]) * s2
    c_out2, h2, w2s = p["w2"].shape[0], 7, 7
    fc_w = p["fc_w"].reshape(NUM_CLASSES, c_out2, h2, w2s)
    fc_w = jnp.transpose(fc_w, (2, 3, 1, 0)).reshape(h2 * w2s * c_out2, NUM_CLASSES)
    fc_w = jnp.pad(fc_w, ((0, 0), (0, LANE - NUM_CLASSES)))
    fc_b = jnp.pad(p["fc_b"], (0, LANE - NUM_CLASSES)).reshape(1, LANE)
    return {"w1": w1, "t1": t1, "w2": w2, "t2": t2, "fc_w": fc_w, "fc_b": fc_b}


# ---------------------------------------------------------------------------
# Forward pass
# ---------------------------------------------------------------------------
@jax.jit
def cnn_forward(x_nchw, tp):
    """Pallas forward pass of the CNN.  x_nchw: (B, 1, 28, 28) float32."""
    B = x_nchw.shape[0]
    x = x_nchw.reshape(B, 28, 28, 1)          # NCHW -> NHWC is free since C == 1
    G = _conv_batch_chunk(B)
    TB = _fc_row_block(B)

    # Layer 1: conv(1->16, k5, p2) + BN + ReLU + 2x2 max-pool, one fused kernel.
    p1 = _im2col_pooled(x)                                           # (B, 4, 196, 25)
    y1 = _conv_bn_relu_pool(p1, tp["w1"], tp["t1"], batch_chunk=G)   # (B, 196, 16)

    # Layer 2: conv(16->32, k5, p2) + BN + ReLU + 2x2 max-pool, one fused kernel.
    p2 = _im2col_pooled(y1.reshape(B, 14, 14, 16))                   # (B, 4, 49, 400)
    y2 = _conv_bn_relu_pool(p2, tp["w2"], tp["t2"], batch_chunk=G)   # (B, 49, 32)

    # FC head: lane-dense padded matmul over batch-row blocks, slice back to 10.
    flat = y2.reshape(B, 7 * 7 * 32)                                 # (h, w, c) order
    logits = _linear(flat, tp["fc_w"], tp["fc_b"], row_block=TB)     # (B, 128)
    return logits[:, :NUM_CLASSES]


# ---------------------------------------------------------------------------
# Pure-JAX reference (matches the PyTorch module, eval-mode BatchNorm)
# ---------------------------------------------------------------------------
def reference_forward(x, p):
    def block(x, w, b, gamma, beta, mean, var):
        y = lax.conv_general_dilated(
            x, w, window_strides=(1, 1), padding=[(2, 2), (2, 2)],
            dimension_numbers=("NCHW", "OIHW", "NCHW"),
            precision=lax.Precision.HIGHEST)
        y = y + b.reshape(1, -1, 1, 1)
        y = (y - mean.reshape(1, -1, 1, 1)) / jnp.sqrt(var.reshape(1, -1, 1, 1) + BN_EPS)
        y = gamma.reshape(1, -1, 1, 1) * y + beta.reshape(1, -1, 1, 1)
        y = jnp.maximum(y, 0.0)
        return lax.reduce_window(y, -jnp.inf, lax.max,
                                 (1, 1, 2, 2), (1, 1, 2, 2), "VALID")

    y = block(x, p["w1"], p["b1"], p["bn1_gamma"], p["bn1_beta"],
              p["bn1_mean"], p["bn1_var"])
    y = block(y, p["w2"], p["b2"], p["bn2_gamma"], p["bn2_beta"],
              p["bn2_mean"], p["bn2_var"])
    flat = y.reshape(y.shape[0], -1)                        # PyTorch (c, h, w) flatten
    return jnp.dot(flat, p["fc_w"].T, precision=lax.Precision.HIGHEST) + p["fc_b"]


if __name__ == "__main__":
    batch = 2
    key = jax.random.PRNGKey(0)
    keys = jax.random.split(key, 15)

    x = jax.random.normal(keys[0], (batch, 1, 28, 28), dtype=jnp.float32)

    def uniform(k, shape, bound):
        return jax.random.uniform(k, shape, minval=-bound, maxval=bound,
                                  dtype=jnp.float32)

    # PyTorch-layout parameters (Conv2d / BatchNorm2d running stats / Linear).
    b1w = 1.0 / (1 * 5 * 5) ** 0.5
    b2w = 1.0 / (16 * 5 * 5) ** 0.5
    bfw = 1.0 / (7 * 7 * 32) ** 0.5
    params = {
        "w1": uniform(keys[1], (16, 1, 5, 5), b1w),
        "b1": uniform(keys[2], (16,), b1w),
        "bn1_gamma": jax.random.uniform(keys[3], (16,), minval=0.5, maxval=1.5),
        "bn1_beta": uniform(keys[4], (16,), 0.3),
        "bn1_mean": 0.2 * jax.random.normal(keys[5], (16,)),
        "bn1_var": jax.random.uniform(keys[6], (16,), minval=0.5, maxval=1.5),
        "w2": uniform(keys[7], (32, 16, 5, 5), b2w),
        "b2": uniform(keys[8], (32,), b2w),
        "bn2_gamma": jax.random.uniform(keys[9], (32,), minval=0.5, maxval=1.5),
        "bn2_beta": uniform(keys[10], (32,), 0.3),
        "bn2_mean": 0.2 * jax.random.normal(keys[11], (32,)),
        "bn2_var": jax.random.uniform(keys[12], (32,), minval=0.5, maxval=1.5),
        "fc_w": uniform(keys[13], (NUM_CLASSES, 7 * 7 * 32), bfw),
        "fc_b": uniform(keys[14], (NUM_CLASSES,), bfw),
    }
    params = {k: v.astype(jnp.float32) for k, v in params.items()}

    tpu_params = prepare_params(params)     # one-time weight-layout conversion

    out = cnn_forward(x, tpu_params)
    out = jax.block_until_ready(out)

    ref = reference_forward(x, params)
    assert out.shape == (batch, NUM_CLASSES), out.shape
    assert jnp.allclose(out, ref, atol=1e-3, rtol=1e-3), (
        f"mismatch vs reference: max abs err {jnp.max(jnp.abs(out - ref))}")

    print("KERNEL_OK")
</pallas_src>

<mosaic_0001>
module attributes {stable_mosaic.version = 11 : i64} {
  func.func @_conv_bn_relu_pool_kernel(%arg0: i32, %arg1: memref<1x4x196x25xf32, #tpu.memory_space<vmem>>, %arg2: memref<25x16xf32, #tpu.memory_space<vmem>>, %arg3: memref<1x16xf32, #tpu.memory_space<vmem>>, %arg4: memref<1x196x16xf32, #tpu.memory_space<vmem>>) attributes {dimension_semantics = [#tpu.dimension_semantics<parallel>], iteration_bounds = array<i64: 2>, scalar_prefetch = 0 : i64, scratch_operands = 0 : i64, tpu.core_type = #tpu.core_type<tc>, window_params = [{transform_indices = @transform_0, window_bounds = array<i64: 1, 4, 196, 25>}, {pipeline_mode = #tpu.pipeline_mode<synchronous>, transform_indices = @transform_1, window_bounds = array<i64: 25, 16>}, {pipeline_mode = #tpu.pipeline_mode<synchronous>, transform_indices = @transform_2, window_bounds = array<i64: 1, 16>}, {transform_indices = @transform_3, window_bounds = array<i64: 1, 196, 16>}]} {
    %c0 = arith.constant 0 : index
    %c0_0 = arith.constant 0 : index
    %0 = vector.load %arg2[%c0, %c0_0] : memref<25x16xf32, #tpu.memory_space<vmem>>, vector<25x16xf32>
    %c0_1 = arith.constant 0 : index
    %c0_2 = arith.constant 0 : index
    %1 = vector.load %arg3[%c0_1, %c0_2] : memref<1x16xf32, #tpu.memory_space<vmem>>, vector<1x16xf32>
    %c0_3 = arith.constant 0 : index
    %c0_4 = arith.constant 0 : index
    %c0_5 = arith.constant 0 : index
    %c0_6 = arith.constant 0 : index
    %2 = vector.load %arg1[%c0_3, %c0_4, %c0_5, %c0_6] : memref<1x4x196x25xf32, #tpu.memory_space<vmem>>, vector<1x1x196x25xf32>
    %3 = vector.shape_cast %2 : vector<1x1x196x25xf32> to vector<196x25xf32>
    %cst = arith.constant dense<0.000000e+00> : vector<196x16xf32>
    %4 = tpu.matmul %3, %0, %cst {dimension_numbers = #tpu.dot_dimension_numbers<[1], [0], [0], [1], [0, 0, 1, 1], [], []>} : vector<196x25xf32>, vector<25x16xf32>, vector<196x16xf32> -> vector<196x16xf32>
    %c0_7 = arith.constant 0 : index
    %c1 = arith.constant 1 : index
    %c0_8 = arith.constant 0 : index
    %c0_9 = arith.constant 0 : index
    %5 = vector.load %arg1[%c0_7, %c1, %c0_8, %c0_9] : memref<1x4x196x25xf32, #tpu.memory_space<vmem>>, vector<1x1x196x25xf32>
    %6 = vector.shape_cast %5 : vector<1x1x196x25xf32> to vector<196x25xf32>
    %cst_10 = arith.constant dense<0.000000e+00> : vector<196x16xf32>
    %7 = tpu.matmul %6, %0, %cst_10 {dimension_numbers = #tpu.dot_dimension_numbers<[1], [0], [0], [1], [0, 0, 1, 1], [], []>} : vector<196x25xf32>, vector<25x16xf32>, vector<196x16xf32> -> vector<196x16xf32>
    %8 = arith.maximumf %4, %7 : vector<196x16xf32>
    %c0_11 = arith.constant 0 : index
    %c2 = arith.constant 2 : index
    %c0_12 = arith.constant 0 : index
    %c0_13 = arith.constant 0 : index
    %9 = vector.load %arg1[%c0_11, %c2, %c0_12, %c0_13] : memref<1x4x196x25xf32, #tpu.memory_space<vmem>>, vector<1x1x196x25xf32>
    %10 = vector.shape_cast %9 : vector<1x1x196x25xf32> to vector<196x25xf32>
    %cst_14 = arith.constant dense<0.000000e+00> : vector<196x16xf32>
    %11 = tpu.matmul %10, %0, %cst_14 {dimension_numbers = #tpu.dot_dimension_numbers<[1], [0], [0], [1], [0, 0, 1, 1], [], []>} : vector<196x25xf32>, vector<25x16xf32>, vector<196x16xf32> -> vector<196x16xf32>
    %12 = arith.maximumf %8, %11 : vector<196x16xf32>
    %c0_15 = arith.constant 0 : index
    %c3 = arith.constant 3 : index
    %c0_16 = arith.constant 0 : index
    %c0_17 = arith.constant 0 : index
    %13 = vector.load %arg1[%c0_15, %c3, %c0_16, %c0_17] : memref<1x4x196x25xf32, #tpu.memory_space<vmem>>, vector<1x1x196x25xf32>
    %14 = vector.shape_cast %13 : vector<1x1x196x25xf32> to vector<196x25xf32>
    %cst_18 = arith.constant dense<0.000000e+00> : vector<196x16xf32>
    %15 = tpu.matmul %14, %0, %cst_18 {dimension_numbers = #tpu.dot_dimension_numbers<[1], [0], [0], [1], [0, 0, 1, 1], [], []>} : vector<196x25xf32>, vector<25x16xf32>, vector<196x16xf32> -> vector<196x16xf32>
    %16 = arith.maximumf %12, %15 : vector<196x16xf32>
    %17 = vector.broadcast %1 : vector<1x16xf32> to vector<196x16xf32>
    %18 = arith.addf %16, %17 : vector<196x16xf32>
    %cst_19 = arith.constant 0.000000e+00 : f32
    %19 = vector.broadcast %cst_19 : f32 to vector<196x16xf32>
    %20 = arith.maximumf %18, %19 : vector<196x16xf32>
    %c0_20 = arith.constant 0 : index
    %c0_21 = arith.constant 0 : index
    %c0_22 = arith.constant 0 : index
    %21 = vector.load %arg4[%c0_20, %c0_21, %c0_22] : memref<1x196x16xf32, #tpu.memory_space<vmem>>, vector<1x196x16xf32>
    %22 = vector.shape_cast %21 : vector<1x196x16xf32> to vector<196x16xf32>
    %23 = vector.shape_cast %20 : vector<196x16xf32> to vector<1x196x16xf32>
    tpu.vector_store %arg4[%c0_20, %c0_21, %c0_22], %23 {strides = array<i32>} : memref<1x196x16xf32, #tpu.memory_space<vmem>>, vector<1x196x16xf32>,
    return
  }
  func.func @transform_0(%arg0: i32) -> (i32, i32, i32, i32) {
    %c0_i32 = arith.constant 0 : i32
    %c0_i32_0 = arith.constant 0 : i32
    %c0_i32_1 = arith.constant 0 : i32
    %c0_i32_2 = arith.constant 0 : i32
    return %arg0, %c0_i32, %c0_i32_0, %c0_i32_1 : i32, i32, i32, i32
  }
  func.func @transform_1(%arg0: i32) -> (i32, i32) {
    %c0_i32 = arith.constant 0 : i32
    %c0_i32_0 = arith.constant 0 : i32
    %c0_i32_1 = arith.constant 0 : i32
    return %c0_i32, %c0_i32_0 : i32, i32
  }
  func.func @transform_2(%arg0: i32) -> (i32, i32) {
    %c0_i32 = arith.constant 0 : i32
    %c0_i32_0 = arith.constant 0 : i32
    %c0_i32_1 = arith.constant 0 : i32
    return %c0_i32, %c0_i32_0 : i32, i32
  }
  func.func @transform_3(%arg0: i32) -> (i32, i32, i32) {
    %c0_i32 = arith.constant 0 : i32
    %c0_i32_0 = arith.constant 0 : i32
    %c0_i32_1 = arith.constant 0 : i32
    return %arg0, %c0_i32, %c0_i32_0 : i32, i32, i32
  }
}

module attributes {stable_mosaic.version = 11 : i64} {
  func.func @_conv_bn_relu_pool_kernel(%arg0: i32, %arg1: memref<1x4x49x400xf32, #tpu.memory_space<vmem>>, %arg2: memref<400x32xf32, #tpu.memory_space<vmem>>, %arg3: memref<1x32xf32, #tpu.memory_space<vmem>>, %arg4: memref<1x49x32xf32, #tpu.memory_space<vmem>>) attributes {dimension_semantics = [#tpu.dimension_semantics<parallel>], iteration_bounds = array<i64: 2>, scalar_prefetch = 0 : i64, scratch_operands = 0 : i64, tpu.core_type = #tpu.core_type<tc>, window_params = [{transform_indices = @transform_0, window_bounds = array<i64: 1, 4, 49, 400>}, {pipeline_mode = #tpu.pipeline_mode<synchronous>, transform_indices = @transform_1, window_bounds = array<i64: 400, 32>}, {pipeline_mode = #tpu.pipeline_mode<synchronous>, transform_indices = @transform_2, window_bounds = array<i64: 1, 32>}, {transform_indices = @transform_3, window_bounds = array<i64: 1, 49, 32>}]} {
    %c0 = arith.constant 0 : index
    %c0_0 = arith.constant 0 : index
    %0 = vector.load %arg2[%c0, %c0_0] : memref<400x32xf32, #tpu.memory_space<vmem>>, vector<400x32xf32>
    %c0_1 = arith.constant 0 : index
    %c0_2 = arith.constant 0 : index
    %1 = vector.load %arg3[%c0_1, %c0_2] : memref<1x32xf32, #tpu.memory_space<vmem>>, vector<1x32xf32>
    %c0_3 = arith.constant 0 : index
    %c0_4 = arith.constant 0 : index
    %c0_5 = arith.constant 0 : index
    %c0_6 = arith.constant 0 : index
    %2 = vector.load %arg1[%c0_3, %c0_4, %c0_5, %c0_6] : memref<1x4x49x400xf32, #tpu.memory_space<vmem>>, vector<1x1x49x400xf32>
    %3 = vector.shape_cast %2 : vector<1x1x49x400xf32> to vector<49x400xf32>
    %cst = arith.constant dense<0.000000e+00> : vector<49x32xf32>
    %4 = tpu.matmul %3, %0, %cst {dimension_numbers = #tpu.dot_dimension_numbers<[1], [0], [0], [1], [0, 0, 1, 1], [], []>} : vector<49x400xf32>, vector<400x32xf32>, vector<49x32xf32> -> vector<49x32xf32>
    %c0_7 = arith.constant 0 : index
    %c1 = arith.constant 1 : index
    %c0_8 = arith.constant 0 : index
    %c0_9 = arith.constant 0 : index
    %5 = vector.load %arg1[%c0_7, %c1, %c0_8, %c0_9] : memref<1x4x49x400xf32, #tpu.memory_space<vmem>>, vector<1x1x49x400xf32>
    %6 = vector.shape_cast %5 : vector<1x1x49x400xf32> to vector<49x400xf32>
    %cst_10 = arith.constant dense<0.000000e+00> : vector<49x32xf32>
    %7 = tpu.matmul %6, %0, %cst_10 {dimension_numbers = #tpu.dot_dimension_numbers<[1], [0], [0], [1], [0, 0, 1, 1], [], []>} : vector<49x400xf32>, vector<400x32xf32>, vector<49x32xf32> -> vector<49x32xf32>
    %8 = arith.maximumf %4, %7 : vector<49x32xf32>
    %c0_11 = arith.constant 0 : index
    %c2 = arith.constant 2 : index
    %c0_12 = arith.constant 0 : index
    %c0_13 = arith.constant 0 : index
    %9 = vector.load %arg1[%c0_11, %c2, %c0_12, %c0_13] : memref<1x4x49x400xf32, #tpu.memory_space<vmem>>, vector<1x1x49x400xf32>
    %10 = vector.shape_cast %9 : vector<1x1x49x400xf32> to vector<49x400xf32>
    %cst_14 = arith.constant dense<0.000000e+00> : vector<49x32xf32>
    %11 = tpu.matmul %10, %0, %cst_14 {dimension_numbers = #tpu.dot_dimension_numbers<[1], [0], [0], [1], [0, 0, 1, 1], [], []>} : vector<49x400xf32>, vector<400x32xf32>, vector<49x32xf32> -> vector<49x32xf32>
    %12 = arith.maximumf %8, %11 : vector<49x32xf32>
    %c0_15 = arith.constant 0 : index
    %c3 = arith.constant 3 : index
    %c0_16 = arith.constant 0 : index
    %c0_17 = arith.constant 0 : index
    %13 = vector.load %arg1[%c0_15, %c3, %c0_16, %c0_17] : memref<1x4x49x400xf32, #tpu.memory_space<vmem>>, vector<1x1x49x400xf32>
    %14 = vector.shape_cast %13 : vector<1x1x49x400xf32> to vector<49x400xf32>
    %cst_18 = arith.constant dense<0.000000e+00> : vector<49x32xf32>
    %15 = tpu.matmul %14, %0, %cst_18 {dimension_numbers = #tpu.dot_dimension_numbers<[1], [0], [0], [1], [0, 0, 1, 1], [], []>} : vector<49x400xf32>, vector<400x32xf32>, vector<49x32xf32> -> vector<49x32xf32>
    %16 = arith.maximumf %12, %15 : vector<49x32xf32>
    %17 = vector.broadcast %1 : vector<1x32xf32> to vector<49x32xf32>
    %18 = arith.addf %16, %17 : vector<49x32xf32>
    %cst_19 = arith.constant 0.000000e+00 : f32
    %19 = vector.broadcast %cst_19 : f32 to vector<49x32xf32>
    %20 = arith.maximumf %18, %19 : vector<49x32xf32>
    %c0_20 = arith.constant 0 : index
    %c0_21 = arith.constant 0 : index
    %c0_22 = arith.constant 0 : index
    %21 = vector.load %arg4[%c0_20, %c0_21, %c0_22] : memref<1x49x32xf32, #tpu.memory_space<vmem>>, vector<1x49x32xf32>
    %22 = vector.shape_cast %21 : vector<1x49x32xf32> to vector<49x32xf32>
    %23 = vector.shape_cast %20 : vector<49x32xf32> to vector<1x49x32xf32>
    tpu.vector_store %arg4[%c0_20, %c0_21, %c0_22], %23 {strides = array<i32>} : memref<1x49x32xf32, #tpu.memory_space<vmem>>, vector<1x49x32xf32>,
    return
  }
  func.func @transform_0(%arg0: i32) -> (i32, i32, i32, i32) {
    %c0_i32 = arith.constant 0 : i32
    %c0_i32_0 = arith.constant 0 : i32
    %c0_i32_1 = arith.constant 0 : i32
    %c0_i32_2 = arith.constant 0 : i32
    return %arg0, %c0_i32, %c0_i32_0, %c0_i32_1 : i32, i32, i32, i32
  }
  func.func @transform_1(%arg0: i32) -> (i32, i32) {
    %c0_i32 = arith.constant 0 : i32
    %c0_i32_0 = arith.constant 0 : i32
    %c0_i32_1 = arith.constant 0 : i32
    return %c0_i32, %c0_i32_0 : i32, i32
  }
  func.func @transform_2(%arg0: i32) -> (i32, i32) {
    %c0_i32 = arith.constant 0 : i32
    %c0_i32_0 = arith.constant 0 : i32
    %c0_i32_1 = arith.constant 0 : i32
    return %c0_i32, %c0_i32_0 : i32, i32
  }
  func.func @transform_3(%arg0: i32) -> (i32, i32, i32) {
    %c0_i32 = arith.constant 0 : i32
    %c0_i32_0 = arith.constant 0 : i32
    %c0_i32_1 = arith.constant 0 : i32
    return %arg0, %c0_i32, %c0_i32_0 : i32, i32, i32
  }
}

module attributes {stable_mosaic.version = 11 : i64} {
  func.func @_linear_kernel(%arg0: i32, %arg1: memref<2x1568xf32, #tpu.memory_space<vmem>>, %arg2: memref<1568x128xf32, #tpu.memory_space<vmem>>, %arg3: memref<1x128xf32, #tpu.memory_space<vmem>>, %arg4: memref<2x128xf32, #tpu.memory_space<vmem>>) attributes {dimension_semantics = [#tpu.dimension_semantics<parallel>], iteration_bounds = array<i64: 1>, scalar_prefetch = 0 : i64, scratch_operands = 0 : i64, tpu.core_type = #tpu.core_type<tc>, window_params = [{transform_indices = @transform_0, window_bounds = array<i64: 2, 1568>}, {pipeline_mode = #tpu.pipeline_mode<synchronous>, transform_indices = @transform_1, window_bounds = array<i64: 1568, 128>}, {pipeline_mode = #tpu.pipeline_mode<synchronous>, transform_indices = @transform_2, window_bounds = array<i64: 1, 128>}, {transform_indices = @transform_3, window_bounds = array<i64: 2, 128>}]} {
    %c0 = arith.constant 0 : index
    %c0_0 = arith.constant 0 : index
    %0 = vector.load %arg1[%c0, %c0_0] : memref<2x1568xf32, #tpu.memory_space<vmem>>, vector<2x1568xf32>
    %c0_1 = arith.constant 0 : index
    %c0_2 = arith.constant 0 : index
    %1 = vector.load %arg2[%c0_1, %c0_2] : memref<1568x128xf32, #tpu.memory_space<vmem>>, vector<1568x128xf32>
    %cst = arith.constant dense<0.000000e+00> : vector<2x128xf32>
    %2 = tpu.matmul %0, %1, %cst {dimension_numbers = #tpu.dot_dimension_numbers<[1], [0], [0], [1], [0, 0, 1, 1], [], []>} : vector<2x1568xf32>, vector<1568x128xf32>, vector<2x128xf32> -> vector<2x128xf32>
    %c0_3 = arith.constant 0 : index
    %c0_4 = arith.constant 0 : index
    %3 = vector.load %arg3[%c0_3, %c0_4] : memref<1x128xf32, #tpu.memory_space<vmem>>, vector<1x128xf32>
    %4 = vector.broadcast %3 : vector<1x128xf32> to vector<2x128xf32>
    %5 = arith.addf %2, %4 : vector<2x128xf32>
    %c0_5 = arith.constant 0 : index
    %c0_6 = arith.constant 0 : index
    %6 = vector.load %arg4[%c0_5, %c0_6] : memref<2x128xf32, #tpu.memory_space<vmem>>, vector<2x128xf32>
    tpu.vector_store %arg4[%c0_5, %c0_6], %5 {strides = array<i32>} : memref<2x128xf32, #tpu.memory_space<vmem>>, vector<2x128xf32>,
    return
  }
  func.func @transform_0(%arg0: i32) -> (i32, i32) {
    %c0_i32 = arith.constant 0 : i32
    %c0_i32_0 = arith.constant 0 : i32
    return %arg0, %c0_i32 : i32, i32
  }
  func.func @transform_1(%arg0: i32) -> (i32, i32) {
    %c0_i32 = arith.constant 0 : i32
    %c0_i32_0 = arith.constant 0 : i32
    %c0_i32_1 = arith.constant 0 : i32
    return %c0_i32, %c0_i32_0 : i32, i32
  }
  func.func @transform_2(%arg0: i32) -> (i32, i32) {
    %c0_i32 = arith.constant 0 : i32
    %c0_i32_0 = arith.constant 0 : i32
    %c0_i32_1 = arith.constant 0 : i32
    return %c0_i32, %c0_i32_0 : i32, i32
  }
  func.func @transform_3(%arg0: i32) -> (i32, i32) {
    %c0_i32 = arith.constant 0 : i32
    %c0_i32_0 = arith.constant 0 : i32
    return %arg0, %c0_i32 : i32, i32
  }
}

</mosaic_0001>

<llo_original>
// kernel: cnn_forward.3
$region0: #{cnn_forward.3}
  #allocation0 [shape = 'u32[]', space=smem, size = 0x4, offset = 0x4, fixed_abs, tag = 'smem constant byte address 0x4 - core index']
  #allocation1 [shape = 'u32[144,128]{1,0:T(1,128)}', space=vmem, size = 0x12000, scoped, tag = 'internal scratch']
  %s0 = inlined_call_operand.vmem [shape: f32[2,4,196,25], index: 0, kind: input, shape index: {}]
  %s1 = inlined_call_operand.vmem [shape: f32[25,16], index: 1, kind: input, shape index: {}]
  %s2 = inlined_call_operand.vmem [shape: f32[1,16], index: 2, kind: input, shape index: {}]
  %s3 = inlined_call_operand.vmem [shape: f32[2,196,16], index: 3, kind: output, shape index: {}]
  %s4 = sld [smem:[#allocation0]]
  $region45: #{cnn_forward.3} parent=0
    _
  %s6 = ssub.s32 1, %s4
  %s7 = scalar_select 0, %s6, %s4
  loop: start=0, step=1, limit=4
  $region2: #{cnn_forward.3} parent=0 // loop_pre_header
    _
  $region3: #{cnn_forward.3} parent=0 // loop_header
    %s9 = sphi 0, %s13
    %p10 = scmp.ge.s32.totalorder %s9, 4
    %s19 = sphi 0, %s21
    %s22 = sphi 0, %s19
    %s23 = sphi 0, %s22
    %s39 = sphi 0, %s23
    %s43 = sphi 0, %s43
    %s45 = sphi 0, %s43
    %s46 = sphi 0, %s45
    %s60 = sphi 0, %s46
    %s64 = sphi 0, %s64
    %s66 = sphi 0, %s64
    %s67 = sphi 0, %s66
    %s81 = sphi 0, %s67
    %s87 = sphi 0, %s89
    %s90 = sphi 0, %s87
    %s91 = sphi 0, %s90
    %s107 = sphi 0, %s91
  $region4: #{cnn_forward.3} parent=0 // loop_header_branch
    %12 = sbr.rel (%p10) target = $region8
  $region5: #{cnn_forward.3} parent=0 // loop_body
    %s14 = ssub.s32 %s9, 1
    %s15 = ssub.s32 %s9, 2
    %s16 = sadd.s32 %s9, 1
    %s17 = ssub.s32 %s9, %s16
    %p18 = scmp.eq.s32.totalorder %s17, 0
    %s20 = sadd.s32 %s19, 1
    %s21 = scalar_select %p18, %s19, %s20
    %p24 = pneg %p18
    %p25 = scmp.eq.s32.totalorder %s9, 1
    %p26 = por %p24, %p25
    %p27 = scmp.ne.s32.totalorder %s19, %s22
    %p28 = scmp.eq.s32.totalorder %s9, 0
    %p29 = por %p27, %p28
    %p30 = scmp.ne.s32.totalorder %s19, %s22
    %p31 = scmp.eq.s32.totalorder %s14, 1
    %p32 = por %p30, %p31
    %p33 = scmp.ne.s32.totalorder %s22, %s23
    %p34 = scmp.eq.s32.totalorder %s14, 0
    %p35 = por %p33, %p34
    %p36 = scmp.ne.s32.totalorder %s22, %s23
    %p37 = scmp.eq.s32.totalorder %s15, 1
    %p38 = por %p36, %p37
    %p40 = scmp.ne.s32.totalorder %s23, %s39
    %p41 = scmp.eq.s32.totalorder %s15, 0
    %p42 = por %p40, %p41
    %s44 = sadd.s32 %s43, 1
    %p47 = scmp.eq.s32.totalorder %s9, 1
    %p48 = scmp.ne.s32.totalorder %s43, %s45
    %p49 = scmp.eq.s32.totalorder %s9, 0
    %p50 = por %p48, %p49
    %p51 = scmp.ne.s32.totalorder %s43, %s45
    %p52 = scmp.eq.s32.totalorder %s14, 1
    %p53 = por %p51, %p52
    %p54 = scmp.ne.s32.totalorder %s45, %s46
    %p55 = scmp.eq.s32.totalorder %s14, 0
    %p56 = por %p54, %p55
    %p57 = scmp.ne.s32.totalorder %s45, %s46
    %p58 = scmp.eq.s32.totalorder %s15, 1
    %p59 = por %p57, %p58
    %p61 = scmp.ne.s32.totalorder %s46, %s60
    %p62 = scmp.eq.s32.totalorder %s15, 0
    %p63 = por %p61, %p62
    %s65 = sadd.s32 %s64, 1
    %p68 = scmp.eq.s32.totalorder %s9, 1
    %p69 = scmp.ne.s32.totalorder %s64, %s66
    %p70 = scmp.eq.s32.totalorder %s9, 0
    %p71 = por %p69, %p70
    %p72 = scmp.ne.s32.totalorder %s64, %s66
    %p73 = scmp.eq.s32.totalorder %s14, 1
    %p74 = por %p72, %p73
    %p75 = scmp.ne.s32.totalorder %s66, %s67
    %p76 = scmp.eq.s32.totalorder %s14, 0
    %p77 = por %p75, %p76
    %p78 = scmp.ne.s32.totalorder %s66, %s67
    %p79 = scmp.eq.s32.totalorder %s15, 1
    %p80 = por %p78, %p79
    %p82 = scmp.ne.s32.totalorder %s67, %s81
    %p83 = scmp.eq.s32.totalorder %s15, 0
    %p84 = por %p82, %p83
    %s85 = ssub.s32 %s9, %s16
    %p86 = scmp.eq.s32.totalorder %s85, 0
    %s88 = sadd.s32 %s87, 1
    %s89 = scalar_select %p86, %s87, %s88
    %p92 = pneg %p86
    %p93 = scmp.eq.s32.totalorder %s9, 1
    %p94 = por %p92, %p93
    %p95 = scmp.ne.s32.totalorder %s87, %s90
    %p96 = scmp.eq.s32.totalorder %s9, 0
    %p97 = por %p95, %p96
    %p98 = scmp.ne.s32.totalorder %s87, %s90
    %p99 = scmp.eq.s32.totalorder %s14, 1
    %p100 = por %p98, %p99
    %p101 = scmp.ne.s32.totalorder %s90, %s91
    %p102 = scmp.eq.s32.totalorder %s14, 0
    %p103 = por %p101, %p102
    %p104 = scmp.ne.s32.totalorder %s90, %s91
    %p105 = scmp.eq.s32.totalorder %s15, 1
    %p106 = por %p104, %p105
    %p108 = scmp.ne.s32.totalorder %s91, %s107
    %p109 = scmp.eq.s32.totalorder %s15, 0
    %p110 = por %p108, %p109
    %p111 = scmp.le.s32.totalorder 1, %s9
    %p112 = scmp.lt.s32.totalorder %s9, 3
    %p113 = pnand %p111, %p112
    %p114 = pneg %p113
    // Predicated region
    $region9: #{cnn_forward.3} parent=5 // pred_check
      _
    $region10: #{cnn_forward.3} parent=5 // pred_check_branch
      %116 = sbr.rel (%p113) target = $region12
    $region11: #{cnn_forward.3} parent=5 // pred_region
      %s117 = ssub.s32 %s9, 1
      // Predicated region
      $region13: #{cnn_forward.3} parent=11 // pred_check
        %p118 = pneg %p56
      $region14: #{cnn_forward.3} parent=11 // pred_check_branch
        %120 = sbr.rel (%p118) target = $region16
      $region15: #{cnn_forward.3} parent=11 // pred_region
        _
      $region16: #{cnn_forward.3} parent=11 // pred_fallthru
        _
      // Predicated region
      $region17: #{cnn_forward.3} parent=11 // pred_check
        %p121 = pneg %p77
      $region18: #{cnn_forward.3} parent=11 // pred_check_branch
        %123 = sbr.rel (%p121) target = $region20
      $region19: #{cnn_forward.3} parent=11 // pred_region
        _
      $region20: #{cnn_forward.3} parent=11 // pred_fallthru
        _
    $region12: #{cnn_forward.3} parent=5 // pred_fallthru
      _
    %p124 = scmp.lt.s32.totalorder %s9, 2
    // Predicated region
    $region21: #{cnn_forward.3} parent=5 // pred_check
      %p125 = pneg %p124
    $region22: #{cnn_forward.3} parent=5 // pred_check_branch
      %127 = sbr.rel (%p125) target = $region24
    $region23: #{cnn_forward.3} parent=5 // pred_region
      // Predicated region
      $region25: #{cnn_forward.3} parent=23 // pred_check
        %p128 = pneg %p29
      $region26: #{cnn_forward.3} parent=23 // pred_check_branch
        %130 = sbr.rel (%p128) target = $region28
      $region27: #{cnn_forward.3} parent=23 // pred_region
        %p131 = scmp.lt.s32.totalorder %s9, 1
        %s132 = scalar_select %p131, %s9, 1
        %s133 = smul.addr %s132, 100
        %s134 = smul.addr %s133, 8
        %s135 = scalar_lea.vmem %s0, %s134
      $region28: #{cnn_forward.3} parent=23 // pred_fallthru
        _
    $region24: #{cnn_forward.3} parent=5 // pred_fallthru
      _
    %p136 = scmp.le.s32.totalorder 1, %s9
    %p137 = scmp.lt.s32.totalorder %s9, 3
    %p138 = pnand %p136, %p137
    %p139 = pneg %p138
    // Predicated region
    $region29: #{cnn_forward.3} parent=5 // pred_check
      _
    $region30: #{cnn_forward.3} parent=5 // pred_check_branch
      %141 = sbr.rel (%p138) target = $region32
    $region31: #{cnn_forward.3} parent=5 // pred_region
      %s142 = ssub.s32 %s9, 1
      %p143 = scmp.lt.s32.totalorder %s14, 1
      %s144 = scalar_select %p143, %s14, 1
      %s145 = smul.addr %s144, 100
      %s146 = smul.addr %s145, 8
      %s147 = scalar_lea.vmem %s0, %s146
      %p148 = pneg %p35
      %p149 = pneg %p32
      %p150 = pneg %p56
      %p151 = pneg %p53
      %p152 = pneg %p77
      %p153 = pneg %p74
      %p154 = pneg %p103
      %p155 = pneg %p100
      %p156 = scmp.lt.s32.totalorder %s14, 1
      %s157 = scalar_select %p156, %s14, 1
      %s158 = smul.addr %s157, 25
      %s159 = smul.addr %s158, 8
      %s160 = scalar_lea.vmem %s3, %s159
      %p161 = scmp.lt.s32.totalorder %s14, 1
      %s162 = scalar_select %p161, %s14, 1
      %s163 = smul.addr %s162, 100
      %s164 = smul.addr %s163, 8
      %s165 = scalar_lea.vmem %s0, %s164
      %p166 = scmp.lt.s32.totalorder %s14, 1
      %s167 = scalar_select %p166, %s14, 1
      %s168 = smul.addr %s167, 25
      %s169 = smul.addr %s168, 8
      %s170 = scalar_lea.vmem %s3, %s169
      %v171 = vld [vmem:[%s1] sm:$0xff]
      %v172 = vld [vmem:[%s1 + $0x8] sm:$0xff]
      %v173 = vld [vmem:[%s1 + $0x10] sm:$0xff]
      %v174 = vld [vmem:[%s1 + $0x18] sm:$0x1]
      %v175 = vld [vmem:[%s2] sm:$0x1]
      %v176 = vld [vmem:[%s165] sm:$0xff]
      %v177 = vld [vmem:[%s165 + $0x8] sm:$0xff]
      %v178 = vld [vmem:[%s165 + $0x10] sm:$0xff]
      %v179 = vld [vmem:[%s165 + $0x18] sm:$0xff]
      %v180 = vld [vmem:[%s165 + $0x20] sm:$0xff]
      %v181 = vld [vmem:[%s165 + $0x28] sm:$0xff]
      %v182 = vld [vmem:[%s165 + $0x30] sm:$0xff]
      %v183 = vld [vmem:[%s165 + $0x38] sm:$0xff]
      %v184 = vld [vmem:[%s165 + $0x40] sm:$0xff]
      %v185 = vld [vmem:[%s165 + $0x48] sm:$0xff]
      %v186 = vld [vmem:[%s165 + $0x50] sm:$0xff]
      %v187 = vld [vmem:[%s165 + $0x58] sm:$0xff]
      %v188 = vld [vmem:[%s165 + $0x60] sm:$0xff]
      %v189 = vld [vmem:[%s165 + $0x68] sm:$0xff]
      %v190 = vld [vmem:[%s165 + $0x70] sm:$0xff]
      %v191 = vld [vmem:[%s165 + $0x78] sm:$0xff]
      %v192 = vld [vmem:[%s165 + $0x80] sm:$0xff]
      %v193 = vld [vmem:[%s165 + $0x88] sm:$0xff]
      %v194 = vld [vmem:[%s165 + $0x90] sm:$0xff]
      %v195 = vld [vmem:[%s165 + $0x98] sm:$0xff]
      %v196 = vld [vmem:[%s165 + $0xa0] sm:$0xff]
      %v197 = vld [vmem:[%s165 + $0xa8] sm:$0xff]
      %v198 = vld [vmem:[%s165 + $0xb0] sm:$0xff]
      %v199 = vld [vmem:[%s165 + $0xb8] sm:$0xff]
      %v200 = vld [vmem:[%s165 + $0xc0] sm:$0xf]
      %vm201 = vcmask 203776
      %v203 = vsel %vm201, %v176, 0
      %v206 = vsel %vm201, %v177, 0
      %v209 = vsel %vm201, %v178, 0
      %v212 = vsel %vm201, %v179, 0
      %v215 = vsel %vm201, %v180, 0
      %v218 = vsel %vm201, %v181, 0
      %v221 = vsel %vm201, %v182, 0
      %v224 = vsel %vm201, %v183, 0
      %v227 = vsel %vm201, %v184, 0
      %v230 = vsel %vm201, %v185, 0
      %v233 = vsel %vm201, %v186, 0
      %v236 = vsel %vm201, %v187, 0
      %v239 = vsel %vm201, %v188, 0
      %v242 = vsel %vm201, %v189, 0
      %v245 = vsel %vm201, %v190, 0
      %v248 = vsel %vm201, %v191, 0
      %v251 = vsel %vm201, %v192, 0
      %v254 = vsel %vm201, %v193, 0
      %v257 = vsel %vm201, %v194, 0
      %v260 = vsel %vm201, %v195, 0
      %v263 = vsel %vm201, %v196, 0
      %v266 = vsel %vm201, %v197, 0
      %v269 = vsel %vm201, %v198, 0
      %v272 = vsel %vm201, %v199, 0
      %v275 = vsel %vm201, %v200, 0
      %vm277 = vcmask 1040384
      %v279 = vsel %vm277, %v174, 0
      %281 = vmatprep.subr.mxu0 0.0
      %282 = vmatpush1.msra.mxu0 %v171
      %283 = vmatprep.subr.mxu0 0.0
      %284 = vmatpush1.msra.mxu0 %v172
      %285 = vmatprep.subr.mxu0 0.0
      %286 = vmatpush1.msra.mxu0 %v173
      %287 = vmatprep.subr.mxu0 0.0
      %288 = vmatpush1.msra.mxu0 %v279
      %289 = vmatprep.subr.mxu0 0.0
      %290 = vmatpush1.msra.mxu0 0.0
      %291 = vmatprep.subr.mxu0 0.0
      %292 = vmatpush1.msra.mxu0 0.0
      %293 = vmatprep.subr.mxu0 0.0
      %294 = vmatpush1.msra.mxu0 0.0
      %295 = vmatprep.subr.mxu0 0.0
      %296 = vmatpush1.msra.mxu0 0.0
      %297 = vmatprep.subr.mxu0 0.0
      %298 = vmatpush1.msra.mxu0 0.0
      %299 = vmatprep.subr.mxu0 0.0
      %300 = vmatpush1.msra.mxu0 0.0
      %301 = vmatprep.subr.mxu0 0.0
      %302 = vmatpush1.msra.mxu0 0.0
      %303 = vmatprep.subr.mxu0 0.0
      %304 = vmatpush1.msra.mxu0 0.0
      %305 = vmatprep.subr.mxu0 0.0
      %306 = vmatpush1.msra.mxu0 0.0
      %307 = vmatprep.subr.mxu0 0.0
      %308 = vmatpush1.msra.mxu0 0.0
      %309 = vmatprep.subr.mxu0 0.0
      %310 = vmatpush1.msra.mxu0 0.0
      %311 = vmatprep.subr.mxu0 0.0
      %312 = vmatpush1.msra.mxu0 0.0
      %313 = vmatprep.subr.mxu0 0.0
      %314 = vmatpush1.msra.mxu0 0.0
      %315 = vmatprep.subr.mxu0 0.0
      %316 = vmatpush1.msra.mxu0 0.0
      %317 = vmatprep.subr.mxu0 0.0
      %318 = vmatpush1.msra.mxu0 0.0
      %319 = vmatprep.subr.mxu0 0.0
      %320 = vmatpush1.msra.mxu0 0.0
      %321 = vmatprep.subr.mxu0 0.0
      %322 = vmatpush1.msra.mxu0 0.0
      %323 = vmatprep.subr.mxu0 0.0
      %324 = vmatpush1.msra.mxu0 0.0
      %325 = vmatprep.subr.mxu0 0.0
      %326 = vmatpush1.msra.mxu0 0.0
      %327 = vmatprep.subr.mxu0 0.0
      %328 = vmatpush1.msra.mxu0 0.0
      %329 = vmatprep.subr.mxu0 0.0
      %330 = vmatpush1.msra.mxu0 0.0
      %331 = vmatprep.subr.mxu0 0.0
      %332 = vmatpush1.msra.mxu0 0.0
      %333 = vmatprep.subr.mxu0 0.0
      %334 = vmatpush1.msra.mxu0 0.0
      %335 = vmatprep.subr.mxu0 0.0
      %336 = vmatpush1.msra.mxu0 0.0
      %337 = vmatprep.subr.mxu0 0.0
      %338 = vmatpush1.msra.mxu0 0.0
      %339 = vmatprep.subr.mxu0 0.0
      %340 = vmatpush1.msra.mxu0 0.0
      %341 = vmatprep.subr.mxu0 0.0
      %342 = vmatpush1.msra.mxu0 0.0
      %343 = vmatprep.subr.mxu0 0.0
      %344 = vmatpush1.msra.mxu0 0.0
      %345 = vmatprep.mubr.f32.mxu0 0.0
      %346 = vmatmul.mubr.f32.gmra.mrb[0].mxu0 %v203
      %v347 = vpop.f32.mrb[0].mxu0
      %v348 = vadd.f32 0.0, %v347
      %v349 = vpop.f32.mrb[0].mxu0
      %350 = vmatprep.mubr.f32.mxu0 0.0
      %351 = vmatmul.mubr.f32.gmra.mrb[0].mxu0 %v206
      %v352 = vpop.f32.mrb[0].mxu0
      %v353 = vadd.f32 0.0, %v352
      %v354 = vpop.f32.mrb[0].mxu0
      %355 = vmatprep.mubr.f32.mxu0 0.0
      %356 = vmatmul.mubr.f32.gmra.mrb[0].mxu0 %v209
      %v357 = vpop.f32.mrb[0].mxu0
      %v358 = vadd.f32 0.0, %v357
      %v359 = vpop.f32.mrb[0].mxu0
      %360 = vmatprep.mubr.f32.mxu0 0.0
      %361 = vmatmul.mubr.f32.gmra.mrb[0].mxu0 %v212
      %v362 = vpop.f32.mrb[0].mxu0
      %v363 = vadd.f32 0.0, %v362
      %v364 = vpop.f32.mrb[0].mxu0
      %365 = vmatprep.mubr.f32.mxu0 0.0
      %366 = vmatmul.mubr.f32.gmra.mrb[0].mxu0 %v215
      %v367 = vpop.f32.mrb[0].mxu0
      %v368 = vadd.f32 0.0, %v367
      %v369 = vpop.f32.mrb[0].mxu0
      %370 = vmatprep.mubr.f32.mxu0 0.0
      %371 = vmatmul.mubr.f32.gmra.mrb[0].mxu0 %v218
      %v372 = vpop.f32.mrb[0].mxu0
      %v373 = vadd.f32 0.0, %v372
      %v374 = vpop.f32.mrb[0].mxu0
      %375 = vmatprep.mubr.f32.mxu0 0.0
      %376 = vmatmul.mubr.f32.gmra.mrb[0].mxu0 %v221
      %v377 = vpop.f32.mrb[0].mxu0
      %v378 = vadd.f32 0.0, %v377
      %v379 = vpop.f32.mrb[0].mxu0
      %380 = vmatprep.mubr.f32.mxu0 0.0
      %381 = vmatmul.mubr.f32.gmra.mrb[0].mxu0 %v224
      %v382 = vpop.f32.mrb[0].mxu0
      %v383 = vadd.f32 0.0, %v382
      %v384 = vpop.f32.mrb[0].mxu0
      %385 = vmatprep.mubr.f32.mxu0 0.0
      %386 = vmatmul.mubr.f32.gmra.mrb[0].mxu0 %v227
      %v387 = vpop.f32.mrb[0].mxu0
      %v388 = vadd.f32 0.0, %v387
      %v389 = vpop.f32.mrb[0].mxu0
      %390 = vmatprep.mubr.f32.mxu0 0.0
      %391 = vmatmul.mubr.f32.gmra.mrb[0].mxu0 %v230
      %v392 = vpop.f32.mrb[0].mxu0
      %v393 = vadd.f32 0.0, %v392
      %v394 = vpop.f32.mrb[0].mxu0
      %395 = vmatprep.mubr.f32.mxu0 0.0
      %396 = vmatmul.mubr.f32.gmra.mrb[0].mxu0 %v233
      %v397 = vpop.f32.mrb[0].mxu0
      %v398 = vadd.f32 0.0, %v397
      %v399 = vpop.f32.mrb[0].mxu0
      %400 = vmatprep.mubr.f32.mxu0 0.0
      %401 = vmatmul.mubr.f32.gmra.mrb[0].mxu0 %v236
      %v402 = vpop.f32.mrb[0].mxu0
      %v403 = vadd.f32 0.0, %v402
      %v404 = vpop.f32.mrb[0].mxu0
      %405 = vmatprep.mubr.f32.mxu0 0.0
      %406 = vmatmul.mubr.f32.gmra.mrb[0].mxu0 %v239
      %v407 = vpop.f32.mrb[0].mxu0
      %v408 = vadd.f32 0.0, %v407
      %v409 = vpop.f32.mrb[0].mxu0
      %410 = vmatprep.mubr.f32.mxu0 0.0
      %411 = vmatmul.mubr.f32.gmra.mrb[0].mxu0 %v242
      %v412 = vpop.f32.mrb[0].mxu0
      %v413 = vadd.f32 0.0, %v412
      %v414 = vpop.f32.mrb[0].mxu0
      %415 = vmatprep.mubr.f32.mxu0 0.0
      %416 = vmatmul.mubr.f32.gmra.mrb[0].mxu0 %v245
      %v417 = vpop.f32.mrb[0].mxu0
      %v418 = vadd.f32 0.0, %v417
      %v419 = vpop.f32.mrb[0].mxu0
      %420 = vmatprep.mubr.f32.mxu0 0.0
      %421 = vmatmul.mubr.f32.gmra.mrb[0].mxu0 %v248
      %v422 = vpop.f32.mrb[0].mxu0
      %v423 = vadd.f32 0.0, %v422
      %v424 = vpop.f32.mrb[0].mxu0
      %425 = vmatprep.mubr.f32.mxu0 0.0
      %426 = vmatmul.mubr.f32.gmra.mrb[0].mxu0 %v251
      %v427 = vpop.f32.mrb[0].mxu0
      %v428 = vadd.f32 0.0, %v427
      %v429 = vpop.f32.mrb[0].mxu0
      %430 = vmatprep.mubr.f32.mxu0 0.0
      %431 = vmatmul.mubr.f32.gmra.mrb[0].mxu0 %v254
      %v432 = vpop.f32.mrb[0].mxu0
      %v433 = vadd.f32 0.0, %v432
      %v434 = vpop.f32.mrb[0].mxu0
      %435 = vmatprep.mubr.f32.mxu0 0.0
      %436 = vmatmul.mubr.f32.gmra.mrb[0].mxu0 %v257
      %v437 = vpop.f32.mrb[0].mxu0
      %v438 = vadd.f32 0.0, %v437
      %v439 = vpop.f32.mrb[0].mxu0
      %440 = vmatprep.mubr.f32.mxu0 0.0
      %441 = vmatmul.mubr.f32.gmra.mrb[0].mxu0 %v260
      %v442 = vpop.f32.mrb[0].mxu0
      %v443 = vadd.f32 0.0, %v442
      %v444 = vpop.f32.mrb[0].mxu0
      %445 = vmatprep.mubr.f32.mxu0 0.0
      %446 = vmatmul.mubr.f32.gmra.mrb[0].mxu0 %v263
      %v447 = vpop.f32.mrb[0].mxu0
      %v448 = vadd.f32 0.0, %v447
      %v449 = vpop.f32.mrb[0].mxu0
      %450 = vmatprep.mubr.f32.mxu0 0.0
      %451 = vmatmul.mubr.f32.gmra.mrb[0].mxu0 %v266
      %v452 = vpop.f32.mrb[0].mxu0
      %v453 = vadd.f32 0.0, %v452
      %v454 = vpop.f32.mrb[0].mxu0
      %455 = vmatprep.mubr.f32.mxu0 0.0
      %456 = vmatmul.mubr.f32.gmra.mrb[0].mxu0 %v269
      %v457 = vpop.f32.mrb[0].mxu0
      %v458 = vadd.f32 0.0, %v457
      %v459 = vpop.f32.mrb[0].mxu0
      %460 = vmatprep.mubr.f32.mxu0 0.0
      %461 = vmatmul.mubr.f32.gmra.mrb[0].mxu0 %v272
      %v462 = vpop.f32.mrb[0].mxu0
      %v463 = vadd.f32 0.0, %v462
      %v464 = vpop.f32.mrb[0].mxu0
      %465 = vmatprep.mubr.f32.mxu0 0.0
      %466 = vmatmul.mubr.f32.gmra.mrb[0].mxu0 %v275
      %v467 = vpop.f32.mrb[0].mxu0
      %v468 = vadd.f32 0.0, %v467
      %v469 = vpop.f32.mrb[0].mxu0
      %470 = vdwg.mxu0
      %s471 = scalar_lea.vmem %s165, 200
      %v472 = vld [vmem:[%s471] sm:$0xff]
      %v473 = vld [vmem:[%s471 + $0x8] sm:$0xff]
      %v474 = vld [vmem:[%s471 + $0x10] sm:$0xff]
      %v475 = vld [vmem:[%s471 + $0x18] sm:$0xff]
      %v476 = vld [vmem:[%s471 + $0x20] sm:$0xff]
      %v477 = vld [vmem:[%s471 + $0x28] sm:$0xff]
      %v478 = vld [vmem:[%s471 + $0x30] sm:$0xff]
      %v479 = vld [vmem:[%s471 + $0x38] sm:$0xff]
      %v480 = vld [vmem:[%s471 + $0x40] sm:$0xff]
      %v481 = vld [vmem:[%s471 + $0x48] sm:$0xff]
      %v482 = vld [vmem:[%s471 + $0x50] sm:$0xff]
      %v483 = vld [vmem:[%s471 + $0x58] sm:$0xff]
      %v484 = vld [vmem:[%s471 + $0x60] sm:$0xff]
      %v485 = vld [vmem:[%s471 + $0x68] sm:$0xff]
      %v486 = vld [vmem:[%s471 + $0x70] sm:$0xff]
      %v487 = vld [vmem:[%s471 + $0x78] sm:$0xff]
      %v488 = vld [vmem:[%s471 + $0x80] sm:$0xff]
      %v489 = vld [vmem:[%s471 + $0x88] sm:$0xff]
      %v490 = vld [vmem:[%s471 + $0x90] sm:$0xff]
      %v491 = vld [vmem:[%s471 + $0x98] sm:$0xff]
      %v492 = vld [vmem:[%s471 + $0xa0] sm:$0xff]
      %v493 = vld [vmem:[%s471 + $0xa8] sm:$0xff]
      %v494 = vld [vmem:[%s471 + $0xb0] sm:$0xff]
      %v495 = vld [vmem:[%s471 + $0xb8] sm:$0xff]
      %v496 = vld [vmem:[%s471 + $0xc0] sm:$0xf]
      %v498 = vsel %vm201, %v472, 0
      %v501 = vsel %vm201, %v473, 0
      %v504 = vsel %vm201, %v474, 0
      %v507 = vsel %vm201, %v475, 0
      %v510 = vsel %vm201, %v476, 0
      %v513 = vsel %vm201, %v477, 0
      %v516 = vsel %vm201, %v478, 0
      %v519 = vsel %vm201, %v479, 0
      %v522 = vsel %vm201, %v480, 0
      %v525 = vsel %vm201, %v481, 0
      %v528 = vsel %vm201, %v482, 0
      %v531 = vsel %vm201, %v483, 0
      %v534 = vsel %vm201, %v484, 0
      %v537 = vsel %vm201, %v485, 0
      %v540 = vsel %vm201, %v486, 0
      %v543 = vsel %vm201, %v487, 0
      %v546 = vsel %vm201, %v488, 0
      %v549 = vsel %vm201, %v489, 0
      %v552 = vsel %vm201, %v490, 0
      %v555 = vsel %vm201, %v491, 0
      %v558 = vsel %vm201, %v492, 0
      %v561 = vsel %vm201, %v493, 0
      %v564 = vsel %vm201, %v494, 0
      %v567 = vsel %vm201, %v495, 0
      %v570 = vsel %vm201, %v496, 0
      %572 = vmatprep.subr.mxu0 0.0
      %573 = vmatpush1.msra.mxu0 %v171
      %574 = vmatprep.subr.mxu0 0.0
      %575 = vmatpush1.msra.mxu0 %v172
      %576 = vmatprep.subr.mxu0 0.0
      %577 = vmatpush1.msra.mxu0 %v173
      %578 = vmatprep.subr.mxu0 0.0
      %579 = vmatpush1.msra.mxu0 %v279
      %580 = vmatprep.subr.mxu0 0.0
      %581 = vmatpush1.msra.mxu0 0.0
      %582 = vmatprep.subr.mxu0 0.0
      %583 = vmatpush1.msra.mxu0 0.0
      %584 = vmatprep.subr.mxu0 0.0
      %585 = vmatpush1.msra.mxu0 0.0
      %586 = vmatprep.subr.mxu0 0.0
      %587 = vmatpush1.msra.mxu0 0.0
      %588 = vmatprep.subr.mxu0 0.0
      %589 = vmatpush1.msra.mxu0 0.0
      %590 = vmatprep.subr.mxu0 0.0
      %591 = vmatpush1.msra.mxu0 0.0
      %592 = vmatprep.subr.mxu0 0.0
      %593 = vmatpush1.msra.mxu0 0.0
      %594 = vmatprep.subr.mxu0 0.0
      %595 = vmatpush1.msra.mxu0 0.0
      %596 = vmatprep.subr.mxu0 0.0
      %597 = vmatpush1.msra.mxu0 0.0
      %598 = vmatprep.subr.mxu0 0.0
      %599 = vmatpush1.msra.mxu0 0.0
      %600 = vmatprep.subr.mxu0 0.0
      %601 = vmatpush1.msra.mxu0 0.0
      %602 = vmatprep.subr.mxu0 0.0
      %603 = vmatpush1.msra.mxu0 0.0
      %604 = vmatprep.subr.mxu0 0.0
      %605 = vmatpush1.msra.mxu0 0.0
      %606 = vmatprep.subr.mxu0 0.0
      %607 = vmatpush1.msra.mxu0 0.0
      %608 = vmatprep.subr.mxu0 0.0
      %609 = vmatpush1.msra.mxu0 0.0
      %610 = vmatprep.subr.mxu0 0.0
      %611 = vmatpush1.msra.mxu0 0.0
      %612 = vmatprep.subr.mxu0 0.0
      %613 = vmatpush1.msra.mxu0 0.0
      %614 = vmatprep.subr.mxu0 0.0
      %615 = vmatpush1.msra.mxu0 0.0
      %616 = vmatprep.subr.mxu0 0.0
      %617 = vmatpush1.msra.mxu0 0.0
      %618 = vmatprep.subr.mxu0 0.0
      %619 = vmatpush1.msra.mxu0 0.0
      %620 = vmatprep.subr.mxu0 0.0
      %621 = vmatpush1.msra.mxu0 0.0
      %622 = vmatprep.subr.mxu0 0.0
      %623 = vmatpush1.msra.mxu0 0.0
      %624 = vmatprep.subr.mxu0 0.0
      %625 = vmatpush1.msra.mxu0 0.0
      %626 = vmatprep.subr.mxu0 0.0
      %627 = vmatpush1.msra.mxu0 0.0
      %628 = vmatprep.subr.mxu0 0.0
      %629 = vmatpush1.msra.mxu0 0.0
      %630 = vmatprep.subr.mxu0 0.0
      %631 = vmatpush1.msra.mxu0 0.0
      %632 = vmatprep.subr.mxu0 0.0
      %633 = vmatpush1.msra.mxu0 0.0
      %634 = vmatprep.subr.mxu0 0.0
      %635 = vmatpush1.msra.mxu0 0.0
      %636 = vmatprep.mubr.f32.mxu0 0.0
      %637 = vmatmul.mubr.f32.gmra.mrb[0].mxu0 %v498
      %v638 = vpop.f32.mrb[0].mxu0
      %v639 = vadd.f32 0.0, %v638
      %v640 = vpop.f32.mrb[0].mxu0
      %641 = vmatprep.mubr.f32.mxu0 0.0
      %642 = vmatmul.mubr.f32.gmra.mrb[0].mxu0 %v501
      %v643 = vpop.f32.mrb[0].mxu0
      %v644 = vadd.f32 0.0, %v643
      %v645 = vpop.f32.mrb[0].mxu0
      %646 = vmatprep.mubr.f32.mxu0 0.0
      %647 = vmatmul.mubr.f32.gmra.mrb[0].mxu0 %v504
      %v648 = vpop.f32.mrb[0].mxu0
      %v649 = vadd.f32 0.0, %v648
      %v650 = vpop.f32.mrb[0].mxu0
      %651 = vmatprep.mubr.f32.mxu0 0.0
      %652 = vmatmul.mubr.f32.gmra.mrb[0].mxu0 %v507
      %v653 = vpop.f32.mrb[0].mxu0
      %v654 = vadd.f32 0.0, %v653
      %v655 = vpop.f32.mrb[0].mxu0
      %656 = vmatprep.mubr.f32.mxu0 0.0
      %657 = vmatmul.mubr.f32.gmra.mrb[0].mxu0 %v510
      %v658 = vpop.f32.mrb[0].mxu0
      %v659 = vadd.f32 0.0, %v658
      %v660 = vpop.f32.mrb[0].mxu0
      %661 = vmatprep.mubr.f32.mxu0 0.0
      %662 = vmatmul.mubr.f32.gmra.mrb[0].mxu0 %v513
      %v663 = vpop.f32.mrb[0].mxu0
      %v664 = vadd.f32 0.0, %v663
      %v665 = vpop.f32.mrb[0].mxu0
      %666 = vmatprep.mubr.f32.mxu0 0.0
      %667 = vmatmul.mubr.f32.gmra.mrb[0].mxu0 %v516
      %v668 = vpop.f32.mrb[0].mxu0
      %v669 = vadd.f32 0.0, %v668
      %v670 = vpop.f32.mrb[0].mxu0
      %671 = vmatprep.mubr.f32.mxu0 0.0
      %672 = vmatmul.mubr.f32.gmra.mrb[0].mxu0 %v519
      %v673 = vpop.f32.mrb[0].mxu0
      %v674 = vadd.f32 0.0, %v673
      %v675 = vpop.f32.mrb[0].mxu0
      %676 = vmatprep.mubr.f32.mxu0 0.0
      %677 = vmatmul.mubr.f32.gmra.mrb[0].mxu0 %v522
      %v678 = vpop.f32.mrb[0].mxu0
      %v679 = vadd.f32 0.0, %v678
      %v680 = vpop.f32.mrb[0].mxu0
      %681 = vmatprep.mubr.f32.mxu0 0.0
      %682 = vmatmul.mubr.f32.gmra.mrb[0].mxu0 %v525
      %v683 = vpop.f32.mrb[0].mxu0
      %v684 = vadd.f32 0.0, %v683
      %v685 = vpop.f32.mrb[0].mxu0
      %686 = vmatprep.mubr.f32.mxu0 0.0
      %687 = vmatmul.mubr.f32.gmra.mrb[0].mxu0 %v528
      %v688 = vpop.f32.mrb[0].mxu0
      %v689 = vadd.f32 0.0, %v688
      %v690 = vpop.f32.mrb[0].mxu0
      %691 = vmatprep.mubr.f32.mxu0 0.0
      %692 = vmatmul.mubr.f32.gmra.mrb[0].mxu0 %v531
      %v693 = vpop.f32.mrb[0].mxu0
      %v694 = vadd.f32 0.0, %v693
      %v695 = vpop.f32.mrb[0].mxu0
      %696 = vmatprep.mubr.f32.mxu0 0.0
      %697 = vmatmul.mubr.f32.gmra.mrb[0].mxu0 %v534
      %v698 = vpop.f32.mrb[0].mxu0
      %v699 = vadd.f32 0.0, %v698
      %v700 = vpop.f32.mrb[0].mxu0
      %701 = vmatprep.mubr.f32.mxu0 0.0
      %702 = vmatmul.mubr.f32.gmra.mrb[0].mxu0 %v537
      %v703 = vpop.f32.mrb[0].mxu0
      %v704 = vadd.f32 0.0, %v703
      %v705 = vpop.f32.mrb[0].mxu0
      %706 = vmatprep.mubr.f32.mxu0 0.0
      %707 = vmatmul.mubr.f32.gmra.mrb[0].mxu0 %v540
      %v708 = vpop.f32.mrb[0].mxu0
      %v709 = vadd.f32 0.0, %v708
      %v710 = vpop.f32.mrb[0].mxu0
      %711 = vmatprep.mubr.f32.mxu0 0.0
      %712 = vmatmul.mubr.f32.gmra.mrb[0].mxu0 %v543
      %v713 = vpop.f32.mrb[0].mxu0
      %v714 = vadd.f32 0.0, %v713
      %v715 = vpop.f32.mrb[0].mxu0
      %716 = vmatprep.mubr.f32.mxu0 0.0
      %717 = vmatmul.mubr.f32.gmra.mrb[0].mxu0 %v546
      %v718 = vpop.f32.mrb[0].mxu0
      %v719 = vadd.f32 0.0, %v718
      %v720 = vpop.f32.mrb[0].mxu0
      %721 = vmatprep.mubr.f32.mxu0 0.0
      %722 = vmatmul.mubr.f32.gmra.mrb[0].mxu0 %v549
      %v723 = vpop.f32.mrb[0].mxu0
      %v724 = vadd.f32 0.0, %v723
      %v725 = vpop.f32.mrb[0].mxu0
      %726 = vmatprep.mubr.f32.mxu0 0.0
      %727 = vmatmul.mubr.f32.gmra.mrb[0].mxu0 %v552
      %v728 = vpop.f32.mrb[0].mxu0
      %v729 = vadd.f32 0.0, %v728
      %v730 = vpop.f32.mrb[0].mxu0
      %731 = vmatprep.mubr.f32.mxu0 0.0
      %732 = vmatmul.mubr.f32.gmra.mrb[0].mxu0 %v555
      %v733 = vpop.f32.mrb[0].mxu0
      %v734 = vadd.f32 0.0, %v733
      %v735 = vpop.f32.mrb[0].mxu0
      %736 = vmatprep.mubr.f32.mxu0 0.0
      %737 = vmatmul.mubr.f32.gmra.mrb[0].mxu0 %v558
      %v738 = vpop.f32.mrb[0].mxu0
      %v739 = vadd.f32 0.0, %v738
      %v740 = vpop.f32.mrb[0].mxu0
      %741 = vmatprep.mubr.f32.mxu0 0.0
      %742 = vmatmul.mubr.f32.gmra.mrb[0].mxu0 %v561
      %v743 = vpop.f32.mrb[0].mxu0
      %v744 = vadd.f32 0.0, %v743
      %v745 = vpop.f32.mrb[0].mxu0
      %746 = vmatprep.mubr.f32.mxu0 0.0
      %747 = vmatmul.mubr.f32.gmra.mrb[0].mxu0 %v564
      %v748 = vpop.f32.mrb[0].mxu0
      %v749 = vadd.f32 0.0, %v748
      %v750 = vpop.f32.mrb[0].mxu0
      %751 = vmatprep.mubr.f32.mxu0 0.0
      %752 = vmatmul.mubr.f32.gmra.mrb[0].mxu0 %v567
      %v753 = vpop.f32.mrb[0].mxu0
      %v754 = vadd.f32 0.0, %v753
      %v755 = vpop.f32.mrb[0].mxu0
      %756 = vmatprep.mubr.f32.mxu0 0.0
      %757 = vmatmul.mubr.f32.gmra.mrb[0].mxu0 %v570
      %v758 = vpop.f32.mrb[0].mxu0
      %v759 = vadd.f32 0.0, %v758
      %v760 = vpop.f32.mrb[0].mxu0
      %761 = vdwg.mxu0
      %v762 = vmax.f32 %v348, %v639
      %v763 = vmax.f32 %v353, %v644
      %v764 = vmax.f32 %v358, %v649
      %v765 = vmax.f32 %v363, %v654
      %v766 = vmax.f32 %v368, %v659
      %v767 = vmax.f32 %v373, %v664
      %v768 = vmax.f32 %v378, %v669
      %v769 = vmax.f32 %v383, %v674
      %v770 = vmax.f32 %v388, %v679
      %v771 = vmax.f32 %v393, %v684
      %v772 = vmax.f32 %v398, %v689
      %v773 = vmax.f32 %v403, %v694
      %v774 = vmax.f32 %v408, %v699
      %v775 = vmax.f32 %v413, %v704
      %v776 = vmax.f32 %v418, %v709
      %v777 = vmax.f32 %v423, %v714
      %v778 = vmax.f32 %v428, %v719
      %v779 = vmax.f32 %v433, %v724
      %v780 = vmax.f32 %v438, %v729
      %v781 = vmax.f32 %v443, %v734
      %v782 = vmax.f32 %v448, %v739
      %v783 = vmax.f32 %v453, %v744
      %v784 = vmax.f32 %v458, %v749
      %v785 = vmax.f32 %v463, %v754
      %v786 = vmax.f32 %v468, %v759
      %s787 = scalar_lea.vmem %s165, 400
      %v788 = vld [vmem:[%s787] sm:$0xff]
      %v789 = vld [vmem:[%s787 + $0x8] sm:$0xff]
      %v790 = vld [vmem:[%s787 + $0x10] sm:$0xff]
      %v791 = vld [vmem:[%s787 + $0x18] sm:$0xff]
      %v792 = vld [vmem:[%s787 + $0x20] sm:$0xff]
      %v793 = vld [vmem:[%s787 + $0x28] sm:$0xff]
      %v794 = vld [vmem:[%s787 + $0x30] sm:$0xff]
      %v795 = vld [vmem:[%s787 + $0x38] sm:$0xff]
      %v796 = vld [vmem:[%s787 + $0x40] sm:$0xff]
      %v797 = vld [vmem:[%s787 + $0x48] sm:$0xff]
      %v798 = vld [vmem:[%s787 + $0x50] sm:$0xff]
      %v799 = vld [vmem:[%s787 + $0x58] sm:$0xff]
      %v800 = vld [vmem:[%s787 + $0x60] sm:$0xff]
      %v801 = vld [vmem:[%s787 + $0x68] sm:$0xff]
      %v802 = vld [vmem:[%s787 + $0x70] sm:$0xff]
      %v803 = vld [vmem:[%s787 + $0x78] sm:$0xff]
      %v804 = vld [vmem:[%s787 + $0x80] sm:$0xff]
      %v805 = vld [vmem:[%s787 + $0x88] sm:$0xff]
      %v806 = vld [vmem:[%s787 + $0x90] sm:$0xff]
      %v807 = vld [vmem:[%s787 + $0x98] sm:$0xff]
      %v808 = vld [vmem:[%s787 + $0xa0] sm:$0xff]
      %v809 = vld [vmem:[%s787 + $0xa8] sm:$0xff]
      %v810 = vld [vmem:[%s787 + $0xb0] sm:$0xff]
      %v811 = vld [vmem:[%s787 + $0xb8] sm:$0xff]
      %v812 = vld [vmem:[%s787 + $0xc0] sm:$0xf]
      %v814 = vsel %vm201, %v788, 0
      %v817 = vsel %vm201, %v789, 0
      %v820 = vsel %vm201, %v790, 0
      %v823 = vsel %vm201, %v791, 0
      %v826 = vsel %vm201, %v792, 0
      %v829 = vsel %vm201, %v793, 0
      %v832 = vsel %vm201, %v794, 0
      %v835 = vsel %vm201, %v795, 0
      %v838 = vsel %vm201, %v796, 0
      %v841 = vsel %vm201, %v797, 0
      %v844 = vsel %vm201, %v798, 0
      %v847 = vsel %vm201, %v799, 0
      %v850 = vsel %vm201, %v800, 0
      %v853 = vsel %vm201, %v801, 0
      %v856 = vsel %vm201, %v802, 0
      %v859 = vsel %vm201, %v803, 0
      %v862 = vsel %vm201, %v804, 0
      %v865 = vsel %vm201, %v805, 0
      %v868 = vsel %vm201, %v806, 0
      %v871 = vsel %vm201, %v807, 0
      %v874 = vsel %vm201, %v808, 0
      %v877 = vsel %vm201, %v809, 0
      %v880 = vsel %vm201, %v810, 0
      %v883 = vsel %vm201, %v811, 0
      %v886 = vsel %vm201, %v812, 0
      %888 = vmatprep.subr.mxu0 0.0
      %889 = vmatpush1.msra.mxu0 %v171
      %890 = vmatprep.subr.mxu0 0.0
      %891 = vmatpush1.msra.mxu0 %v172
      %892 = vmatprep.subr.mxu0 0.0
      %893 = vmatpush1.msra.mxu0 %v173
      %894 = vmatprep.subr.mxu0 0.0
      %895 = vmatpush1.msra.mxu0 %v279
      %896 = vmatprep.subr.mxu0 0.0
      %897 = vmatpush1.msra.mxu0 0.0
      %898 = vmatprep.subr.mxu0 0.0
      %899 = vmatpush1.msra.mxu0 0.0
      %900 = vmatprep.subr.mxu0 0.0
      %901 = vmatpush1.msra.mxu0 0.0
      %902 = vmatprep.subr.mxu0 0.0
      %903 = vmatpush1.msra.mxu0 0.0
      %904 = vmatprep.subr.mxu0 0.0
      %905 = vmatpush1.msra.mxu0 0.0
      %906 = vmatprep.subr.mxu0 0.0
      %907 = vmatpush1.msra.mxu0 0.0
      %908 = vmatprep.subr.mxu0 0.0
      %909 = vmatpush1.msra.mxu0 0.0
      %910 = vmatprep.subr.mxu0 0.0
      %911 = vmatpush1.msra.mxu0 0.0
      %912 = vmatprep.subr.mxu0 0.0
      %913 = vmatpush1.msra.mxu0 0.0
      %914 = vmatprep.subr.mxu0 0.0
      %915 = vmatpush1.msra.mxu0 0.0
      %916 = vmatprep.subr.mxu0 0.0
      %917 = vmatpush1.msra.mxu0 0.0
      %918 = vmatprep.subr.mxu0 0.0
      %919 = vmatpush1.msra.mxu0 0.0
      %920 = vmatprep.subr.mxu0 0.0
      %921 = vmatpush1.msra.mxu0 0.0
      %922 = vmatprep.subr.mxu0 0.0
      %923 = vmatpush1.msra.mxu0 0.0
      %924 = vmatprep.subr.mxu0 0.0
      %925 = vmatpush1.msra.mxu0 0.0
      %926 = vmatprep.subr.mxu0 0.0
      %927 = vmatpush1.msra.mxu0 0.0
      %928 = vmatprep.subr.mxu0 0.0
      %929 = vmatpush1.msra.mxu0 0.0
      %930 = vmatprep.subr.mxu0 0.0
      %931 = vmatpush1.msra.mxu0 0.0
      %932 = vmatprep.subr.mxu0 0.0
      %933 = vmatpush1.msra.mxu0 0.0
      %934 = vmatprep.subr.mxu0 0.0
      %935 = vmatpush1.msra.mxu0 0.0
      %936 = vmatprep.subr.mxu0 0.0
      %937 = vmatpush1.msra.mxu0 0.0
      %938 = vmatprep.subr.mxu0 0.0
      %939 = vmatpush1.msra.mxu0 0.0
      %940 = vmatprep.subr.mxu0 0.0
      %941 = vmatpush1.msra.mxu0 0.0
      %942 = vmatprep.subr.mxu0 0.0
      %943 = vmatpush1.msra.mxu0 0.0
      %944 = vmatprep.subr.mxu0 0.0
      %945 = vmatpush1.msra.mxu0 0.0
      %946 = vmatprep.subr.mxu0 0.0
      %947 = vmatpush1.msra.mxu0 0.0
      %948 = vmatprep.subr.mxu0 0.0
      %949 = vmatpush1.msra.mxu0 0.0
      %950 = vmatprep.subr.mxu0 0.0
      %951 = vmatpush1.msra.mxu0 0.0
      %952 = vmatprep.mubr.f32.mxu0 0.0
      %953 = vmatmul.mubr.f32.gmra.mrb[0].mxu0 %v814
      %v954 = vpop.f32.mrb[0].mxu0
      %v955 = vadd.f32 0.0, %v954
      %v956 = vpop.f32.mrb[0].mxu0
      %957 = vmatprep.mubr.f32.mxu0 0.0
      %958 = vmatmul.mubr.f32.gmra.mrb[0].mxu0 %v817
      %v959 = vpop.f32.mrb[0].mxu0
      %v960 = vadd.f32 0.0, %v959
      %v961 = vpop.f32.mrb[0].mxu0
      %962 = vmatprep.mubr.f32.mxu0 0.0
      %963 = vmatmul.mubr.f32.gmra.mrb[0].mxu0 %v820
      %v964 = vpop.f32.mrb[0].mxu0
      %v965 = vadd.f32 0.0, %v964
      %v966 = vpop.f32.mrb[0].mxu0
      %967 = vmatprep.mubr.f32.mxu0 0.0
      %968 = vmatmul.mubr.f32.gmra.mrb[0].mxu0 %v823
      %v969 = vpop.f32.mrb[0].mxu0
      %v970 = vadd.f32 0.0, %v969
      %v971 = vpop.f32.mrb[0].mxu0
      %972 = vmatprep.mubr.f32.mxu0 0.0
      %973 = vmatmul.mubr.f32.gmra.mrb[0].mxu0 %v826
      %v974 = vpop.f32.mrb[0].mxu0
      %v975 = vadd.f32 0.0, %v974
      %v976 = vpop.f32.mrb[0].mxu0
      %977 = vmatprep.mubr.f32.mxu0 0.0
      %978 = vmatmul.mubr.f32.gmra.mrb[0].mxu0 %v829
      %v979 = vpop.f32.mrb[0].mxu0
      %v980 = vadd.f32 0.0, %v979
      %v981 = vpop.f32.mrb[0].mxu0
      %982 = vmatprep.mubr.f32.mxu0 0.0
      %983 = vmatmul.mubr.f32.gmra.mrb[0].mxu0 %v832
      %v984 = vpop.f32.mrb[0].mxu0
      %v985 = vadd.f32 0.0, %v984
      %v986 = vpop.f32.mrb[0].mxu0
      %987 = vmatprep.mubr.f32.mxu0 0.0
      %988 = vmatmul.mubr.f32.gmra.mrb[0].mxu0 %v835
      %v989 = vpop.f32.mrb[0].mxu0
      %v990 = vadd.f32 0.0, %v989
      %v991 = vpop.f32.mrb[0].mxu0
      %992 = vmatprep.mubr.f32.mxu0 0.0
      %993 = vmatmul.mubr.f32.gmra.mrb[0].mxu0 %v838
      %v994 = vpop.f32.mrb[0].mxu0
      %v995 = vadd.f32 0.0, %v994
      %v996 = vpop.f32.mrb[0].mxu0
      %997 = vmatprep.mubr.f32.mxu0 0.0
      %998 = vmatmul.mubr.f32.gmra.mrb[0].mxu0 %v841
      %v999 = vpop.f32.mrb[0].mxu0
      %v1000 = vadd.f32 0.0, %v999
      %v1001 = vpop.f32.mrb[0].mxu0
      %1002 = vmatprep.mubr.f32.mxu0 0.0
      %1003 = vmatmul.mubr.f32.gmra.mrb[0].mxu0 %v844
      %v1004 = vpop.f32.mrb[0].mxu0
      %v1005 = vadd.f32 0.0, %v1004
      %v1006 = vpop.f32.mrb[0].mxu0
      %1007 = vmatprep.mubr.f32.mxu0 0.0
      %1008 = vmatmul.mubr.f32.gmra.mrb[0].mxu0 %v847
      %v1009 = vpop.f32.mrb[0].mxu0
      %v1010 = vadd.f32 0.0, %v1009
      %v1011 = vpop.f32.mrb[0].mxu0
      %1012 = vmatprep.mubr.f32.mxu0 0.0
      %1013 = vmatmul.mubr.f32.gmra.mrb[0].mxu0 %v850
      %v1014 = vpop.f32.mrb[0].mxu0
      %v1015 = vadd.f32 0.0, %v1014
      %v1016 = vpop.f32.mrb[0].mxu0
      %1017 = vmatprep.mubr.f32.mxu0 0.0
      %1018 = vmatmul.mubr.f32.gmra.mrb[0].mxu0 %v853
      %v1019 = vpop.f32.mrb[0].mxu0
      %v1020 = vadd.f32 0.0, %v1019
      %v1021 = vpop.f32.mrb[0].mxu0
      %1022 = vmatprep.mubr.f32.mxu0 0.0
      %1023 = vmatmul.mubr.f32.gmra.mrb[0].mxu0 %v856
      %v1024 = vpop.f32.mrb[0].mxu0
      %v1025 = vadd.f32 0.0, %v1024
      %v1026 = vpop.f32.mrb[0].mxu0
      %1027 = vmatprep.mubr.f32.mxu0 0.0
      %1028 = vmatmul.mubr.f32.gmra.mrb[0].mxu0 %v859
      %v1029 = vpop.f32.mrb[0].mxu0
      %v1030 = vadd.f32 0.0, %v1029
      %v1031 = vpop.f32.mrb[0].mxu0
      %1032 = vmatprep.mubr.f32.mxu0 0.0
      %1033 = vmatmul.mubr.f32.gmra.mrb[0].mxu0 %v862
      %v1034 = vpop.f32.mrb[0].mxu0
      %v1035 = vadd.f32 0.0, %v1034
      %v1036 = vpop.f32.mrb[0].mxu0
      %1037 = vmatprep.mubr.f32.mxu0 0.0
      %1038 = vmatmul.mubr.f32.gmra.mrb[0].mxu0 %v865
      %v1039 = vpop.f32.mrb[0].mxu0
      %v1040 = vadd.f32 0.0, %v1039
      %v1041 = vpop.f32.mrb[0].mxu0
      %1042 = vmatprep.mubr.f32.mxu0 0.0
      %1043 = vmatmul.mubr.f32.gmra.mrb[0].mxu0 %v868
      %v1044 = vpop.f32.mrb[0].mxu0
      %v1045 = vadd.f32 0.0, %v1044
      %v1046 = vpop.f32.mrb[0].mxu0
      %1047 = vmatprep.mubr.f32.mxu0 0.0
      %1048 = vmatmul.mubr.f32.gmra.mrb[0].mxu0 %v871
      %v1049 = vpop.f32.mrb[0].mxu0
      %v1050 = vadd.f32 0.0, %v1049
      %v1051 = vpop.f32.mrb[0].mxu0
      %1052 = vmatprep.mubr.f32.mxu0 0.0
      %1053 = vmatmul.mubr.f32.gmra.mrb[0].mxu0 %v874
      %v1054 = vpop.f32.mrb[0].mxu0
      %v1055 = vadd.f32 0.0, %v1054
      %v1056 = vpop.f32.mrb[0].mxu0
      %1057 = vmatprep.mubr.f32.mxu0 0.0
      %1058 = vmatmul.mubr.f32.gmra.mrb[0].mxu0 %v877
      %v1059 = vpop.f32.mrb[0].mxu0
      %v1060 = vadd.f32 0.0, %v1059
      %v1061 = vpop.f32.mrb[0].mxu0
      %1062 = vmatprep.mubr.f32.mxu0 0.0
      %1063 = vmatmul.mubr.f32.gmra.mrb[0].mxu0 %v880
      %v1064 = vpop.f32.mrb[0].mxu0
      %v1065 = vadd.f32 0.0, %v1064
      %v1066 = vpop.f32.mrb[0].mxu0
      %1067 = vmatprep.mubr.f32.mxu0 0.0
      %1068 = vmatmul.mubr.f32.gmra.mrb[0].mxu0 %v883
      %v1069 = vpop.f32.mrb[0].mxu0
      %v1070 = vadd.f32 0.0, %v1069
      %v1071 = vpop.f32.mrb[0].mxu0
      %1072 = vmatprep.mubr.f32.mxu0 0.0
      %1073 = vmatmul.mubr.f32.gmra.mrb[0].mxu0 %v886
      %v1074 = vpop.f32.mrb[0].mxu0
      %v1075 = vadd.f32 0.0, %v1074
      %v1076 = vpop.f32.mrb[0].mxu0
      %1077 = vdwg.mxu0
      %v1078 = vmax.f32 %v762, %v955
      %v1079 = vmax.f32 %v763, %v960
      %v1080 = vmax.f32 %v764, %v965
      %v1081 = vmax.f32 %v765, %v970
      %v1082 = vmax.f32 %v766, %v975
      %v1083 = vmax.f32 %v767, %v980
      %v1084 = vmax.f32 %v768, %v985
      %v1085 = vmax.f32 %v769, %v990
      %v1086 = vmax.f32 %v770, %v995
      %v1087 = vmax.f32 %v771, %v1000
      %v1088 = vmax.f32 %v772, %v1005
      %v1089 = vmax.f32 %v773, %v1010
      %v1090 = vmax.f32 %v774, %v1015
      %v1091 = vmax.f32 %v775, %v1020
      %v1092 = vmax.f32 %v776, %v1025
      %v1093 = vmax.f32 %v777, %v1030
      %v1094 = vmax.f32 %v778, %v1035
      %v1095 = vmax.f32 %v779, %v1040
      %v1096 = vmax.f32 %v780, %v1045
      %v1097 = vmax.f32 %v781, %v1050
      %v1098 = vmax.f32 %v782, %v1055
      %v1099 = vmax.f32 %v783, %v1060
      %v1100 = vmax.f32 %v784, %v1065
      %v1101 = vmax.f32 %v785, %v1070
      %v1102 = vmax.f32 %v786, %v1075
      %s1103 = scalar_lea.vmem %s165, 600
      %v1104 = vld [vmem:[%s1103] sm:$0xff]
      %v1105 = vld [vmem:[%s1103 + $0x8] sm:$0xff]
      %v1106 = vld [vmem:[%s1103 + $0x10] sm:$0xff]
      %v1107 = vld [vmem:[%s1103 + $0x18] sm:$0xff]
      %v1108 = vld [vmem:[%s1103 + $0x20] sm:$0xff]
      %v1109 = vld [vmem:[%s1103 + $0x28] sm:$0xff]
      %v1110 = vld [vmem:[%s1103 + $0x30] sm:$0xff]
      %v1111 = vld [vmem:[%s1103 + $0x38] sm:$0xff]
      %v1112 = vld [vmem:[%s1103 + $0x40] sm:$0xff]
      %v1113 = vld [vmem:[%s1103 + $0x48] sm:$0xff]
      %v1114 = vld [vmem:[%s1103 + $0x50] sm:$0xff]
      %v1115 = vld [vmem:[%s1103 + $0x58] sm:$0xff]
      %v1116 = vld [vmem:[%s1103 + $0x60] sm:$0xff]
      %v1117 = vld [vmem:[%s1103 + $0x68] sm:$0xff]
      %v1118 = vld [vmem:[%s1103 + $0x70] sm:$0xff]
      %v1119 = vld [vmem:[%s1103 + $0x78] sm:$0xff]
      %v1120 = vld [vmem:[%s1103 + $0x80] sm:$0xff]
      %v1121 = vld [vmem:[%s1103 + $0x88] sm:$0xff]
      %v1122 = vld [vmem:[%s1103 + $0x90] sm:$0xff]
      %v1123 = vld [vmem:[%s1103 + $0x98] sm:$0xff]
      %v1124 = vld [vmem:[%s1103 + $0xa0] sm:$0xff]
      %v1125 = vld [vmem:[%s1103 + $0xa8] sm:$0xff]
      %v1126 = vld [vmem:[%s1103 + $0xb0] sm:$0xff]
      %v1127 = vld [vmem:[%s1103 + $0xb8] sm:$0xff]
      %v1128 = vld [vmem:[%s1103 + $0xc0] sm:$0xf]
      %v1130 = vsel %vm201, %v1104, 0
      %v1133 = vsel %vm201, %v1105, 0
      %v1136 = vsel %vm201, %v1106, 0
      %v1139 = vsel %vm201, %v1107, 0
      %v1142 = vsel %vm201, %v1108, 0
      %v1145 = vsel %vm201, %v1109, 0
      %v1148 = vsel %vm201, %v1110, 0
      %v1151 = vsel %vm201, %v1111, 0
      %v1154 = vsel %vm201, %v1112, 0
      %v1157 = vsel %vm201, %v1113, 0
      %v1160 = vsel %vm201, %v1114, 0
      %v1163 = vsel %vm201, %v1115, 0
      %v1166 = vsel %vm201, %v1116, 0
      %v1169 = vsel %vm201, %v1117, 0
      %v1172 = vsel %vm201, %v1118, 0
      %v1175 = vsel %vm201, %v1119, 0
      %v1178 = vsel %vm201, %v1120, 0
      %v1181 = vsel %vm201, %v1121, 0
      %v1184 = vsel %vm201, %v1122, 0
      %v1187 = vsel %vm201, %v1123, 0
      %v1190 = vsel %vm201, %v1124, 0
      %v1193 = vsel %vm201, %v1125, 0
      %v1196 = vsel %vm201, %v1126, 0
      %v1199 = vsel %vm201, %v1127, 0
      %v1202 = vsel %vm201, %v1128, 0
      %1204 = vmatprep.subr.mxu0 0.0
      %1205 = vmatpush1.msra.mxu0 %v171
      %1206 = vmatprep.subr.mxu0 0.0
      %1207 = vmatpush1.msra.mxu0 %v172
      %1208 = vmatprep.subr.mxu0 0.0
      %1209 = vmatpush1.msra.mxu0 %v173
      %1210 = vmatprep.subr.mxu0 0.0
      %1211 = vmatpush1.msra.mxu0 %v279
      %1212 = vmatprep.subr.mxu0 0.0
      %1213 = vmatpush1.msra.mxu0 0.0
      %1214 = vmatprep.subr.mxu0 0.0
      %1215 = vmatpush1.msra.mxu0 0.0
      %1216 = vmatprep.subr.mxu0 0.0
      %1217 = vmatpush1.msra.mxu0 0.0
      %1218 = vmatprep.subr.mxu0 0.0
      %1219 = vmatpush1.msra.mxu0 0.0
      %1220 = vmatprep.subr.mxu0 0.0
      %1221 = vmatpush1.msra.mxu0 0.0
      %1222 = vmatprep.subr.mxu0 0.0
      %1223 = vmatpush1.msra.mxu0 0.0
      %1224 = vmatprep.subr.mxu0 0.0
      %1225 = vmatpush1.msra.mxu0 0.0
      %1226 = vmatprep.subr.mxu0 0.0
      %1227 = vmatpush1.msra.mxu0 0.0
      %1228 = vmatprep.subr.mxu0 0.0
      %1229 = vmatpush1.msra.mxu0 0.0
      %1230 = vmatprep.subr.mxu0 0.0
      %1231 = vmatpush1.msra.mxu0 0.0
      %1232 = vmatprep.subr.mxu0 0.0
      %1233 = vmatpush1.msra.mxu0 0.0
      %1234 = vmatprep.subr.mxu0 0.0
      %1235 = vmatpush1.msra.mxu0 0.0
      %1236 = vmatprep.subr.mxu0 0.0
      %1237 = vmatpush1.msra.mxu0 0.0
      %1238 = vmatprep.subr.mxu0 0.0
      %1239 = vmatpush1.msra.mxu0 0.0
      %1240 = vmatprep.subr.mxu0 0.0
      %1241 = vmatpush1.msra.mxu0 0.0
      %1242 = vmatprep.subr.mxu0 0.0
      %1243 = vmatpush1.msra.mxu0 0.0
      %1244 = vmatprep.subr.mxu0 0.0
      %1245 = vmatpush1.msra.mxu0 0.0
      %1246 = vmatprep.subr.mxu0 0.0
      %1247 = vmatpush1.msra.mxu0 0.0
      %1248 = vmatprep.subr.mxu0 0.0
      %1249 = vmatpush1.msra.mxu0 0.0
      %1250 = vmatprep.subr.mxu0 0.0
      %1251 = vmatpush1.msra.mxu0 0.0
      %1252 = vmatprep.subr.mxu0 0.0
      %1253 = vmatpush1.msra.mxu0 0.0
      %1254 = vmatprep.subr.mxu0 0.0
      %1255 = vmatpush1.msra.mxu0 0.0
      %1256 = vmatprep.subr.mxu0 0.0
      %1257 = vmatpush1.msra.mxu0 0.0
      %1258 = vmatprep.subr.mxu0 0.0
      %1259 = vmatpush1.msra.mxu0 0.0
      %1260 = vmatprep.subr.mxu0 0.0
      %1261 = vmatpush1.msra.mxu0 0.0
      %1262 = vmatprep.subr.mxu0 0.0
      %1263 = vmatpush1.msra.mxu0 0.0
      %1264 = vmatprep.subr.mxu0 0.0
      %1265 = vmatpush1.msra.mxu0 0.0
      %1266 = vmatprep.subr.mxu0 0.0
      %1267 = vmatpush1.msra.mxu0 0.0
      %1268 = vmatprep.mubr.f32.mxu0 0.0
      %1269 = vmatmul.mubr.f32.gmra.mrb[0].mxu0 %v1130
      %v1270 = vpop.f32.mrb[0].mxu0
      %v1271 = vadd.f32 0.0, %v1270
      %v1272 = vpop.f32.mrb[0].mxu0
      %1273 = vmatprep.mubr.f32.mxu0 0.0
      %1274 = vmatmul.mubr.f32.gmra.mrb[0].mxu0 %v1133
      %v1275 = vpop.f32.mrb[0].mxu0
      %v1276 = vadd.f32 0.0, %v1275
      %v1277 = vpop.f32.mrb[0].mxu0
      %1278 = vmatprep.mubr.f32.mxu0 0.0
      %1279 = vmatmul.mubr.f32.gmra.mrb[0].mxu0 %v1136
      %v1280 = vpop.f32.mrb[0].mxu0
      %v1281 = vadd.f32 0.0, %v1280
      %v1282 = vpop.f32.mrb[0].mxu0
      %1283 = vmatprep.mubr.f32.mxu0 0.0
      %1284 = vmatmul.mubr.f32.gmra.mrb[0].mxu0 %v1139
      %v1285 = vpop.f32.mrb[0].mxu0
      %v1286 = vadd.f32 0.0, %v1285
      %v1287 = vpop.f32.mrb[0].mxu0
      %1288 = vmatprep.mubr.f32.mxu0 0.0
      %1289 = vmatmul.mubr.f32.gmra.mrb[0].mxu0 %v1142
      %v1290 = vpop.f32.mrb[0].mxu0
      %v1291 = vadd.f32 0.0, %v1290
      %v1292 = vpop.f32.mrb[0].mxu0
      %1293 = vmatprep.mubr.f32.mxu0 0.0
      %1294 = vmatmul.mubr.f32.gmra.mrb[0].mxu0 %v1145
      %v1295 = vpop.f32.mrb[0].mxu0
      %v1296 = vadd.f32 0.0, %v1295
      %v1297 = vpop.f32.mrb[0].mxu0
      %1298 = vmatprep.mubr.f32.mxu0 0.0
      %1299 = vmatmul.mubr.f32.gmra.mrb[0].mxu0 %v1148
      %v1300 = vpop.f32.mrb[0].mxu0
      %v1301 = vadd.f32 0.0, %v1300
      %v1302 = vpop.f32.mrb[0].mxu0
      %1303 = vmatprep.mubr.f32.mxu0 0.0
      %1304 = vmatmul.mubr.f32.gmra.mrb[0].mxu0 %v1151
      %v1305 = vpop.f32.mrb[0].mxu0
      %v1306 = vadd.f32 0.0, %v1305
      %v1307 = vpop.f32.mrb[0].mxu0
      %1308 = vmatprep.mubr.f32.mxu0 0.0
      %1309 = vmatmul.mubr.f32.gmra.mrb[0].mxu0 %v1154
      %v1310 = vpop.f32.mrb[0].mxu0
      %v1311 = vadd.f32 0.0, %v1310
      %v1312 = vpop.f32.mrb[0].mxu0
      %1313 = vmatprep.mubr.f32.mxu0 0.0
      %1314 = vmatmul.mubr.f32.gmra.mrb[0].mxu0 %v1157
      %v1315 = vpop.f32.mrb[0].mxu0
      %v1316 = vadd.f32 0.0, %v1315
      %v1317 = vpop.f32.mrb[0].mxu0
      %1318 = vmatprep.mubr.f32.mxu0 0.0
      %1319 = vmatmul.mubr.f32.gmra.mrb[0].mxu0 %v1160
      %v1320 = vpop.f32.mrb[0].mxu0
      %v1321 = vadd.f32 0.0, %v1320
      %v1322 = vpop.f32.mrb[0].mxu0
      %1323 = vmatprep.mubr.f32.mxu0 0.0
      %1324 = vmatmul.mubr.f32.gmra.mrb[0].mxu0 %v1163
      %v1325 = vpop.f32.mrb[0].mxu0
      %v1326 = vadd.f32 0.0, %v1325
      %v1327 = vpop.f32.mrb[0].mxu0
      %1328 = vmatprep.mubr.f32.mxu0 0.0
      %1329 = vmatmul.mubr.f32.gmra.mrb[0].mxu0 %v1166
      %v1330 = vpop.f32.mrb[0].mxu0
      %v1331 = vadd.f32 0.0, %v1330
      %v1332 = vpop.f32.mrb[0].mxu0
      %1333 = vmatprep.mubr.f32.mxu0 0.0
      %1334 = vmatmul.mubr.f32.gmra.mrb[0].mxu0 %v1169
      %v1335 = vpop.f32.mrb[0].mxu0
      %v1336 = vadd.f32 0.0, %v1335
      %v1337 = vpop.f32.mrb[0].mxu0
      %1338 = vmatprep.mubr.f32.mxu0 0.0
      %1339 = vmatmul.mubr.f32.gmra.mrb[0].mxu0 %v1172
      %v1340 = vpop.f32.mrb[0].mxu0
      %v1341 = vadd.f32 0.0, %v1340
      %v1342 = vpop.f32.mrb[0].mxu0
      %1343 = vmatprep.mubr.f32.mxu0 0.0
      %1344 = vmatmul.mubr.f32.gmra.mrb[0].mxu0 %v1175
      %v1345 = vpop.f32.mrb[0].mxu0
      %v1346 = vadd.f32 0.0, %v1345
      %v1347 = vpop.f32.mrb[0].mxu0
      %1348 = vmatprep.mubr.f32.mxu0 0.0
      %1349 = vmatmul.mubr.f32.gmra.mrb[0].mxu0 %v1178
      %v1350 = vpop.f32.mrb[0].mxu0
      %v1351 = vadd.f32 0.0, %v1350
      %v1352 = vpop.f32.mrb[0].mxu0
      %1353 = vmatprep.mubr.f32.mxu0 0.0
      %1354 = vmatmul.mubr.f32.gmra.mrb[0].mxu0 %v1181
      %v1355 = vpop.f32.mrb[0].mxu0
      %v1356 = vadd.f32 0.0, %v1355
      %v1357 = vpop.f32.mrb[0].mxu0
      %1358 = vmatprep.mubr.f32.mxu0 0.0
      %1359 = vmatmul.mubr.f32.gmra.mrb[0].mxu0 %v1184
      %v1360 = vpop.f32.mrb[0].mxu0
      %v1361 = vadd.f32 0.0, %v1360
      %v1362 = vpop.f32.mrb[0].mxu0
      %1363 = vmatprep.mubr.f32.mxu0 0.0
      %1364 = vmatmul.mubr.f32.gmra.mrb[0].mxu0 %v1187
      %v1365 = vpop.f32.mrb[0].mxu0
      %v1366 = vadd.f32 0.0, %v1365
      %v1367 = vpop.f32.mrb[0].mxu0
      %1368 = vmatprep.mubr.f32.mxu0 0.0
      %1369 = vmatmul.mubr.f32.gmra.mrb[0].mxu0 %v1190
      %v1370 = vpop.f32.mrb[0].mxu0
      %v1371 = vadd.f32 0.0, %v1370
      %v1372 = vpop.f32.mrb[0].mxu0
      %1373 = vmatprep.mubr.f32.mxu0 0.0
      %1374 = vmatmul.mubr.f32.gmra.mrb[0].mxu0 %v1193
      %v1375 = vpop.f32.mrb[0].mxu0
      %v1376 = vadd.f32 0.0, %v1375
      %v1377 = vpop.f32.mrb[0].mxu0
      %1378 = vmatprep.mubr.f32.mxu0 0.0
      %1379 = vmatmul.mubr.f32.gmra.mrb[0].mxu0 %v1196
      %v1380 = vpop.f32.mrb[0].mxu0
      %v1381 = vadd.f32 0.0, %v1380
      %v1382 = vpop.f32.mrb[0].mxu0
      %1383 = vmatprep.mubr.f32.mxu0 0.0
      %1384 = vmatmul.mubr.f32.gmra.mrb[0].mxu0 %v1199
      %v1385 = vpop.f32.mrb[0].mxu0
      %v1386 = vadd.f32 0.0, %v1385
      %v1387 = vpop.f32.mrb[0].mxu0
      %1388 = vmatprep.mubr.f32.mxu0 0.0
      %1389 = vmatmul.mubr.f32.gmra.mrb[0].mxu0 %v1202
      %v1390 = vpop.f32.mrb[0].mxu0
      %v1391 = vadd.f32 0.0, %v1390
      %v1392 = vpop.f32.mrb[0].mxu0
      %1393 = vdwg.mxu0
      %v1394 = vmax.f32 %v1078, %v1271
      %v1395 = vmax.f32 %v1079, %v1276
      %v1396 = vmax.f32 %v1080, %v1281
      %v1397 = vmax.f32 %v1081, %v1286
      %v1398 = vmax.f32 %v1082, %v1291
      %v1399 = vmax.f32 %v1083, %v1296
      %v1400 = vmax.f32 %v1084, %v1301
      %v1401 = vmax.f32 %v1085, %v1306
      %v1402 = vmax.f32 %v1086, %v1311
      %v1403 = vmax.f32 %v1087, %v1316
      %v1404 = vmax.f32 %v1088, %v1321
      %v1405 = vmax.f32 %v1089, %v1326
      %v1406 = vmax.f32 %v1090, %v1331
      %v1407 = vmax.f32 %v1091, %v1336
      %v1408 = vmax.f32 %v1092, %v1341
      %v1409 = vmax.f32 %v1093, %v1346
      %v1410 = vmax.f32 %v1094, %v1351
      %v1411 = vmax.f32 %v1095, %v1356
      %v1412 = vmax.f32 %v1096, %v1361
      %v1413 = vmax.f32 %v1097, %v1366
      %v1414 = vmax.f32 %v1098, %v1371
      %v1415 = vmax.f32 %v1099, %v1376
      %v1416 = vmax.f32 %v1100, %v1381
      %v1417 = vmax.f32 %v1101, %v1386
      %v1418 = vmax.f32 %v1102, %v1391
      %v1420 = vlaneseq
      %v1421 = vshrl.u32 %v1420, 7
      %v1422 = vsub.s32 0, %v1421
      %v1423 = vrot.slane %v175, %v1422
      %v1425 = vadd.f32 %v1394, %v1423
      %v1426 = vadd.f32 %v1395, %v1423
      %v1427 = vadd.f32 %v1396, %v1423
      %v1428 = vadd.f32 %v1397, %v1423
      %v1429 = vadd.f32 %v1398, %v1423
      %v1430 = vadd.f32 %v1399, %v1423
      %v1431 = vadd.f32 %v1400, %v1423
      %v1432 = vadd.f32 %v1401, %v1423
      %v1433 = vadd.f32 %v1402, %v1423
      %v1434 = vadd.f32 %v1403, %v1423
      %v1435 = vadd.f32 %v1404, %v1423
      %v1436 = vadd.f32 %v1405, %v1423
      %v1437 = vadd.f32 %v1406, %v1423
      %v1438 = vadd.f32 %v1407, %v1423
      %v1439 = vadd.f32 %v1408, %v1423
      %v1440 = vadd.f32 %v1409, %v1423
      %v1441 = vadd.f32 %v1410, %v1423
      %v1442 = vadd.f32 %v1411, %v1423
      %v1443 = vadd.f32 %v1412, %v1423
      %v1444 = vadd.f32 %v1413, %v1423
      %v1445 = vadd.f32 %v1414, %v1423
      %v1446 = vadd.f32 %v1415, %v1423
      %v1447 = vadd.f32 %v1416, %v1423
      %v1448 = vadd.f32 %v1417, %v1423
      %v1449 = vadd.f32 %v1418, %v1423
      %v1450 = vmax.f32 %v1425, 0.0
      %v1451 = vmax.f32 %v1426, 0.0
      %v1452 = vmax.f32 %v1427, 0.0
      %v1453 = vmax.f32 %v1428, 0.0
      %v1454 = vmax.f32 %v1429, 0.0
      %v1455 = vmax.f32 %v1430, 0.0
      %v1456 = vmax.f32 %v1431, 0.0
      %v1457 = vmax.f32 %v1432, 0.0
      %v1458 = vmax.f32 %v1433, 0.0
      %v1459 = vmax.f32 %v1434, 0.0
      %v1460 = vmax.f32 %v1435, 0.0
      %v1461 = vmax.f32 %v1436, 0.0
      %v1462 = vmax.f32 %v1437, 0.0
      %v1463 = vmax.f32 %v1438, 0.0
      %v1464 = vmax.f32 %v1439, 0.0
      %v1465 = vmax.f32 %v1440, 0.0
      %v1466 = vmax.f32 %v1441, 0.0
      %v1467 = vmax.f32 %v1442, 0.0
      %v1468 = vmax.f32 %v1443, 0.0
      %v1469 = vmax.f32 %v1444, 0.0
      %v1470 = vmax.f32 %v1445, 0.0
      %v1471 = vmax.f32 %v1446, 0.0
      %v1472 = vmax.f32 %v1447, 0.0
      %v1473 = vmax.f32 %v1448, 0.0
      %v1474 = vmax.f32 %v1449, 0.0
      %vm1475 = vcmask 130048
      %1476 = vst.msk [vmem:[%s170] sm:$0xff] %vm1475, %v1450
      %1477 = vst.msk [vmem:[%s170 + $0x8] sm:$0xff] %vm1475, %v1451
      %1478 = vst.msk [vmem:[%s170 + $0x10] sm:$0xff] %vm1475, %v1452
      %1479 = vst.msk [vmem:[%s170 + $0x18] sm:$0xff] %vm1475, %v1453
      %1480 = vst.msk [vmem:[%s170 + $0x20] sm:$0xff] %vm1475, %v1454
      %1481 = vst.msk [vmem:[%s170 + $0x28] sm:$0xff] %vm1475, %v1455
      %1482 = vst.msk [vmem:[%s170 + $0x30] sm:$0xff] %vm1475, %v1456
      %1483 = vst.msk [vmem:[%s170 + $0x38] sm:$0xff] %vm1475, %v1457
      %1484 = vst.msk [vmem:[%s170 + $0x40] sm:$0xff] %vm1475, %v1458
      %1485 = vst.msk [vmem:[%s170 + $0x48] sm:$0xff] %vm1475, %v1459
      %1486 = vst.msk [vmem:[%s170 + $0x50] sm:$0xff] %vm1475, %v1460
      %1487 = vst.msk [vmem:[%s170 + $0x58] sm:$0xff] %vm1475, %v1461
      %1488 = vst.msk [vmem:[%s170 + $0x60] sm:$0xff] %vm1475, %v1462
      %1489 = vst.msk [vmem:[%s170 + $0x68] sm:$0xff] %vm1475, %v1463
      %1490 = vst.msk [vmem:[%s170 + $0x70] sm:$0xff] %vm1475, %v1464
      %1491 = vst.msk [vmem:[%s170 + $0x78] sm:$0xff] %vm1475, %v1465
      %1492 = vst.msk [vmem:[%s170 + $0x80] sm:$0xff] %vm1475, %v1466
      %1493 = vst.msk [vmem:[%s170 + $0x88] sm:$0xff] %vm1475, %v1467
      %1494 = vst.msk [vmem:[%s170 + $0x90] sm:$0xff] %vm1475, %v1468
      %1495 = vst.msk [vmem:[%s170 + $0x98] sm:$0xff] %vm1475, %v1469
      %1496 = vst.msk [vmem:[%s170 + $0xa0] sm:$0xff] %vm1475, %v1470
      %1497 = vst.msk [vmem:[%s170 + $0xa8] sm:$0xff] %vm1475, %v1471
      %1498 = vst.msk [vmem:[%s170 + $0xb0] sm:$0xff] %vm1475, %v1472
      %1499 = vst.msk [vmem:[%s170 + $0xb8] sm:$0xff] %vm1475, %v1473
      %vm1500 = vcmask 125952
      %1501 = vst.msk [vmem:[%s170 + $0xc0] sm:$0xf] %vm1500, %v1474
      %p1502 = scmp.lt.s32.totalorder %s14, 1
      %s1503 = scalar_select %p1502, %s14, 1
      %s1504 = smul.addr %s1503, 25
      %s1505 = smul.addr %s1504, 8
      %s1506 = scalar_lea.vmem %s3, %s1505
      // Predicated region
      $region33: #{cnn_forward.3} parent=31 // pred_check
        %p1507 = pneg %p100
      $region34: #{cnn_forward.3} parent=31 // pred_check_branch
        %1509 = sbr.rel (%p1507) target = $region36
      $region35: #{cnn_forward.3} parent=31 // pred_region
        _
      $region36: #{cnn_forward.3} parent=31 // pred_fallthru
        _
    $region32: #{cnn_forward.3} parent=5 // pred_fallthru
      _
    %p1510 = scmp.le.s32.totalorder 2, %s9
    // Predicated region
    $region37: #{cnn_forward.3} parent=5 // pred_check
      %p1511 = pneg %p1510
    $region38: #{cnn_forward.3} parent=5 // pred_check_branch
      %1513 = sbr.rel (%p1511) target = $region40
    $region39: #{cnn_forward.3} parent=5 // pred_region
      %s1514 = ssub.s32 %s9, 2
      // Predicated region
      $region41: #{cnn_forward.3} parent=39 // pred_check
        %p1515 = pneg %p106
      $region42: #{cnn_forward.3} parent=39 // pred_check_branch
        %1517 = sbr.rel (%p1515) target = $region44
      $region43: #{cnn_forward.3} parent=39 // pred_region
        %p1518 = scmp.lt.s32.totalorder %s15, 1
        %s1519 = scalar_select %p1518, %s15, 1
        %s1520 = smul.addr %s1519, 25
        %s1521 = smul.addr %s1520, 8
        %s1522 = scalar_lea.vmem %s3, %s1521
      $region44: #{cnn_forward.3} parent=39 // pred_fallthru
        _
    $region40: #{cnn_forward.3} parent=5 // pred_fallthru
      _
  $region6: #{cnn_forward.3} parent=0 // loop_footer
    %s13 = sadd.s32 1, %s9
  $region7: #{cnn_forward.3} parent=0 // loop_footer_branch
    %8 = sbr.rel target = $region3
  $region8: #{cnn_forward.3} parent=0 // loop_exit
    _

// kernel: cnn_forward.5
$region0: #{cnn_forward.5}
  #allocation0 [shape = 'u32[]', space=smem, size = 0x4, offset = 0x4, fixed_abs, tag = 'smem constant byte address 0x4 - core index']
  #allocation1 [shape = 'u32[144,128]{1,0:T(1,128)}', space=vmem, size = 0x12000, scoped, tag = 'internal scratch']
  %s0 = inlined_call_operand.vmem [shape: f32[2,1568], index: 0, kind: input, shape index: {}]
  %s1 = inlined_call_operand.vmem [shape: f32[1568,128], index: 1, kind: input, shape index: {}]
  %s2 = inlined_call_operand.vmem [shape: f32[1,128], index: 2, kind: input, shape index: {}]
  %s3 = inlined_call_operand.hbm [shape: f32[2,128], index: 3, kind: output, shape index: {}]
  %s4 = sld [smem:[#allocation0]]
  $region22: #{cnn_forward.5} parent=0
    _
  %s6 = ssub.s32 1, %s4
  %s7 = scalar_select 0, %s6, %s4
  $region1: #{cnn_forward.5} parent=0
    #allocation2 [shape = 'u8[1024]{0}', space=vmem, size = 0x400, scoped, tag = 'output window, operand 0, single buffered']
    #allocation3 [shape = 's32[1]{0}', space=sflag, size = 0x4, scoped, tag = 'scoped memory for cnn_forward.5']
    %8 = vsyncpa [#allocation3], 0
    // Predicated region
    $region2: #{cnn_forward.5} parent=1 // pred_check
      _
    $region3: #{cnn_forward.5} parent=1 // pred_check_branch
      %10 = sbr.rel (0) target = $region5
    $region4: #{cnn_forward.5} parent=1 // pred_region
      _
    $region5: #{cnn_forward.5} parent=1 // pred_fallthru
      _
    // Predicated region
    $region6: #{cnn_forward.5} parent=1 // pred_check
      _
    $region7: #{cnn_forward.5} parent=1 // pred_check_branch
      %12 = sbr.rel (0) target = $region9
    $region8: #{cnn_forward.5} parent=1 // pred_region
      _
    $region9: #{cnn_forward.5} parent=1 // pred_fallthru
      _
    // Predicated region
    $region10: #{cnn_forward.5} parent=1 // pred_check
      _
    $region11: #{cnn_forward.5} parent=1 // pred_check_branch
      %14 = sbr.rel (0) target = $region13
    $region12: #{cnn_forward.5} parent=1 // pred_region
      _
    $region13: #{cnn_forward.5} parent=1 // pred_fallthru
      _
    %v15 = vld [vmem:[%s0] sm:$0xff]
    %v16 = vld [vmem:[%s0 + $0x8] sm:$0xff]
    %v17 = vld [vmem:[%s0 + $0x10] sm:$0xff]
    %v18 = vld [vmem:[%s0 + $0x18] sm:$0x3]
    %v19 = vld [vmem:[%s1] sm:$0xff]
    %v20 = vld [vmem:[%s1 + $0x8] sm:$0xff]
    %v21 = vld [vmem:[%s1 + $0x10] sm:$0xff]
    %v22 = vld [vmem:[%s1 + $0x18] sm:$0xff]
    %v23 = vld [vmem:[%s1 + $0x20] sm:$0xff]
    %v24 = vld [vmem:[%s1 + $0x28] sm:$0xff]
    %v25 = vld [vmem:[%s1 + $0x30] sm:$0xff]
    %v26 = vld [vmem:[%s1 + $0x38] sm:$0xff]
    %v27 = vld [vmem:[%s1 + $0x40] sm:$0xff]
    %v28 = vld [vmem:[%s1 + $0x48] sm:$0xff]
    %v29 = vld [vmem:[%s1 + $0x50] sm:$0xff]
    %v30 = vld [vmem:[%s1 + $0x58] sm:$0xff]
    %v31 = vld [vmem:[%s1 + $0x60] sm:$0xff]
    %v32 = vld [vmem:[%s1 + $0x68] sm:$0xff]
    %v33 = vld [vmem:[%s1 + $0x70] sm:$0xff]
    %v34 = vld [vmem:[%s1 + $0x78] sm:$0xff]
    %v35 = vld [vmem:[%s1 + $0x80] sm:$0xff]
    %v36 = vld [vmem:[%s1 + $0x88] sm:$0xff]
    %v37 = vld [vmem:[%s1 + $0x90] sm:$0xff]
    %v38 = vld [vmem:[%s1 + $0x98] sm:$0xff]
    %v39 = vld [vmem:[%s1 + $0xa0] sm:$0xff]
    %v40 = vld [vmem:[%s1 + $0xa8] sm:$0xff]
    %v41 = vld [vmem:[%s1 + $0xb0] sm:$0xff]
    %v42 = vld [vmem:[%s1 + $0xb8] sm:$0xff]
    %v43 = vld [vmem:[%s1 + $0xc0] sm:$0xff]
    %v44 = vld [vmem:[%s1 + $0xc8] sm:$0xff]
    %v45 = vld [vmem:[%s1 + $0xd0] sm:$0xff]
    %v46 = vld [vmem:[%s1 + $0xd8] sm:$0xff]
    %v47 = vld [vmem:[%s1 + $0xe0] sm:$0xff]
    %v48 = vld [vmem:[%s1 + $0xe8] sm:$0xff]
    %v49 = vld [vmem:[%s1 + $0xf0] sm:$0xff]
    %v50 = vld [vmem:[%s1 + $0xf8] sm:$0xff]
    %v51 = vld [vmem:[%s1 + $0x100] sm:$0xff]
    %v52 = vld [vmem:[%s1 + $0x108] sm:$0xff]
    %v53 = vld [vmem:[%s1 + $0x110] sm:$0xff]
    %v54 = vld [vmem:[%s1 + $0x118] sm:$0xff]
    %v55 = vld [vmem:[%s1 + $0x120] sm:$0xff]
    %v56 = vld [vmem:[%s1 + $0x128] sm:$0xff]
    %v57 = vld [vmem:[%s1 + $0x130] sm:$0xff]
    %v58 = vld [vmem:[%s1 + $0x138] sm:$0xff]
    %v59 = vld [vmem:[%s1 + $0x140] sm:$0xff]
    %v60 = vld [vmem:[%s1 + $0x148] sm:$0xff]
    %v61 = vld [vmem:[%s1 + $0x150] sm:$0xff]
    %v62 = vld [vmem:[%s1 + $0x158] sm:$0xff]
    %v63 = vld [vmem:[%s1 + $0x160] sm:$0xff]
    %v64 = vld [vmem:[%s1 + $0x168] sm:$0xff]
    %v65 = vld [vmem:[%s1 + $0x170] sm:$0xff]
    %v66 = vld [vmem:[%s1 + $0x178] sm:$0xff]
    %v67 = vld [vmem:[%s1 + $0x180] sm:$0xff]
    %v68 = vld [vmem:[%s1 + $0x188] sm:$0xff]
    %v69 = vld [vmem:[%s1 + $0x190] sm:$0xff]
    %v70 = vld [vmem:[%s1 + $0x198] sm:$0xff]
    %v71 = vld [vmem:[%s1 + $0x1a0] sm:$0xff]
    %v72 = vld [vmem:[%s1 + $0x1a8] sm:$0xff]
    %v73 = vld [vmem:[%s1 + $0x1b0] sm:$0xff]
    %v74 = vld [vmem:[%s1 + $0x1b8] sm:$0xff]
    %v75 = vld [vmem:[%s1 + $0x1c0] sm:$0xff]
    %v76 = vld [vmem:[%s1 + $0x1c8] sm:$0xff]
    %v77 = vld [vmem:[%s1 + $0x1d0] sm:$0xff]
    %v78 = vld [vmem:[%s1 + $0x1d8] sm:$0xff]
    %v79 = vld [vmem:[%s1 + $0x1e0] sm:$0xff]
    %v80 = vld [vmem:[%s1 + $0x1e8] sm:$0xff]
    %v81 = vld [vmem:[%s1 + $0x1f0] sm:$0xff]
    %v82 = vld [vmem:[%s1 + $0x1f8] sm:$0xff]
    %v83 = vld [vmem:[%s1 + $0x200] sm:$0xff]
    %v84 = vld [vmem:[%s1 + $0x208] sm:$0xff]
    %v85 = vld [vmem:[%s1 + $0x210] sm:$0xff]
    %v86 = vld [vmem:[%s1 + $0x218] sm:$0xff]
    %v87 = vld [vmem:[%s1 + $0x220] sm:$0xff]
    %v88 = vld [vmem:[%s1 + $0x228] sm:$0xff]
    %v89 = vld [vmem:[%s1 + $0x230] sm:$0xff]
    %v90 = vld [vmem:[%s1 + $0x238] sm:$0xff]
    %v91 = vld [vmem:[%s1 + $0x240] sm:$0xff]
    %v92 = vld [vmem:[%s1 + $0x248] sm:$0xff]
    %v93 = vld [vmem:[%s1 + $0x250] sm:$0xff]
    %v94 = vld [vmem:[%s1 + $0x258] sm:$0xff]
    %v95 = vld [vmem:[%s1 + $0x260] sm:$0xff]
    %v96 = vld [vmem:[%s1 + $0x268] sm:$0xff]
    %v97 = vld [vmem:[%s1 + $0x270] sm:$0xff]
    %v98 = vld [vmem:[%s1 + $0x278] sm:$0xff]
    %v99 = vld [vmem:[%s1 + $0x280] sm:$0xff]
    %v100 = vld [vmem:[%s1 + $0x288] sm:$0xff]
    %v101 = vld [vmem:[%s1 + $0x290] sm:$0xff]
    %v102 = vld [vmem:[%s1 + $0x298] sm:$0xff]
    %v103 = vld [vmem:[%s1 + $0x2a0] sm:$0xff]
    %v104 = vld [vmem:[%s1 + $0x2a8] sm:$0xff]
    %v105 = vld [vmem:[%s1 + $0x2b0] sm:$0xff]
    %v106 = vld [vmem:[%s1 + $0x2b8] sm:$0xff]
    %v107 = vld [vmem:[%s1 + $0x2c0] sm:$0xff]
    %v108 = vld [vmem:[%s1 + $0x2c8] sm:$0xff]
    %v109 = vld [vmem:[%s1 + $0x2d0] sm:$0xff]
    %v110 = vld [vmem:[%s1 + $0x2d8] sm:$0xff]
    %v111 = vld [vmem:[%s1 + $0x2e0] sm:$0xff]
    %v112 = vld [vmem:[%s1 + $0x2e8] sm:$0xff]
    %v113 = vld [vmem:[%s1 + $0x2f0] sm:$0xff]
    %v114 = vld [vmem:[%s1 + $0x2f8] sm:$0xff]
    %v115 = vld [vmem:[%s1 + $0x300] sm:$0xff]
    %v116 = vld [vmem:[%s1 + $0x308] sm:$0xff]
    %v117 = vld [vmem:[%s1 + $0x310] sm:$0xff]
    %v118 = vld [vmem:[%s1 + $0x318] sm:$0xff]
    %v119 = vld [vmem:[%s1 + $0x320] sm:$0xff]
    %v120 = vld [vmem:[%s1 + $0x328] sm:$0xff]
    %v121 = vld [vmem:[%s1 + $0x330] sm:$0xff]
    %v122 = vld [vmem:[%s1 + $0x338] sm:$0xff]
    %v123 = vld [vmem:[%s1 + $0x340] sm:$0xff]
    %v124 = vld [vmem:[%s1 + $0x348] sm:$0xff]
    %v125 = vld [vmem:[%s1 + $0x350] sm:$0xff]
    %v126 = vld [vmem:[%s1 + $0x358] sm:$0xff]
    %v127 = vld [vmem:[%s1 + $0x360] sm:$0xff]
    %v128 = vld [vmem:[%s1 + $0x368] sm:$0xff]
    %v129 = vld [vmem:[%s1 + $0x370] sm:$0xff]
    %v130 = vld [vmem:[%s1 + $0x378] sm:$0xff]
    %v131 = vld [vmem:[%s1 + $0x380] sm:$0xff]
    %v132 = vld [vmem:[%s1 + $0x388] sm:$0xff]
    %v133 = vld [vmem:[%s1 + $0x390] sm:$0xff]
    %v134 = vld [vmem:[%s1 + $0x398] sm:$0xff]
    %v135 = vld [vmem:[%s1 + $0x3a0] sm:$0xff]
    %v136 = vld [vmem:[%s1 + $0x3a8] sm:$0xff]
    %v137 = vld [vmem:[%s1 + $0x3b0] sm:$0xff]
    %v138 = vld [vmem:[%s1 + $0x3b8] sm:$0xff]
    %v139 = vld [vmem:[%s1 + $0x3c0] sm:$0xff]
    %v140 = vld [vmem:[%s1 + $0x3c8] sm:$0xff]
    %v141 = vld [vmem:[%s1 + $0x3d0] sm:$0xff]
    %v142 = vld [vmem:[%s1 + $0x3d8] sm:$0xff]
    %v143 = vld [vmem:[%s1 + $0x3e0] sm:$0xff]
    %v144 = vld [vmem:[%s1 + $0x3e8] sm:$0xff]
    %v145 = vld [vmem:[%s1 + $0x3f0] sm:$0xff]
    %v146 = vld [vmem:[%s1 + $0x3f8] sm:$0xff]
    %v147 = vld [vmem:[%s1 + $0x400] sm:$0xff]
    %v148 = vld [vmem:[%s1 + $0x408] sm:$0xff]
    %v149 = vld [vmem:[%s1 + $0x410] sm:$0xff]
    %v150 = vld [vmem:[%s1 + $0x418] sm:$0xff]
    %v151 = vld [vmem:[%s1 + $0x420] sm:$0xff]
    %v152 = vld [vmem:[%s1 + $0x428] sm:$0xff]
    %v153 = vld [vmem:[%s1 + $0x430] sm:$0xff]
    %v154 = vld [vmem:[%s1 + $0x438] sm:$0xff]
    %v155 = vld [vmem:[%s1 + $0x440] sm:$0xff]
    %v156 = vld [vmem:[%s1 + $0x448] sm:$0xff]
    %v157 = vld [vmem:[%s1 + $0x450] sm:$0xff]
    %v158 = vld [vmem:[%s1 + $0x458] sm:$0xff]
    %v159 = vld [vmem:[%s1 + $0x460] sm:$0xff]
    %v160 = vld [vmem:[%s1 + $0x468] sm:$0xff]
    %v161 = vld [vmem:[%s1 + $0x470] sm:$0xff]
    %v162 = vld [vmem:[%s1 + $0x478] sm:$0xff]
    %v163 = vld [vmem:[%s1 + $0x480] sm:$0xff]
    %v164 = vld [vmem:[%s1 + $0x488] sm:$0xff]
    %v165 = vld [vmem:[%s1 + $0x490] sm:$0xff]
    %v166 = vld [vmem:[%s1 + $0x498] sm:$0xff]
    %v167 = vld [vmem:[%s1 + $0x4a0] sm:$0xff]
    %v168 = vld [vmem:[%s1 + $0x4a8] sm:$0xff]
    %v169 = vld [vmem:[%s1 + $0x4b0] sm:$0xff]
    %v170 = vld [vmem:[%s1 + $0x4b8] sm:$0xff]
    %v171 = vld [vmem:[%s1 + $0x4c0] sm:$0xff]
    %v172 = vld [vmem:[%s1 + $0x4c8] sm:$0xff]
    %v173 = vld [vmem:[%s1 + $0x4d0] sm:$0xff]
    %v174 = vld [vmem:[%s1 + $0x4d8] sm:$0xff]
    %v175 = vld [vmem:[%s1 + $0x4e0] sm:$0xff]
    %v176 = vld [vmem:[%s1 + $0x4e8] sm:$0xff]
    %v177 = vld [vmem:[%s1 + $0x4f0] sm:$0xff]
    %v178 = vld [vmem:[%s1 + $0x4f8] sm:$0xff]
    %v179 = vld [vmem:[%s1 + $0x500] sm:$0xff]
    %v180 = vld [vmem:[%s1 + $0x508] sm:$0xff]
    %v181 = vld [vmem:[%s1 + $0x510] sm:$0xff]
    %v182 = vld [vmem:[%s1 + $0x518] sm:$0xff]
    %v183 = vld [vmem:[%s1 + $0x520] sm:$0xff]
    %v184 = vld [vmem:[%s1 + $0x528] sm:$0xff]
    %v185 = vld [vmem:[%s1 + $0x530] sm:$0xff]
    %v186 = vld [vmem:[%s1 + $0x538] sm:$0xff]
    %v187 = vld [vmem:[%s1 + $0x540] sm:$0xff]
    %v188 = vld [vmem:[%s1 + $0x548] sm:$0xff]
    %v189 = vld [vmem:[%s1 + $0x550] sm:$0xff]
    %v190 = vld [vmem:[%s1 + $0x558] sm:$0xff]
    %v191 = vld [vmem:[%s1 + $0x560] sm:$0xff]
    %v192 = vld [vmem:[%s1 + $0x568] sm:$0xff]
    %v193 = vld [vmem:[%s1 + $0x570] sm:$0xff]
    %v194 = vld [vmem:[%s1 + $0x578] sm:$0xff]
    %v195 = vld [vmem:[%s1 + $0x580] sm:$0xff]
    %v196 = vld [vmem:[%s1 + $0x588] sm:$0xff]
    %v197 = vld [vmem:[%s1 + $0x590] sm:$0xff]
    %v198 = vld [vmem:[%s1 + $0x598] sm:$0xff]
    %v199 = vld [vmem:[%s1 + $0x5a0] sm:$0xff]
    %v200 = vld [vmem:[%s1 + $0x5a8] sm:$0xff]
    %v201 = vld [vmem:[%s1 + $0x5b0] sm:$0xff]
    %v202 = vld [vmem:[%s1 + $0x5b8] sm:$0xff]
    %v203 = vld [vmem:[%s1 + $0x5c0] sm:$0xff]
    %v204 = vld [vmem:[%s1 + $0x5c8] sm:$0xff]
    %v205 = vld [vmem:[%s1 + $0x5d0] sm:$0xff]
    %v206 = vld [vmem:[%s1 + $0x5d8] sm:$0xff]
    %v207 = vld [vmem:[%s1 + $0x5e0] sm:$0xff]
    %v208 = vld [vmem:[%s1 + $0x5e8] sm:$0xff]
    %v209 = vld [vmem:[%s1 + $0x5f0] sm:$0xff]
    %v210 = vld [vmem:[%s1 + $0x5f8] sm:$0xff]
    %v211 = vld [vmem:[%s1 + $0x600] sm:$0xff]
    %v212 = vld [vmem:[%s1 + $0x608] sm:$0xff]
    %v213 = vld [vmem:[%s1 + $0x610] sm:$0xff]
    %v214 = vld [vmem:[%s1 + $0x618] sm:$0xff]
    %v215 = vld [vmem:[%s2] sm:$0x1]
    %v217 = vlaneseq
    %v218 = vshrl.u32 %v217, 7
    %v219 = vsub.s32 0, %v218
    %v220 = vrot.slane %v215, %v219
    %v226 = vcombine.high %v15, %v15
    %v228 = vunpack.c.l.s4 1983009808
    %v229 = vunpack.c.0.s8 %v228
    %v230 = vlaneseq
    %v231 = vshrl.u32 %v230, 7
    %v232 = vsub.s32 %v229, %v231
    %v233 = vrot.slane %v15, %v232
    %v235 = vunpack.c.l.s4 1983009808
    %v236 = vunpack.c.0.s8 %v235
    %v237 = vlaneseq
    %v238 = vshrl.u32 %v237, 7
    %v239 = vsub.s32 %v236, %v238
    %v240 = vrot.slane %v226, %v239
    %v241 = vcombine.high %v233, %v233
    %v242 = vcombine.high %v240, %v240
    %v243 = vcombine.high %v16, %v16
    %v245 = vunpack.c.l.s4 1983009808
    %v246 = vunpack.c.0.s8 %v245
    %v247 = vlaneseq
    %v248 = vshrl.u32 %v247, 7
    %v249 = vsub.s32 %v246, %v248
    %v250 = vrot.slane %v16, %v249
    %v252 = vunpack.c.l.s4 1983009808
    %v253 = vunpack.c.0.s8 %v252
    %v254 = vlaneseq
    %v255 = vshrl.u32 %v254, 7
    %v256 = vsub.s32 %v253, %v255
    %v257 = vrot.slane %v243, %v256
    %v258 = vcombine.high %v250, %v250
    %v259 = vcombine.high %v257, %v257
    %v260 = vcombine.high %v17, %v17
    %v262 = vunpack.c.l.s4 1983009808
    %v263 = vunpack.c.0.s8 %v262
    %v264 = vlaneseq
    %v265 = vshrl.u32 %v264, 7
    %v266 = vsub.s32 %v263, %v265
    %v267 = vrot.slane %v17, %v266
    %v269 = vunpack.c.l.s4 1983009808
    %v270 = vunpack.c.0.s8 %v269
    %v271 = vlaneseq
    %v272 = vshrl.u32 %v271, 7
    %v273 = vsub.s32 %v270, %v272
    %v274 = vrot.slane %v260, %v273
    %v275 = vcombine.high %v267, %v267
    %v276 = vcombine.high %v274, %v274
    %v278 = vunpack.c.l.s4 1983009808
    %v279 = vunpack.c.0.s8 %v278
    %v280 = vlaneseq
    %v281 = vshrl.u32 %v280, 7
    %v282 = vsub.s32 %v279, %v281
    %v283 = vrot.slane %v18, %v282
    %vm296 = vcmask 261120
    %v297 = vsel %vm296, %v283, 0
    %299 = vmatprep.subr.mxu0 0.0
    %300 = vmatpush1.msra.mxu0 %v19
    %301 = vmatprep.subr.mxu0 0.0
    %302 = vmatpush1.msra.mxu0 %v20
    %303 = vmatprep.subr.mxu0 0.0
    %304 = vmatpush1.msra.mxu0 %v21
    %305 = vmatprep.subr.mxu0 0.0
    %306 = vmatpush1.msra.mxu0 %v22
    %307 = vmatprep.subr.mxu0 0.0
    %308 = vmatpush1.msra.mxu0 %v23
    %309 = vmatprep.subr.mxu0 0.0
    %310 = vmatpush1.msra.mxu0 %v24
    %311 = vmatprep.subr.mxu0 0.0
    %312 = vmatpush1.msra.mxu0 %v25
    %313 = vmatprep.subr.mxu0 0.0
    %314 = vmatpush1.msra.mxu0 %v26
    %315 = vmatprep.subr.mxu0 0.0
    %316 = vmatpush1.msra.mxu0 %v27
    %317 = vmatprep.subr.mxu0 0.0
    %318 = vmatpush1.msra.mxu0 %v28
    %319 = vmatprep.subr.mxu0 0.0
    %320 = vmatpush1.msra.mxu0 %v29
    %321 = vmatprep.subr.mxu0 0.0
    %322 = vmatpush1.msra.mxu0 %v30
    %323 = vmatprep.subr.mxu0 0.0
    %324 = vmatpush1.msra.mxu0 %v31
    %325 = vmatprep.subr.mxu0 0.0
    %326 = vmatpush1.msra.mxu0 %v32
    %327 = vmatprep.subr.mxu0 0.0
    %328 = vmatpush1.msra.mxu0 %v33
    %329 = vmatprep.subr.mxu0 0.0
    %330 = vmatpush1.msra.mxu0 %v34
    %331 = vmatprep.subr.mxu0 0.0
    %332 = vmatpush1.msra.mxu0 %v35
    %333 = vmatprep.subr.mxu0 0.0
    %334 = vmatpush1.msra.mxu0 %v36
    %335 = vmatprep.subr.mxu0 0.0
    %336 = vmatpush1.msra.mxu0 %v37
    %337 = vmatprep.subr.mxu0 0.0
    %338 = vmatpush1.msra.mxu0 %v38
    %339 = vmatprep.subr.mxu0 0.0
    %340 = vmatpush1.msra.mxu0 %v39
    %341 = vmatprep.subr.mxu0 0.0
    %342 = vmatpush1.msra.mxu0 %v40
    %343 = vmatprep.subr.mxu0 0.0
    %344 = vmatpush1.msra.mxu0 %v41
    %345 = vmatprep.subr.mxu0 0.0
    %346 = vmatpush1.msra.mxu0 %v42
    %347 = vmatprep.subr.mxu0 0.0
    %348 = vmatpush1.msra.mxu0 %v43
    %349 = vmatprep.subr.mxu0 0.0
    %350 = vmatpush1.msra.mxu0 %v44
    %351 = vmatprep.subr.mxu0 0.0
    %352 = vmatpush1.msra.mxu0 %v45
    %353 = vmatprep.subr.mxu0 0.0
    %354 = vmatpush1.msra.mxu0 %v46
    %355 = vmatprep.subr.mxu0 0.0
    %356 = vmatpush1.msra.mxu0 %v47
    %357 = vmatprep.subr.mxu0 0.0
    %358 = vmatpush1.msra.mxu0 %v48
    %359 = vmatprep.subr.mxu0 0.0
    %360 = vmatpush1.msra.mxu0 %v49
    %361 = vmatprep.subr.mxu0 0.0
    %362 = vmatpush1.msra.mxu0 %v50
    %363 = vmatprep.mubr.f32.mxu0 %v241
    %364 = vmatmul.mubr.f32.gmra.mrb[0].mxu0 %v233
    %v365 = vpop.f32.mrb[0].mxu0
    %v366 = vadd.f32 %v220, %v365
    %v367 = vpop.f32.mrb[0].mxu0
    %368 = vdwg.mxu0
    %369 = vmatprep.subr.mxu0 0.0
    %370 = vmatpush1.msra.mxu0 %v51
    %371 = vmatprep.subr.mxu0 0.0
    %372 = vmatpush1.msra.mxu0 %v52
    %373 = vmatprep.subr.mxu0 0.0
    %374 = vmatpush1.msra.mxu0 %v53
    %375 = vmatprep.subr.mxu0 0.0
    %376 = vmatpush1.msra.mxu0 %v54
    %377 = vmatprep.subr.mxu0 0.0
    %378 = vmatpush1.msra.mxu0 %v55
    %379 = vmatprep.subr.mxu0 0.0
    %380 = vmatpush1.msra.mxu0 %v56
    %381 = vmatprep.subr.mxu0 0.0
    %382 = vmatpush1.msra.mxu0 %v57
    %383 = vmatprep.subr.mxu0 0.0
    %384 = vmatpush1.msra.mxu0 %v58
    %385 = vmatprep.subr.mxu0 0.0
    %386 = vmatpush1.msra.mxu0 %v59
    %387 = vmatprep.subr.mxu0 0.0
    %388 = vmatpush1.msra.mxu0 %v60
    %389 = vmatprep.subr.mxu0 0.0
    %390 = vmatpush1.msra.mxu0 %v61
    %391 = vmatprep.subr.mxu0 0.0
    %392 = vmatpush1.msra.mxu0 %v62
    %393 = vmatprep.subr.mxu0 0.0
    %394 = vmatpush1.msra.mxu0 %v63
    %395 = vmatprep.subr.mxu0 0.0
    %396 = vmatpush1.msra.mxu0 %v64
    %397 = vmatprep.subr.mxu0 0.0
    %398 = vmatpush1.msra.mxu0 %v65
    %399 = vmatprep.subr.mxu0 0.0
    %400 = vmatpush1.msra.mxu0 %v66
    %401 = vmatprep.subr.mxu0 0.0
    %402 = vmatpush1.msra.mxu0 %v67
    %403 = vmatprep.subr.mxu0 0.0
    %404 = vmatpush1.msra.mxu0 %v68
    %405 = vmatprep.subr.mxu0 0.0
    %406 = vmatpush1.msra.mxu0 %v69
    %407 = vmatprep.subr.mxu0 0.0
    %408 = vmatpush1.msra.mxu0 %v70
    %409 = vmatprep.subr.mxu0 0.0
    %410 = vmatpush1.msra.mxu0 %v71
    %411 = vmatprep.subr.mxu0 0.0
    %412 = vmatpush1.msra.mxu0 %v72
    %413 = vmatprep.subr.mxu0 0.0
    %414 = vmatpush1.msra.mxu0 %v73
    %415 = vmatprep.subr.mxu0 0.0
    %416 = vmatpush1.msra.mxu0 %v74
    %417 = vmatprep.subr.mxu0 0.0
    %418 = vmatpush1.msra.mxu0 %v75
    %419 = vmatprep.subr.mxu0 0.0
    %420 = vmatpush1.msra.mxu0 %v76
    %421 = vmatprep.subr.mxu0 0.0
    %422 = vmatpush1.msra.mxu0 %v77
    %423 = vmatprep.subr.mxu0 0.0
    %424 = vmatpush1.msra.mxu0 %v78
    %425 = vmatprep.subr.mxu0 0.0
    %426 = vmatpush1.msra.mxu0 %v79
    %427 = vmatprep.subr.mxu0 0.0
    %428 = vmatpush1.msra.mxu0 %v80
    %429 = vmatprep.subr.mxu0 0.0
    %430 = vmatpush1.msra.mxu0 %v81
    %431 = vmatprep.subr.mxu0 0.0
    %432 = vmatpush1.msra.mxu0 %v82
    %433 = vmatprep.mubr.f32.mxu0 %v242
    %434 = vmatmul.mubr.f32.gmra.mrb[0].mxu0 %v240
    %v435 = vpop.f32.mrb[0].mxu0
    %v436 = vadd.f32 %v366, %v435
    %v437 = vpop.f32.mrb[0].mxu0
    %438 = vdwg.mxu0
    %439 = vmatprep.subr.mxu0 0.0
    %440 = vmatpush1.msra.mxu0 %v83
    %441 = vmatprep.subr.mxu0 0.0
    %442 = vmatpush1.msra.mxu0 %v84
    %443 = vmatprep.subr.mxu0 0.0
    %444 = vmatpush1.msra.mxu0 %v85
    %445 = vmatprep.subr.mxu0 0.0
    %446 = vmatpush1.msra.mxu0 %v86
    %447 = vmatprep.subr.mxu0 0.0
    %448 = vmatpush1.msra.mxu0 %v87
    %449 = vmatprep.subr.mxu0 0.0
    %450 = vmatpush1.msra.mxu0 %v88
    %451 = vmatprep.subr.mxu0 0.0
    %452 = vmatpush1.msra.mxu0 %v89
    %453 = vmatprep.subr.mxu0 0.0
    %454 = vmatpush1.msra.mxu0 %v90
    %455 = vmatprep.subr.mxu0 0.0
    %456 = vmatpush1.msra.mxu0 %v91
    %457 = vmatprep.subr.mxu0 0.0
    %458 = vmatpush1.msra.mxu0 %v92
    %459 = vmatprep.subr.mxu0 0.0
    %460 = vmatpush1.msra.mxu0 %v93
    %461 = vmatprep.subr.mxu0 0.0
    %462 = vmatpush1.msra.mxu0 %v94
    %463 = vmatprep.subr.mxu0 0.0
    %464 = vmatpush1.msra.mxu0 %v95
    %465 = vmatprep.subr.mxu0 0.0
    %466 = vmatpush1.msra.mxu0 %v96
    %467 = vmatprep.subr.mxu0 0.0
    %468 = vmatpush1.msra.mxu0 %v97
    %469 = vmatprep.subr.mxu0 0.0
    %470 = vmatpush1.msra.mxu0 %v98
    %471 = vmatprep.subr.mxu0 0.0
    %472 = vmatpush1.msra.mxu0 %v99
    %473 = vmatprep.subr.mxu0 0.0
    %474 = vmatpush1.msra.mxu0 %v100
    %475 = vmatprep.subr.mxu0 0.0
    %476 = vmatpush1.msra.mxu0 %v101
    %477 = vmatprep.subr.mxu0 0.0
    %478 = vmatpush1.msra.mxu0 %v102
    %479 = vmatprep.subr.mxu0 0.0
    %480 = vmatpush1.msra.mxu0 %v103
    %481 = vmatprep.subr.mxu0 0.0
    %482 = vmatpush1.msra.mxu0 %v104
    %483 = vmatprep.subr.mxu0 0.0
    %484 = vmatpush1.msra.mxu0 %v105
    %485 = vmatprep.subr.mxu0 0.0
    %486 = vmatpush1.msra.mxu0 %v106
    %487 = vmatprep.subr.mxu0 0.0
    %488 = vmatpush1.msra.mxu0 %v107
    %489 = vmatprep.subr.mxu0 0.0
    %490 = vmatpush1.msra.mxu0 %v108
    %491 = vmatprep.subr.mxu0 0.0
    %492 = vmatpush1.msra.mxu0 %v109
    %493 = vmatprep.subr.mxu0 0.0
    %494 = vmatpush1.msra.mxu0 %v110
    %495 = vmatprep.subr.mxu0 0.0
    %496 = vmatpush1.msra.mxu0 %v111
    %497 = vmatprep.subr.mxu0 0.0
    %498 = vmatpush1.msra.mxu0 %v112
    %499 = vmatprep.subr.mxu0 0.0
    %500 = vmatpush1.msra.mxu0 %v113
    %501 = vmatprep.subr.mxu0 0.0
    %502 = vmatpush1.msra.mxu0 %v114
    %503 = vmatprep.mubr.f32.mxu0 %v258
    %504 = vmatmul.mubr.f32.gmra.mrb[0].mxu0 %v250
    %v505 = vpop.f32.mrb[0].mxu0
    %v506 = vadd.f32 %v436, %v505
    %v507 = vpop.f32.mrb[0].mxu0
    %508 = vdwg.mxu0
    %509 = vmatprep.subr.mxu0 0.0
    %510 = vmatpush1.msra.mxu0 %v115
    %511 = vmatprep.subr.mxu0 0.0
    %512 = vmatpush1.msra.mxu0 %v116
    %513 = vmatprep.subr.mxu0 0.0
    %514 = vmatpush1.msra.mxu0 %v117
    %515 = vmatprep.subr.mxu0 0.0
    %516 = vmatpush1.msra.mxu0 %v118
    %517 = vmatprep.subr.mxu0 0.0
    %518 = vmatpush1.msra.mxu0 %v119
    %519 = vmatprep.subr.mxu0 0.0
    %520 = vmatpush1.msra.mxu0 %v120
    %521 = vmatprep.subr.mxu0 0.0
    %522 = vmatpush1.msra.mxu0 %v121
    %523 = vmatprep.subr.mxu0 0.0
    %524 = vmatpush1.msra.mxu0 %v122
    %525 = vmatprep.subr.mxu0 0.0
    %526 = vmatpush1.msra.mxu0 %v123
    %527 = vmatprep.subr.mxu0 0.0
    %528 = vmatpush1.msra.mxu0 %v124
    %529 = vmatprep.subr.mxu0 0.0
    %530 = vmatpush1.msra.mxu0 %v125
    %531 = vmatprep.subr.mxu0 0.0
    %532 = vmatpush1.msra.mxu0 %v126
    %533 = vmatprep.subr.mxu0 0.0
    %534 = vmatpush1.msra.mxu0 %v127
    %535 = vmatprep.subr.mxu0 0.0
    %536 = vmatpush1.msra.mxu0 %v128
    %537 = vmatprep.subr.mxu0 0.0
    %538 = vmatpush1.msra.mxu0 %v129
    %539 = vmatprep.subr.mxu0 0.0
    %540 = vmatpush1.msra.mxu0 %v130
    %541 = vmatprep.subr.mxu0 0.0
    %542 = vmatpush1.msra.mxu0 %v131
    %543 = vmatprep.subr.mxu0 0.0
    %544 = vmatpush1.msra.mxu0 %v132
    %545 = vmatprep.subr.mxu0 0.0
    %546 = vmatpush1.msra.mxu0 %v133
    %547 = vmatprep.subr.mxu0 0.0
    %548 = vmatpush1.msra.mxu0 %v134
    %549 = vmatprep.subr.mxu0 0.0
    %550 = vmatpush1.msra.mxu0 %v135
    %551 = vmatprep.subr.mxu0 0.0
    %552 = vmatpush1.msra.mxu0 %v136
    %553 = vmatprep.subr.mxu0 0.0
    %554 = vmatpush1.msra.mxu0 %v137
    %555 = vmatprep.subr.mxu0 0.0
    %556 = vmatpush1.msra.mxu0 %v138
    %557 = vmatprep.subr.mxu0 0.0
    %558 = vmatpush1.msra.mxu0 %v139
    %559 = vmatprep.subr.mxu0 0.0
    %560 = vmatpush1.msra.mxu0 %v140
    %561 = vmatprep.subr.mxu0 0.0
    %562 = vmatpush1.msra.mxu0 %v141
    %563 = vmatprep.subr.mxu0 0.0
    %564 = vmatpush1.msra.mxu0 %v142
    %565 = vmatprep.subr.mxu0 0.0
    %566 = vmatpush1.msra.mxu0 %v143
    %567 = vmatprep.subr.mxu0 0.0
    %568 = vmatpush1.msra.mxu0 %v144
    %569 = vmatprep.subr.mxu0 0.0
    %570 = vmatpush1.msra.mxu0 %v145
    %571 = vmatprep.subr.mxu0 0.0
    %572 = vmatpush1.msra.mxu0 %v146
    %573 = vmatprep.mubr.f32.mxu0 %v259
    %574 = vmatmul.mubr.f32.gmra.mrb[0].mxu0 %v257
    %v575 = vpop.f32.mrb[0].mxu0
    %v576 = vadd.f32 %v506, %v575
    %v577 = vpop.f32.mrb[0].mxu0
    %578 = vdwg.mxu0
    %579 = vmatprep.subr.mxu0 0.0
    %580 = vmatpush1.msra.mxu0 %v147
    %581 = vmatprep.subr.mxu0 0.0
    %582 = vmatpush1.msra.mxu0 %v148
    %583 = vmatprep.subr.mxu0 0.0
    %584 = vmatpush1.msra.mxu0 %v149
    %585 = vmatprep.subr.mxu0 0.0
    %586 = vmatpush1.msra.mxu0 %v150
    %587 = vmatprep.subr.mxu0 0.0
    %588 = vmatpush1.msra.mxu0 %v151
    %589 = vmatprep.subr.mxu0 0.0
    %590 = vmatpush1.msra.mxu0 %v152
    %591 = vmatprep.subr.mxu0 0.0
    %592 = vmatpush1.msra.mxu0 %v153
    %593 = vmatprep.subr.mxu0 0.0
    %594 = vmatpush1.msra.mxu0 %v154
    %595 = vmatprep.subr.mxu0 0.0
    %596 = vmatpush1.msra.mxu0 %v155
    %597 = vmatprep.subr.mxu0 0.0
    %598 = vmatpush1.msra.mxu0 %v156
    %599 = vmatprep.subr.mxu0 0.0
    %600 = vmatpush1.msra.mxu0 %v157
    %601 = vmatprep.subr.mxu0 0.0
    %602 = vmatpush1.msra.mxu0 %v158
    %603 = vmatprep.subr.mxu0 0.0
    %604 = vmatpush1.msra.mxu0 %v159
    %605 = vmatprep.subr.mxu0 0.0
    %606 = vmatpush1.msra.mxu0 %v160
    %607 = vmatprep.subr.mxu0 0.0
    %608 = vmatpush1.msra.mxu0 %v161
    %609 = vmatprep.subr.mxu0 0.0
    %610 = vmatpush1.msra.mxu0 %v162
    %611 = vmatprep.subr.mxu0 0.0
    %612 = vmatpush1.msra.mxu0 %v163
    %613 = vmatprep.subr.mxu0 0.0
    %614 = vmatpush1.msra.mxu0 %v164
    %615 = vmatprep.subr.mxu0 0.0
    %616 = vmatpush1.msra.mxu0 %v165
    %617 = vmatprep.subr.mxu0 0.0
    %618 = vmatpush1.msra.mxu0 %v166
    %619 = vmatprep.subr.mxu0 0.0
    %620 = vmatpush1.msra.mxu0 %v167
    %621 = vmatprep.subr.mxu0 0.0
    %622 = vmatpush1.msra.mxu0 %v168
    %623 = vmatprep.subr.mxu0 0.0
    %624 = vmatpush1.msra.mxu0 %v169
    %625 = vmatprep.subr.mxu0 0.0
    %626 = vmatpush1.msra.mxu0 %v170
    %627 = vmatprep.subr.mxu0 0.0
    %628 = vmatpush1.msra.mxu0 %v171
    %629 = vmatprep.subr.mxu0 0.0
    %630 = vmatpush1.msra.mxu0 %v172
    %631 = vmatprep.subr.mxu0 0.0
    %632 = vmatpush1.msra.mxu0 %v173
    %633 = vmatprep.subr.mxu0 0.0
    %634 = vmatpush1.msra.mxu0 %v174
    %635 = vmatprep.subr.mxu0 0.0
    %636 = vmatpush1.msra.mxu0 %v175
    %637 = vmatprep.subr.mxu0 0.0
    %638 = vmatpush1.msra.mxu0 %v176
    %639 = vmatprep.subr.mxu0 0.0
    %640 = vmatpush1.msra.mxu0 %v177
    %641 = vmatprep.subr.mxu0 0.0
    %642 = vmatpush1.msra.mxu0 %v178
    %643 = vmatprep.mubr.f32.mxu0 %v275
    %644 = vmatmul.mubr.f32.gmra.mrb[0].mxu0 %v267
    %v645 = vpop.f32.mrb[0].mxu0
    %v646 = vadd.f32 %v576, %v645
    %v647 = vpop.f32.mrb[0].mxu0
    %648 = vdwg.mxu0
    %649 = vmatprep.subr.mxu0 0.0
    %650 = vmatpush1.msra.mxu0 %v179
    %651 = vmatprep.subr.mxu0 0.0
    %652 = vmatpush1.msra.mxu0 %v180
    %653 = vmatprep.subr.mxu0 0.0
    %654 = vmatpush1.msra.mxu0 %v181
    %655 = vmatprep.subr.mxu0 0.0
    %656 = vmatpush1.msra.mxu0 %v182
    %657 = vmatprep.subr.mxu0 0.0
    %658 = vmatpush1.msra.mxu0 %v183
    %659 = vmatprep.subr.mxu0 0.0
    %660 = vmatpush1.msra.mxu0 %v184
    %661 = vmatprep.subr.mxu0 0.0
    %662 = vmatpush1.msra.mxu0 %v185
    %663 = vmatprep.subr.mxu0 0.0
    %664 = vmatpush1.msra.mxu0 %v186
    %665 = vmatprep.subr.mxu0 0.0
    %666 = vmatpush1.msra.mxu0 %v187
    %667 = vmatprep.subr.mxu0 0.0
    %668 = vmatpush1.msra.mxu0 %v188
    %669 = vmatprep.subr.mxu0 0.0
    %670 = vmatpush1.msra.mxu0 %v189
    %671 = vmatprep.subr.mxu0 0.0
    %672 = vmatpush1.msra.mxu0 %v190
    %673 = vmatprep.subr.mxu0 0.0
    %674 = vmatpush1.msra.mxu0 %v191
    %675 = vmatprep.subr.mxu0 0.0
    %676 = vmatpush1.msra.mxu0 %v192
    %677 = vmatprep.subr.mxu0 0.0
    %678 = vmatpush1.msra.mxu0 %v193
    %679 = vmatprep.subr.mxu0 0.0
    %680 = vmatpush1.msra.mxu0 %v194
    %681 = vmatprep.subr.mxu0 0.0
    %682 = vmatpush1.msra.mxu0 %v195
    %683 = vmatprep.subr.mxu0 0.0
    %684 = vmatpush1.msra.mxu0 %v196
    %685 = vmatprep.subr.mxu0 0.0
    %686 = vmatpush1.msra.mxu0 %v197
    %687 = vmatprep.subr.mxu0 0.0
    %688 = vmatpush1.msra.mxu0 %v198
    %689 = vmatprep.subr.mxu0 0.0
    %690 = vmatpush1.msra.mxu0 %v199
    %691 = vmatprep.subr.mxu0 0.0
    %692 = vmatpush1.msra.mxu0 %v200
    %693 = vmatprep.subr.mxu0 0.0
    %694 = vmatpush1.msra.mxu0 %v201
    %695 = vmatprep.subr.mxu0 0.0
    %696 = vmatpush1.msra.mxu0 %v202
    %697 = vmatprep.subr.mxu0 0.0
    %698 = vmatpush1.msra.mxu0 %v203
    %699 = vmatprep.subr.mxu0 0.0
    %700 = vmatpush1.msra.mxu0 %v204
    %701 = vmatprep.subr.mxu0 0.0
    %702 = vmatpush1.msra.mxu0 %v205
    %703 = vmatprep.subr.mxu0 0.0
    %704 = vmatpush1.msra.mxu0 %v206
    %705 = vmatprep.subr.mxu0 0.0
    %706 = vmatpush1.msra.mxu0 %v207
    %707 = vmatprep.subr.mxu0 0.0
    %708 = vmatpush1.msra.mxu0 %v208
    %709 = vmatprep.subr.mxu0 0.0
    %710 = vmatpush1.msra.mxu0 %v209
    %711 = vmatprep.subr.mxu0 0.0
    %712 = vmatpush1.msra.mxu0 %v210
    %713 = vmatprep.mubr.f32.mxu0 %v276
    %714 = vmatmul.mubr.f32.gmra.mrb[0].mxu0 %v274
    %v715 = vpop.f32.mrb[0].mxu0
    %v716 = vadd.f32 %v646, %v715
    %v717 = vpop.f32.mrb[0].mxu0
    %718 = vdwg.mxu0
    %719 = vmatprep.subr.mxu0 0.0
    %720 = vmatpush1.msra.mxu0 %v211
    %721 = vmatprep.subr.mxu0 0.0
    %722 = vmatpush1.msra.mxu0 %v212
    %723 = vmatprep.subr.mxu0 0.0
    %724 = vmatpush1.msra.mxu0 %v213
    %725 = vmatprep.subr.mxu0 0.0
    %726 = vmatpush1.msra.mxu0 %v214
    %727 = vmatprep.subr.mxu0 0.0
    %728 = vmatpush1.msra.mxu0 0.0
    %729 = vmatprep.subr.mxu0 0.0
    %730 = vmatpush1.msra.mxu0 0.0
    %731 = vmatprep.subr.mxu0 0.0
    %732 = vmatpush1.msra.mxu0 0.0
    %733 = vmatprep.subr.mxu0 0.0
    %734 = vmatpush1.msra.mxu0 0.0
    %735 = vmatprep.subr.mxu0 0.0
    %736 = vmatpush1.msra.mxu0 0.0
    %737 = vmatprep.subr.mxu0 0.0
    %738 = vmatpush1.msra.mxu0 0.0
    %739 = vmatprep.subr.mxu0 0.0
    %740 = vmatpush1.msra.mxu0 0.0
    %741 = vmatprep.subr.mxu0 0.0
    %742 = vmatpush1.msra.mxu0 0.0
    %743 = vmatprep.subr.mxu0 0.0
    %744 = vmatpush1.msra.mxu0 0.0
    %745 = vmatprep.subr.mxu0 0.0
    %746 = vmatpush1.msra.mxu0 0.0
    %747 = vmatprep.subr.mxu0 0.0
    %748 = vmatpush1.msra.mxu0 0.0
    %749 = vmatprep.subr.mxu0 0.0
    %750 = vmatpush1.msra.mxu0 0.0
    %751 = vmatprep.subr.mxu0 0.0
    %752 = vmatpush1.msra.mxu0 0.0
    %753 = vmatprep.subr.mxu0 0.0
    %754 = vmatpush1.msra.mxu0 0.0
    %755 = vmatprep.subr.mxu0 0.0
    %756 = vmatpush1.msra.mxu0 0.0
    %757 = vmatprep.subr.mxu0 0.0
    %758 = vmatpush1.msra.mxu0 0.0
    %759 = vmatprep.subr.mxu0 0.0
    %760 = vmatpush1.msra.mxu0 0.0
    %761 = vmatprep.subr.mxu0 0.0
    %762 = vmatpush1.msra.mxu0 0.0
    %763 = vmatprep.subr.mxu0 0.0
    %764 = vmatpush1.msra.mxu0 0.0
    %765 = vmatprep.subr.mxu0 0.0
    %766 = vmatpush1.msra.mxu0 0.0
    %767 = vmatprep.subr.mxu0 0.0
    %768 = vmatpush1.msra.mxu0 0.0
    %769 = vmatprep.subr.mxu0 0.0
    %770 = vmatpush1.msra.mxu0 0.0
    %771 = vmatprep.subr.mxu0 0.0
    %772 = vmatpush1.msra.mxu0 0.0
    %773 = vmatprep.subr.mxu0 0.0
    %774 = vmatpush1.msra.mxu0 0.0
    %775 = vmatprep.subr.mxu0 0.0
    %776 = vmatpush1.msra.mxu0 0.0
    %777 = vmatprep.subr.mxu0 0.0
    %778 = vmatpush1.msra.mxu0 0.0
    %779 = vmatprep.subr.mxu0 0.0
    %780 = vmatpush1.msra.mxu0 0.0
    %781 = vmatprep.subr.mxu0 0.0
    %782 = vmatpush1.msra.mxu0 0.0
    %783 = vmatprep.mubr.f32.mxu0 0.0
    %784 = vmatmul.mubr.f32.gmra.mrb[0].mxu0 %v297
    %v785 = vpop.f32.mrb[0].mxu0
    %v786 = vadd.f32 %v716, %v785
    %v787 = vpop.f32.mrb[0].mxu0
    %788 = vdwg.mxu0
    %789 = vst [vmem:[#allocation2] sm:$0x3] %v786
    // Predicated region
    $region14: #{cnn_forward.5} parent=1 // pred_check
      _
    $region15: #{cnn_forward.5} parent=1 // pred_check_branch
      %791 = sbr.rel (0) target = $region17
    $region16: #{cnn_forward.5} parent=1 // pred_region
      %s793 = ssub.s32 32, 32
      %794 = vsyncadd [#allocation3], %s793
      %s796 = sshll.u32 [#allocation2], 4
      %s797 = int_to_ptr.vmem [resolvable:$true] %s796
      %799 = dma.vmem_to_hbm [thread:$0]  %s797, 32, %s3, [#allocation3]
    $region17: #{cnn_forward.5} parent=1 // pred_fallthru
      _
    // Predicated region
    $region18: #{cnn_forward.5} parent=1 // pred_check
      _
    $region19: #{cnn_forward.5} parent=1 // pred_check_branch
      %801 = sbr.rel (0) target = $region21
    $region20: #{cnn_forward.5} parent=1 // pred_region
      %802 = dma.done [#allocation3], 32
    $region21: #{cnn_forward.5} parent=1 // pred_fallthru
      _
    %803 = vsyncpa [#allocation3], 1

// kernel: cnn_forward.4
$region0: #{cnn_forward.4}
  #allocation0 [shape = 'u32[]', space=smem, size = 0x4, offset = 0x4, fixed_abs, tag = 'smem constant byte address 0x4 - core index']
  #allocation1 [shape = 'u32[144,128]{1,0:T(1,128)}', space=vmem, size = 0x12000, scoped, tag = 'internal scratch']
  %s0 = inlined_call_operand.vmem [shape: f32[2,4,49,400], index: 0, kind: input, shape index: {}]
  %s1 = inlined_call_operand.vmem [shape: f32[400,32], index: 1, kind: input, shape index: {}]
  %s2 = inlined_call_operand.vmem [shape: f32[1,32], index: 2, kind: input, shape index: {}]
  %s3 = inlined_call_operand.vmem [shape: f32[2,49,32], index: 3, kind: output, shape index: {}]
  %s4 = sld [smem:[#allocation0]]
  $region45: #{cnn_forward.4} parent=0
    _
  %s6 = ssub.s32 1, %s4
  %s7 = scalar_select 0, %s6, %s4
  loop: start=0, step=1, limit=4
  $region2: #{cnn_forward.4} parent=0 // loop_pre_header
    _
  $region3: #{cnn_forward.4} parent=0 // loop_header
    %s9 = sphi 0, %s13
    %p10 = scmp.ge.s32.totalorder %s9, 4
    %s19 = sphi 0, %s21
    %s22 = sphi 0, %s19
    %s23 = sphi 0, %s22
    %s39 = sphi 0, %s23
    %s43 = sphi 0, %s43
    %s45 = sphi 0, %s43
    %s46 = sphi 0, %s45
    %s60 = sphi 0, %s46
    %s64 = sphi 0, %s64
    %s66 = sphi 0, %s64
    %s67 = sphi 0, %s66
    %s81 = sphi 0, %s67
    %s87 = sphi 0, %s89
    %s90 = sphi 0, %s87
    %s91 = sphi 0, %s90
    %s107 = sphi 0, %s91
  $region4: #{cnn_forward.4} parent=0 // loop_header_branch
    %12 = sbr.rel (%p10) target = $region8
  $region5: #{cnn_forward.4} parent=0 // loop_body
    %s14 = ssub.s32 %s9, 1
    %s15 = ssub.s32 %s9, 2
    %s16 = sadd.s32 %s9, 1
    %s17 = ssub.s32 %s9, %s16
    %p18 = scmp.eq.s32.totalorder %s17, 0
    %s20 = sadd.s32 %s19, 1
    %s21 = scalar_select %p18, %s19, %s20
    %p24 = pneg %p18
    %p25 = scmp.eq.s32.totalorder %s9, 1
    %p26 = por %p24, %p25
    %p27 = scmp.ne.s32.totalorder %s19, %s22
    %p28 = scmp.eq.s32.totalorder %s9, 0
    %p29 = por %p27, %p28
    %p30 = scmp.ne.s32.totalorder %s19, %s22
    %p31 = scmp.eq.s32.totalorder %s14, 1
    %p32 = por %p30, %p31
    %p33 = scmp.ne.s32.totalorder %s22, %s23
    %p34 = scmp.eq.s32.totalorder %s14, 0
    %p35 = por %p33, %p34
    %p36 = scmp.ne.s32.totalorder %s22, %s23
    %p37 = scmp.eq.s32.totalorder %s15, 1
    %p38 = por %p36, %p37
    %p40 = scmp.ne.s32.totalorder %s23, %s39
    %p41 = scmp.eq.s32.totalorder %s15, 0
    %p42 = por %p40, %p41
    %s44 = sadd.s32 %s43, 1
    %p47 = scmp.eq.s32.totalorder %s9, 1
    %p48 = scmp.ne.s32.totalorder %s43, %s45
    %p49 = scmp.eq.s32.totalorder %s9, 0
    %p50 = por %p48, %p49
    %p51 = scmp.ne.s32.totalorder %s43, %s45
    %p52 = scmp.eq.s32.totalorder %s14, 1
    %p53 = por %p51, %p52
    %p54 = scmp.ne.s32.totalorder %s45, %s46
    %p55 = scmp.eq.s32.totalorder %s14, 0
    %p56 = por %p54, %p55
    %p57 = scmp.ne.s32.totalorder %s45, %s46
    %p58 = scmp.eq.s32.totalorder %s15, 1
    %p59 = por %p57, %p58
    %p61 = scmp.ne.s32.totalorder %s46, %s60
    %p62 = scmp.eq.s32.totalorder %s15, 0
    %p63 = por %p61, %p62
    %s65 = sadd.s32 %s64, 1
    %p68 = scmp.eq.s32.totalorder %s9, 1
    %p69 = scmp.ne.s32.totalorder %s64, %s66
    %p70 = scmp.eq.s32.totalorder %s9, 0
    %p71 = por %p69, %p70
    %p72 = scmp.ne.s32.totalorder %s64, %s66
    %p73 = scmp.eq.s32.totalorder %s14, 1
    %p74 = por %p72, %p73
    %p75 = scmp.ne.s32.totalorder %s66, %s67
    %p76 = scmp.eq.s32.totalorder %s14, 0
    %p77 = por %p75, %p76
    %p78 = scmp.ne.s32.totalorder %s66, %s67
    %p79 = scmp.eq.s32.totalorder %s15, 1
    %p80 = por %p78, %p79
    %p82 = scmp.ne.s32.totalorder %s67, %s81
    %p83 = scmp.eq.s32.totalorder %s15, 0
    %p84 = por %p82, %p83
    %s85 = ssub.s32 %s9, %s16
    %p86 = scmp.eq.s32.totalorder %s85, 0
    %s88 = sadd.s32 %s87, 1
    %s89 = scalar_select %p86, %s87, %s88
    %p92 = pneg %p86
    %p93 = scmp.eq.s32.totalorder %s9, 1
    %p94 = por %p92, %p93
    %p95 = scmp.ne.s32.totalorder %s87, %s90
    %p96 = scmp.eq.s32.totalorder %s9, 0
    %p97 = por %p95, %p96
    %p98 = scmp.ne.s32.totalorder %s87, %s90
    %p99 = scmp.eq.s32.totalorder %s14, 1
    %p100 = por %p98, %p99
    %p101 = scmp.ne.s32.totalorder %s90, %s91
    %p102 = scmp.eq.s32.totalorder %s14, 0
    %p103 = por %p101, %p102
    %p104 = scmp.ne.s32.totalorder %s90, %s91
    %p105 = scmp.eq.s32.totalorder %s15, 1
    %p106 = por %p104, %p105
    %p108 = scmp.ne.s32.totalorder %s91, %s107
    %p109 = scmp.eq.s32.totalorder %s15, 0
    %p110 = por %p108, %p109
    %p111 = scmp.le.s32.totalorder 1, %s9
    %p112 = scmp.lt.s32.totalorder %s9, 3
    %p113 = pnand %p111, %p112
    %p114 = pneg %p113
    // Predicated region
    $region9: #{cnn_forward.4} parent=5 // pred_check
      _
    $region10: #{cnn_forward.4} parent=5 // pred_check_branch
      %116 = sbr.rel (%p113) target = $region12
    $region11: #{cnn_forward.4} parent=5 // pred_region
      %s117 = ssub.s32 %s9, 1
      // Predicated region
      $region13: #{cnn_forward.4} parent=11 // pred_check
        %p118 = pneg %p56
      $region14: #{cnn_forward.4} parent=11 // pred_check_branch
        %120 = sbr.rel (%p118) target = $region16
      $region15: #{cnn_forward.4} parent=11 // pred_region
        _
      $region16: #{cnn_forward.4} parent=11 // pred_fallthru
        _
      // Predicated region
      $region17: #{cnn_forward.4} parent=11 // pred_check
        %p121 = pneg %p77
      $region18: #{cnn_forward.4} parent=11 // pred_check_branch
        %123 = sbr.rel (%p121) target = $region20
      $region19: #{cnn_forward.4} parent=11 // pred_region
        _
      $region20: #{cnn_forward.4} parent=11 // pred_fallthru
        _
    $region12: #{cnn_forward.4} parent=5 // pred_fallthru
      _
    %p124 = scmp.lt.s32.totalorder %s9, 2
    // Predicated region
    $region21: #{cnn_forward.4} parent=5 // pred_check
      %p125 = pneg %p124
    $region22: #{cnn_forward.4} parent=5 // pred_check_branch
      %127 = sbr.rel (%p125) target = $region24
    $region23: #{cnn_forward.4} parent=5 // pred_region
      // Predicated region
      $region25: #{cnn_forward.4} parent=23 // pred_check
        %p128 = pneg %p29
      $region26: #{cnn_forward.4} parent=23 // pred_check_branch
        %130 = sbr.rel (%p128) target = $region28
      $region27: #{cnn_forward.4} parent=23 // pred_region
        %p131 = scmp.lt.s32.totalorder %s9, 1
        %s132 = scalar_select %p131, %s9, 1
        %s133 = smul.addr %s132, 112
        %s134 = smul.addr %s133, 8
        %s135 = scalar_lea.vmem %s0, %s134
      $region28: #{cnn_forward.4} parent=23 // pred_fallthru
        _
    $region24: #{cnn_forward.4} parent=5 // pred_fallthru
      _
    %p136 = scmp.le.s32.totalorder 1, %s9
    %p137 = scmp.lt.s32.totalorder %s9, 3
    %p138 = pnand %p136, %p137
    %p139 = pneg %p138
    // Predicated region
    $region29: #{cnn_forward.4} parent=5 // pred_check
      _
    $region30: #{cnn_forward.4} parent=5 // pred_check_branch
      %141 = sbr.rel (%p138) target = $region32
    $region31: #{cnn_forward.4} parent=5 // pred_region
      %s142 = ssub.s32 %s9, 1
      %p143 = scmp.lt.s32.totalorder %s14, 1
      %s144 = scalar_select %p143, %s14, 1
      %s145 = smul.addr %s144, 112
      %s146 = smul.addr %s145, 8
      %s147 = scalar_lea.vmem %s0, %s146
      %p148 = pneg %p35
      %p149 = pneg %p32
      %p150 = pneg %p56
      %p151 = pneg %p53
      %p152 = pneg %p77
      %p153 = pneg %p74
      %p154 = pneg %p103
      %p155 = pneg %p100
      %p156 = scmp.lt.s32.totalorder %s14, 1
      %s157 = scalar_select %p156, %s14, 1
      %s158 = smul.addr %s157, 7
      %s159 = smul.addr %s158, 8
      %s160 = scalar_lea.vmem %s3, %s159
      %p161 = scmp.lt.s32.totalorder %s14, 1
      %s162 = scalar_select %p161, %s14, 1
      %s163 = smul.addr %s162, 112
      %s164 = smul.addr %s163, 8
      %s165 = scalar_lea.vmem %s0, %s164
      %p166 = scmp.lt.s32.totalorder %s14, 1
      %s167 = scalar_select %p166, %s14, 1
      %s168 = smul.addr %s167, 7
      %s169 = smul.addr %s168, 8
      %s170 = scalar_lea.vmem %s3, %s169
      %v171 = vld [vmem:[%s1] sm:$0xff]
      %v172 = vld [vmem:[%s1 + $0x8] sm:$0xff]
      %v173 = vld [vmem:[%s1 + $0x10] sm:$0xff]
      %v174 = vld [vmem:[%s1 + $0x18] sm:$0xff]
      %v175 = vld [vmem:[%s1 + $0x20] sm:$0xff]
      %v176 = vld [vmem:[%s1 + $0x28] sm:$0xff]
      %v177 = vld [vmem:[%s1 + $0x30] sm:$0xff]
      %v178 = vld [vmem:[%s1 + $0x38] sm:$0xff]
      %v179 = vld [vmem:[%s1 + $0x40] sm:$0xff]
      %v180 = vld [vmem:[%s1 + $0x48] sm:$0xff]
      %v181 = vld [vmem:[%s1 + $0x50] sm:$0xff]
      %v182 = vld [vmem:[%s1 + $0x58] sm:$0xff]
      %v183 = vld [vmem:[%s1 + $0x60] sm:$0xff]
      %v184 = vld [vmem:[%s1 + $0x68] sm:$0xff]
      %v185 = vld [vmem:[%s1 + $0x70] sm:$0xff]
      %v186 = vld [vmem:[%s1 + $0x78] sm:$0xff]
      %v187 = vld [vmem:[%s1 + $0x80] sm:$0xff]
      %v188 = vld [vmem:[%s1 + $0x88] sm:$0xff]
      %v189 = vld [vmem:[%s1 + $0x90] sm:$0xff]
      %v190 = vld [vmem:[%s1 + $0x98] sm:$0xff]
      %v191 = vld [vmem:[%s1 + $0xa0] sm:$0xff]
      %v192 = vld [vmem:[%s1 + $0xa8] sm:$0xff]
      %v193 = vld [vmem:[%s1 + $0xb0] sm:$0xff]
      %v194 = vld [vmem:[%s1 + $0xb8] sm:$0xff]
      %v195 = vld [vmem:[%s1 + $0xc0] sm:$0xff]
      %v196 = vld [vmem:[%s1 + $0xc8] sm:$0xff]
      %v197 = vld [vmem:[%s1 + $0xd0] sm:$0xff]
      %v198 = vld [vmem:[%s1 + $0xd8] sm:$0xff]
      %v199 = vld [vmem:[%s1 + $0xe0] sm:$0xff]
      %v200 = vld [vmem:[%s1 + $0xe8] sm:$0xff]
      %v201 = vld [vmem:[%s1 + $0xf0] sm:$0xff]
      %v202 = vld [vmem:[%s1 + $0xf8] sm:$0xff]
      %v203 = vld [vmem:[%s1 + $0x100] sm:$0xff]
      %v204 = vld [vmem:[%s1 + $0x108] sm:$0xff]
      %v205 = vld [vmem:[%s1 + $0x110] sm:$0xff]
      %v206 = vld [vmem:[%s1 + $0x118] sm:$0xff]
      %v207 = vld [vmem:[%s1 + $0x120] sm:$0xff]
      %v208 = vld [vmem:[%s1 + $0x128] sm:$0xff]
      %v209 = vld [vmem:[%s1 + $0x130] sm:$0xff]
      %v210 = vld [vmem:[%s1 + $0x138] sm:$0xff]
      %v211 = vld [vmem:[%s1 + $0x140] sm:$0xff]
      %v212 = vld [vmem:[%s1 + $0x148] sm:$0xff]
      %v213 = vld [vmem:[%s1 + $0x150] sm:$0xff]
      %v214 = vld [vmem:[%s1 + $0x158] sm:$0xff]
      %v215 = vld [vmem:[%s1 + $0x160] sm:$0xff]
      %v216 = vld [vmem:[%s1 + $0x168] sm:$0xff]
      %v217 = vld [vmem:[%s1 + $0x170] sm:$0xff]
      %v218 = vld [vmem:[%s1 + $0x178] sm:$0xff]
      %v219 = vld [vmem:[%s1 + $0x180] sm:$0xff]
      %v220 = vld [vmem:[%s1 + $0x188] sm:$0xff]
      %v221 = vld [vmem:[%s2] sm:$0x1]
      %v222 = vld [vmem:[%s165] sm:$0xff]
      %v223 = vld [vmem:[%s165 + $0x8] sm:$0xff]
      %v224 = vld [vmem:[%s165 + $0x10] sm:$0xff]
      %v225 = vld [vmem:[%s165 + $0x18] sm:$0xff]
      %v226 = vld [vmem:[%s165 + $0x20] sm:$0xff]
      %v227 = vld [vmem:[%s165 + $0x28] sm:$0xff]
      %v228 = vld [vmem:[%s165 + $0x30] sm:$0xff]
      %v229 = vld [vmem:[%s165 + $0x38] sm:$0xff]
      %v230 = vld [vmem:[%s165 + $0x40] sm:$0xff]
      %v231 = vld [vmem:[%s165 + $0x48] sm:$0xff]
      %v232 = vld [vmem:[%s165 + $0x50] sm:$0xff]
      %v233 = vld [vmem:[%s165 + $0x58] sm:$0xff]
      %v234 = vld [vmem:[%s165 + $0x60] sm:$0xff]
      %v235 = vld [vmem:[%s165 + $0x68] sm:$0xff]
      %v236 = vld [vmem:[%s165 + $0x70] sm:$0xff]
      %v237 = vld [vmem:[%s165 + $0x78] sm:$0xff]
      %v238 = vld [vmem:[%s165 + $0x80] sm:$0xff]
      %v239 = vld [vmem:[%s165 + $0x88] sm:$0xff]
      %v240 = vld [vmem:[%s165 + $0x90] sm:$0xff]
      %v241 = vld [vmem:[%s165 + $0x98] sm:$0xff]
      %v242 = vld [vmem:[%s165 + $0xa0] sm:$0xff]
      %v243 = vld [vmem:[%s165 + $0xa8] sm:$0xff]
      %v244 = vld [vmem:[%s165 + $0xb0] sm:$0xff]
      %v245 = vld [vmem:[%s165 + $0xb8] sm:$0xff]
      %v246 = vld [vmem:[%s165 + $0xc0] sm:$0x1]
      %v247 = vld [vmem:[%s165 + $0xc8] sm:$0x1]
      %v248 = vld [vmem:[%s165 + $0xd0] sm:$0x1]
      %v249 = vld [vmem:[%s165 + $0xd8] sm:$0x1]
      %vm250 = vcmask 130048
      %v252 = vsel %vm250, %v225, 0
      %v255 = vsel %vm250, %v229, 0
      %v258 = vsel %vm250, %v233, 0
      %v261 = vsel %vm250, %v237, 0
      %v264 = vsel %vm250, %v241, 0
      %v267 = vsel %vm250, %v245, 0
      %v270 = vsel %vm250, %v249, 0
      %272 = vmatprep.subr.mxu0 0.0
      %273 = vmatpush1.msra.mxu0 %v171
      %274 = vmatprep.subr.mxu0 0.0
      %275 = vmatpush1.msra.mxu0 %v172
      %276 = vmatprep.subr.mxu0 0.0
      %277 = vmatpush1.msra.mxu0 %v173
      %278 = vmatprep.subr.mxu0 0.0
      %279 = vmatpush1.msra.mxu0 %v174
      %280 = vmatprep.subr.mxu0 0.0
      %281 = vmatpush1.msra.mxu0 %v175
      %282 = vmatprep.subr.mxu0 0.0
      %283 = vmatpush1.msra.mxu0 %v176
      %284 = vmatprep.subr.mxu0 0.0
      %285 = vmatpush1.msra.mxu0 %v177
      %286 = vmatprep.subr.mxu0 0.0
      %287 = vmatpush1.msra.mxu0 %v178
      %288 = vmatprep.subr.mxu0 0.0
      %289 = vmatpush1.msra.mxu0 %v179
      %290 = vmatprep.subr.mxu0 0.0
      %291 = vmatpush1.msra.mxu0 %v180
      %292 = vmatprep.subr.mxu0 0.0
      %293 = vmatpush1.msra.mxu0 %v181
      %294 = vmatprep.subr.mxu0 0.0
      %295 = vmatpush1.msra.mxu0 %v182
      %296 = vmatprep.subr.mxu0 0.0
      %297 = vmatpush1.msra.mxu0 %v183
      %298 = vmatprep.subr.mxu0 0.0
      %299 = vmatpush1.msra.mxu0 %v184
      %300 = vmatprep.subr.mxu0 0.0
      %301 = vmatpush1.msra.mxu0 %v185
      %302 = vmatprep.subr.mxu0 0.0
      %303 = vmatpush1.msra.mxu0 %v186
      %304 = vmatprep.subr.mxu0 0.0
      %305 = vmatpush1.msra.mxu0 %v187
      %306 = vmatprep.subr.mxu0 0.0
      %307 = vmatpush1.msra.mxu0 %v188
      %308 = vmatprep.subr.mxu0 0.0
      %309 = vmatpush1.msra.mxu0 %v189
      %310 = vmatprep.subr.mxu0 0.0
      %311 = vmatpush1.msra.mxu0 %v190
      %312 = vmatprep.subr.mxu0 0.0
      %313 = vmatpush1.msra.mxu0 %v191
      %314 = vmatprep.subr.mxu0 0.0
      %315 = vmatpush1.msra.mxu0 %v192
      %316 = vmatprep.subr.mxu0 0.0
      %317 = vmatpush1.msra.mxu0 %v193
      %318 = vmatprep.subr.mxu0 0.0
      %319 = vmatpush1.msra.mxu0 %v194
      %320 = vmatprep.subr.mxu0 0.0
      %321 = vmatpush1.msra.mxu0 %v195
      %322 = vmatprep.subr.mxu0 0.0
      %323 = vmatpush1.msra.mxu0 %v196
      %324 = vmatprep.subr.mxu0 0.0
      %325 = vmatpush1.msra.mxu0 %v197
      %326 = vmatprep.subr.mxu0 0.0
      %327 = vmatpush1.msra.mxu0 %v198
      %328 = vmatprep.subr.mxu0 0.0
      %329 = vmatpush1.msra.mxu0 %v199
      %330 = vmatprep.subr.mxu0 0.0
      %331 = vmatpush1.msra.mxu0 %v200
      %332 = vmatprep.subr.mxu0 0.0
      %333 = vmatpush1.msra.mxu0 %v201
      %334 = vmatprep.subr.mxu0 0.0
      %335 = vmatpush1.msra.mxu0 %v202
      %336 = vmatprep.mubr.f32.mxu0 %v223
      %337 = vmatmul.mubr.f32.gmra.mrb[0].mxu0 %v222
      %v338 = vpop.f32.mrb[0].mxu0
      %v339 = vadd.f32 0.0, %v338
      %v340 = vpop.f32.mrb[0].mxu0
      %341 = vmatprep.mubr.f32.mxu0 %v227
      %342 = vmatmul.mubr.f32.gmra.mrb[0].mxu0 %v226
      %v343 = vpop.f32.mrb[0].mxu0
      %v344 = vadd.f32 0.0, %v343
      %v345 = vpop.f32.mrb[0].mxu0
      %346 = vmatprep.mubr.f32.mxu0 %v231
      %347 = vmatmul.mubr.f32.gmra.mrb[0].mxu0 %v230
      %v348 = vpop.f32.mrb[0].mxu0
      %v349 = vadd.f32 0.0, %v348
      %v350 = vpop.f32.mrb[0].mxu0
      %351 = vmatprep.mubr.f32.mxu0 %v235
      %352 = vmatmul.mubr.f32.gmra.mrb[0].mxu0 %v234
      %v353 = vpop.f32.mrb[0].mxu0
      %v354 = vadd.f32 0.0, %v353
      %v355 = vpop.f32.mrb[0].mxu0
      %356 = vmatprep.mubr.f32.mxu0 %v239
      %357 = vmatmul.mubr.f32.gmra.mrb[0].mxu0 %v238
      %v358 = vpop.f32.mrb[0].mxu0
      %v359 = vadd.f32 0.0, %v358
      %v360 = vpop.f32.mrb[0].mxu0
      %361 = vmatprep.mubr.f32.mxu0 %v243
      %362 = vmatmul.mubr.f32.gmra.mrb[0].mxu0 %v242
      %v363 = vpop.f32.mrb[0].mxu0
      %v364 = vadd.f32 0.0, %v363
      %v365 = vpop.f32.mrb[0].mxu0
      %366 = vmatprep.mubr.f32.mxu0 %v247
      %367 = vmatmul.mubr.f32.gmra.mrb[0].mxu0 %v246
      %v368 = vpop.f32.mrb[0].mxu0
      %v369 = vadd.f32 0.0, %v368
      %v370 = vpop.f32.mrb[0].mxu0
      %371 = vdwg.mxu0
      %372 = vmatprep.subr.mxu0 0.0
      %373 = vmatpush1.msra.mxu0 %v203
      %374 = vmatprep.subr.mxu0 0.0
      %375 = vmatpush1.msra.mxu0 %v204
      %376 = vmatprep.subr.mxu0 0.0
      %377 = vmatpush1.msra.mxu0 %v205
      %378 = vmatprep.subr.mxu0 0.0
      %379 = vmatpush1.msra.mxu0 %v206
      %380 = vmatprep.subr.mxu0 0.0
      %381 = vmatpush1.msra.mxu0 %v207
      %382 = vmatprep.subr.mxu0 0.0
      %383 = vmatpush1.msra.mxu0 %v208
      %384 = vmatprep.subr.mxu0 0.0
      %385 = vmatpush1.msra.mxu0 %v209
      %386 = vmatprep.subr.mxu0 0.0
      %387 = vmatpush1.msra.mxu0 %v210
      %388 = vmatprep.subr.mxu0 0.0
      %389 = vmatpush1.msra.mxu0 %v211
      %390 = vmatprep.subr.mxu0 0.0
      %391 = vmatpush1.msra.mxu0 %v212
      %392 = vmatprep.subr.mxu0 0.0
      %393 = vmatpush1.msra.mxu0 %v213
      %394 = vmatprep.subr.mxu0 0.0
      %395 = vmatpush1.msra.mxu0 %v214
      %396 = vmatprep.subr.mxu0 0.0
      %397 = vmatpush1.msra.mxu0 %v215
      %398 = vmatprep.subr.mxu0 0.0
      %399 = vmatpush1.msra.mxu0 %v216
      %400 = vmatprep.subr.mxu0 0.0
      %401 = vmatpush1.msra.mxu0 %v217
      %402 = vmatprep.subr.mxu0 0.0
      %403 = vmatpush1.msra.mxu0 %v218
      %404 = vmatprep.subr.mxu0 0.0
      %405 = vmatpush1.msra.mxu0 %v219
      %406 = vmatprep.subr.mxu0 0.0
      %407 = vmatpush1.msra.mxu0 %v220
      %408 = vmatprep.subr.mxu0 0.0
      %409 = vmatpush1.msra.mxu0 0.0
      %410 = vmatprep.subr.mxu0 0.0
      %411 = vmatpush1.msra.mxu0 0.0
      %412 = vmatprep.subr.mxu0 0.0
      %413 = vmatpush1.msra.mxu0 0.0
      %414 = vmatprep.subr.mxu0 0.0
      %415 = vmatpush1.msra.mxu0 0.0
      %416 = vmatprep.subr.mxu0 0.0
      %417 = vmatpush1.msra.mxu0 0.0
      %418 = vmatprep.subr.mxu0 0.0
      %419 = vmatpush1.msra.mxu0 0.0
      %420 = vmatprep.subr.mxu0 0.0
      %421 = vmatpush1.msra.mxu0 0.0
      %422 = vmatprep.subr.mxu0 0.0
      %423 = vmatpush1.msra.mxu0 0.0
      %424 = vmatprep.subr.mxu0 0.0
      %425 = vmatpush1.msra.mxu0 0.0
      %426 = vmatprep.subr.mxu0 0.0
      %427 = vmatpush1.msra.mxu0 0.0
      %428 = vmatprep.subr.mxu0 0.0
      %429 = vmatpush1.msra.mxu0 0.0
      %430 = vmatprep.subr.mxu0 0.0
      %431 = vmatpush1.msra.mxu0 0.0
      %432 = vmatprep.subr.mxu0 0.0
      %433 = vmatpush1.msra.mxu0 0.0
      %434 = vmatprep.subr.mxu0 0.0
      %435 = vmatpush1.msra.mxu0 0.0
      %436 = vmatprep.mubr.f32.mxu0 %v252
      %437 = vmatmul.mubr.f32.gmra.mrb[0].mxu0 %v224
      %v438 = vpop.f32.mrb[0].mxu0
      %v439 = vadd.f32 %v339, %v438
      %v440 = vpop.f32.mrb[0].mxu0
      %441 = vmatprep.mubr.f32.mxu0 %v255
      %442 = vmatmul.mubr.f32.gmra.mrb[0].mxu0 %v228
      %v443 = vpop.f32.mrb[0].mxu0
      %v444 = vadd.f32 %v344, %v443
      %v445 = vpop.f32.mrb[0].mxu0
      %446 = vmatprep.mubr.f32.mxu0 %v258
      %447 = vmatmul.mubr.f32.gmra.mrb[0].mxu0 %v232
      %v448 = vpop.f32.mrb[0].mxu0
      %v449 = vadd.f32 %v349, %v448
      %v450 = vpop.f32.mrb[0].mxu0
      %451 = vmatprep.mubr.f32.mxu0 %v261
      %452 = vmatmul.mubr.f32.gmra.mrb[0].mxu0 %v236
      %v453 = vpop.f32.mrb[0].mxu0
      %v454 = vadd.f32 %v354, %v453
      %v455 = vpop.f32.mrb[0].mxu0
      %456 = vmatprep.mubr.f32.mxu0 %v264
      %457 = vmatmul.mubr.f32.gmra.mrb[0].mxu0 %v240
      %v458 = vpop.f32.mrb[0].mxu0
      %v459 = vadd.f32 %v359, %v458
      %v460 = vpop.f32.mrb[0].mxu0
      %461 = vmatprep.mubr.f32.mxu0 %v267
      %462 = vmatmul.mubr.f32.gmra.mrb[0].mxu0 %v244
      %v463 = vpop.f32.mrb[0].mxu0
      %v464 = vadd.f32 %v364, %v463
      %v465 = vpop.f32.mrb[0].mxu0
      %466 = vmatprep.mubr.f32.mxu0 %v270
      %467 = vmatmul.mubr.f32.gmra.mrb[0].mxu0 %v248
      %v468 = vpop.f32.mrb[0].mxu0
      %v469 = vadd.f32 %v369, %v468
      %v470 = vpop.f32.mrb[0].mxu0
      %471 = vdwg.mxu0
      %s472 = scalar_lea.vmem %s165, 224
      %v473 = vld [vmem:[%s472] sm:$0xff]
      %v474 = vld [vmem:[%s472 + $0x8] sm:$0xff]
      %v475 = vld [vmem:[%s472 + $0x10] sm:$0xff]
      %v476 = vld [vmem:[%s472 + $0x18] sm:$0xff]
      %v477 = vld [vmem:[%s472 + $0x20] sm:$0xff]
      %v478 = vld [vmem:[%s472 + $0x28] sm:$0xff]
      %v479 = vld [vmem:[%s472 + $0x30] sm:$0xff]
      %v480 = vld [vmem:[%s472 + $0x38] sm:$0xff]
      %v481 = vld [vmem:[%s472 + $0x40] sm:$0xff]
      %v482 = vld [vmem:[%s472 + $0x48] sm:$0xff]
      %v483 = vld [vmem:[%s472 + $0x50] sm:$0xff]
      %v484 = vld [vmem:[%s472 + $0x58] sm:$0xff]
      %v485 = vld [vmem:[%s472 + $0x60] sm:$0xff]
      %v486 = vld [vmem:[%s472 + $0x68] sm:$0xff]
      %v487 = vld [vmem:[%s472 + $0x70] sm:$0xff]
      %v488 = vld [vmem:[%s472 + $0x78] sm:$0xff]
      %v489 = vld [vmem:[%s472 + $0x80] sm:$0xff]
      %v490 = vld [vmem:[%s472 + $0x88] sm:$0xff]
      %v491 = vld [vmem:[%s472 + $0x90] sm:$0xff]
      %v492 = vld [vmem:[%s472 + $0x98] sm:$0xff]
      %v493 = vld [vmem:[%s472 + $0xa0] sm:$0xff]
      %v494 = vld [vmem:[%s472 + $0xa8] sm:$0xff]
      %v495 = vld [vmem:[%s472 + $0xb0] sm:$0xff]
      %v496 = vld [vmem:[%s472 + $0xb8] sm:$0xff]
      %v497 = vld [vmem:[%s472 + $0xc0] sm:$0x1]
      %v498 = vld [vmem:[%s472 + $0xc8] sm:$0x1]
      %v499 = vld [vmem:[%s472 + $0xd0] sm:$0x1]
      %v500 = vld [vmem:[%s472 + $0xd8] sm:$0x1]
      %v502 = vsel %vm250, %v476, 0
      %v505 = vsel %vm250, %v480, 0
      %v508 = vsel %vm250, %v484, 0
      %v511 = vsel %vm250, %v488, 0
      %v514 = vsel %vm250, %v492, 0
      %v517 = vsel %vm250, %v496, 0
      %v520 = vsel %vm250, %v500, 0
      %522 = vmatprep.subr.mxu0 0.0
      %523 = vmatpush1.msra.mxu0 %v171
      %524 = vmatprep.subr.mxu0 0.0
      %525 = vmatpush1.msra.mxu0 %v172
      %526 = vmatprep.subr.mxu0 0.0
      %527 = vmatpush1.msra.mxu0 %v173
      %528 = vmatprep.subr.mxu0 0.0
      %529 = vmatpush1.msra.mxu0 %v174
      %530 = vmatprep.subr.mxu0 0.0
      %531 = vmatpush1.msra.mxu0 %v175
      %532 = vmatprep.subr.mxu0 0.0
      %533 = vmatpush1.msra.mxu0 %v176
      %534 = vmatprep.subr.mxu0 0.0
      %535 = vmatpush1.msra.mxu0 %v177
      %536 = vmatprep.subr.mxu0 0.0
      %537 = vmatpush1.msra.mxu0 %v178
      %538 = vmatprep.subr.mxu0 0.0
      %539 = vmatpush1.msra.mxu0 %v179
      %540 = vmatprep.subr.mxu0 0.0
      %541 = vmatpush1.msra.mxu0 %v180
      %542 = vmatprep.subr.mxu0 0.0
      %543 = vmatpush1.msra.mxu0 %v181
      %544 = vmatprep.subr.mxu0 0.0
      %545 = vmatpush1.msra.mxu0 %v182
      %546 = vmatprep.subr.mxu0 0.0
      %547 = vmatpush1.msra.mxu0 %v183
      %548 = vmatprep.subr.mxu0 0.0
      %549 = vmatpush1.msra.mxu0 %v184
      %550 = vmatprep.subr.mxu0 0.0
      %551 = vmatpush1.msra.mxu0 %v185
      %552 = vmatprep.subr.mxu0 0.0
      %553 = vmatpush1.msra.mxu0 %v186
      %554 = vmatprep.subr.mxu0 0.0
      %555 = vmatpush1.msra.mxu0 %v187
      %556 = vmatprep.subr.mxu0 0.0
      %557 = vmatpush1.msra.mxu0 %v188
      %558 = vmatprep.subr.mxu0 0.0
      %559 = vmatpush1.msra.mxu0 %v189
      %560 = vmatprep.subr.mxu0 0.0
      %561 = vmatpush1.msra.mxu0 %v190
      %562 = vmatprep.subr.mxu0 0.0
      %563 = vmatpush1.msra.mxu0 %v191
      %564 = vmatprep.subr.mxu0 0.0
      %565 = vmatpush1.msra.mxu0 %v192
      %566 = vmatprep.subr.mxu0 0.0
      %567 = vmatpush1.msra.mxu0 %v193
      %568 = vmatprep.subr.mxu0 0.0
      %569 = vmatpush1.msra.mxu0 %v194
      %570 = vmatprep.subr.mxu0 0.0
      %571 = vmatpush1.msra.mxu0 %v195
      %572 = vmatprep.subr.mxu0 0.0
      %573 = vmatpush1.msra.mxu0 %v196
      %574 = vmatprep.subr.mxu0 0.0
      %575 = vmatpush1.msra.mxu0 %v197
      %576 = vmatprep.subr.mxu0 0.0
      %577 = vmatpush1.msra.mxu0 %v198
      %578 = vmatprep.subr.mxu0 0.0
      %579 = vmatpush1.msra.mxu0 %v199
      %580 = vmatprep.subr.mxu0 0.0
      %581 = vmatpush1.msra.mxu0 %v200
      %582 = vmatprep.subr.mxu0 0.0
      %583 = vmatpush1.msra.mxu0 %v201
      %584 = vmatprep.subr.mxu0 0.0
      %585 = vmatpush1.msra.mxu0 %v202
      %586 = vmatprep.mubr.f32.mxu0 %v474
      %587 = vmatmul.mubr.f32.gmra.mrb[0].mxu0 %v473
      %v588 = vpop.f32.mrb[0].mxu0
      %v589 = vadd.f32 0.0, %v588
      %v590 = vpop.f32.mrb[0].mxu0
      %591 = vmatprep.mubr.f32.mxu0 %v478
      %592 = vmatmul.mubr.f32.gmra.mrb[0].mxu0 %v477
      %v593 = vpop.f32.mrb[0].mxu0
      %v594 = vadd.f32 0.0, %v593
      %v595 = vpop.f32.mrb[0].mxu0
      %596 = vmatprep.mubr.f32.mxu0 %v482
      %597 = vmatmul.mubr.f32.gmra.mrb[0].mxu0 %v481
      %v598 = vpop.f32.mrb[0].mxu0
      %v599 = vadd.f32 0.0, %v598
      %v600 = vpop.f32.mrb[0].mxu0
      %601 = vmatprep.mubr.f32.mxu0 %v486
      %602 = vmatmul.mubr.f32.gmra.mrb[0].mxu0 %v485
      %v603 = vpop.f32.mrb[0].mxu0
      %v604 = vadd.f32 0.0, %v603
      %v605 = vpop.f32.mrb[0].mxu0
      %606 = vmatprep.mubr.f32.mxu0 %v490
      %607 = vmatmul.mubr.f32.gmra.mrb[0].mxu0 %v489
      %v608 = vpop.f32.mrb[0].mxu0
      %v609 = vadd.f32 0.0, %v608
      %v610 = vpop.f32.mrb[0].mxu0
      %611 = vmatprep.mubr.f32.mxu0 %v494
      %612 = vmatmul.mubr.f32.gmra.mrb[0].mxu0 %v493
      %v613 = vpop.f32.mrb[0].mxu0
      %v614 = vadd.f32 0.0, %v613
      %v615 = vpop.f32.mrb[0].mxu0
      %616 = vmatprep.mubr.f32.mxu0 %v498
      %617 = vmatmul.mubr.f32.gmra.mrb[0].mxu0 %v497
      %v618 = vpop.f32.mrb[0].mxu0
      %v619 = vadd.f32 0.0, %v618
      %v620 = vpop.f32.mrb[0].mxu0
      %621 = vdwg.mxu0
      %622 = vmatprep.subr.mxu0 0.0
      %623 = vmatpush1.msra.mxu0 %v203
      %624 = vmatprep.subr.mxu0 0.0
      %625 = vmatpush1.msra.mxu0 %v204
      %626 = vmatprep.subr.mxu0 0.0
      %627 = vmatpush1.msra.mxu0 %v205
      %628 = vmatprep.subr.mxu0 0.0
      %629 = vmatpush1.msra.mxu0 %v206
      %630 = vmatprep.subr.mxu0 0.0
      %631 = vmatpush1.msra.mxu0 %v207
      %632 = vmatprep.subr.mxu0 0.0
      %633 = vmatpush1.msra.mxu0 %v208
      %634 = vmatprep.subr.mxu0 0.0
      %635 = vmatpush1.msra.mxu0 %v209
      %636 = vmatprep.subr.mxu0 0.0
      %637 = vmatpush1.msra.mxu0 %v210
      %638 = vmatprep.subr.mxu0 0.0
      %639 = vmatpush1.msra.mxu0 %v211
      %640 = vmatprep.subr.mxu0 0.0
      %641 = vmatpush1.msra.mxu0 %v212
      %642 = vmatprep.subr.mxu0 0.0
      %643 = vmatpush1.msra.mxu0 %v213
      %644 = vmatprep.subr.mxu0 0.0
      %645 = vmatpush1.msra.mxu0 %v214
      %646 = vmatprep.subr.mxu0 0.0
      %647 = vmatpush1.msra.mxu0 %v215
      %648 = vmatprep.subr.mxu0 0.0
      %649 = vmatpush1.msra.mxu0 %v216
      %650 = vmatprep.subr.mxu0 0.0
      %651 = vmatpush1.msra.mxu0 %v217
      %652 = vmatprep.subr.mxu0 0.0
      %653 = vmatpush1.msra.mxu0 %v218
      %654 = vmatprep.subr.mxu0 0.0
      %655 = vmatpush1.msra.mxu0 %v219
      %656 = vmatprep.subr.mxu0 0.0
      %657 = vmatpush1.msra.mxu0 %v220
      %658 = vmatprep.subr.mxu0 0.0
      %659 = vmatpush1.msra.mxu0 0.0
      %660 = vmatprep.subr.mxu0 0.0
      %661 = vmatpush1.msra.mxu0 0.0
      %662 = vmatprep.subr.mxu0 0.0
      %663 = vmatpush1.msra.mxu0 0.0
      %664 = vmatprep.subr.mxu0 0.0
      %665 = vmatpush1.msra.mxu0 0.0
      %666 = vmatprep.subr.mxu0 0.0
      %667 = vmatpush1.msra.mxu0 0.0
      %668 = vmatprep.subr.mxu0 0.0
      %669 = vmatpush1.msra.mxu0 0.0
      %670 = vmatprep.subr.mxu0 0.0
      %671 = vmatpush1.msra.mxu0 0.0
      %672 = vmatprep.subr.mxu0 0.0
      %673 = vmatpush1.msra.mxu0 0.0
      %674 = vmatprep.subr.mxu0 0.0
      %675 = vmatpush1.msra.mxu0 0.0
      %676 = vmatprep.subr.mxu0 0.0
      %677 = vmatpush1.msra.mxu0 0.0
      %678 = vmatprep.subr.mxu0 0.0
      %679 = vmatpush1.msra.mxu0 0.0
      %680 = vmatprep.subr.mxu0 0.0
      %681 = vmatpush1.msra.mxu0 0.0
      %682 = vmatprep.subr.mxu0 0.0
      %683 = vmatpush1.msra.mxu0 0.0
      %684 = vmatprep.subr.mxu0 0.0
      %685 = vmatpush1.msra.mxu0 0.0
      %686 = vmatprep.mubr.f32.mxu0 %v502
      %687 = vmatmul.mubr.f32.gmra.mrb[0].mxu0 %v475
      %v688 = vpop.f32.mrb[0].mxu0
      %v689 = vadd.f32 %v589, %v688
      %v690 = vpop.f32.mrb[0].mxu0
      %691 = vmatprep.mubr.f32.mxu0 %v505
      %692 = vmatmul.mubr.f32.gmra.mrb[0].mxu0 %v479
      %v693 = vpop.f32.mrb[0].mxu0
      %v694 = vadd.f32 %v594, %v693
      %v695 = vpop.f32.mrb[0].mxu0
      %696 = vmatprep.mubr.f32.mxu0 %v508
      %697 = vmatmul.mubr.f32.gmra.mrb[0].mxu0 %v483
      %v698 = vpop.f32.mrb[0].mxu0
      %v699 = vadd.f32 %v599, %v698
      %v700 = vpop.f32.mrb[0].mxu0
      %701 = vmatprep.mubr.f32.mxu0 %v511
      %702 = vmatmul.mubr.f32.gmra.mrb[0].mxu0 %v487
      %v703 = vpop.f32.mrb[0].mxu0
      %v704 = vadd.f32 %v604, %v703
      %v705 = vpop.f32.mrb[0].mxu0
      %706 = vmatprep.mubr.f32.mxu0 %v514
      %707 = vmatmul.mubr.f32.gmra.mrb[0].mxu0 %v491
      %v708 = vpop.f32.mrb[0].mxu0
      %v709 = vadd.f32 %v609, %v708
      %v710 = vpop.f32.mrb[0].mxu0
      %711 = vmatprep.mubr.f32.mxu0 %v517
      %712 = vmatmul.mubr.f32.gmra.mrb[0].mxu0 %v495
      %v713 = vpop.f32.mrb[0].mxu0
      %v714 = vadd.f32 %v614, %v713
      %v715 = vpop.f32.mrb[0].mxu0
      %716 = vmatprep.mubr.f32.mxu0 %v520
      %717 = vmatmul.mubr.f32.gmra.mrb[0].mxu0 %v499
      %v718 = vpop.f32.mrb[0].mxu0
      %v719 = vadd.f32 %v619, %v718
      %v720 = vpop.f32.mrb[0].mxu0
      %721 = vdwg.mxu0
      %v722 = vmax.f32 %v439, %v689
      %v723 = vmax.f32 %v444, %v694
      %v724 = vmax.f32 %v449, %v699
      %v725 = vmax.f32 %v454, %v704
      %v726 = vmax.f32 %v459, %v709
      %v727 = vmax.f32 %v464, %v714
      %v728 = vmax.f32 %v469, %v719
      %s729 = scalar_lea.vmem %s165, 448
      %v730 = vld [vmem:[%s729] sm:$0xff]
      %v731 = vld [vmem:[%s729 + $0x8] sm:$0xff]
      %v732 = vld [vmem:[%s729 + $0x10] sm:$0xff]
      %v733 = vld [vmem:[%s729 + $0x18] sm:$0xff]
      %v734 = vld [vmem:[%s729 + $0x20] sm:$0xff]
      %v735 = vld [vmem:[%s729 + $0x28] sm:$0xff]
      %v736 = vld [vmem:[%s729 + $0x30] sm:$0xff]
      %v737 = vld [vmem:[%s729 + $0x38] sm:$0xff]
      %v738 = vld [vmem:[%s729 + $0x40] sm:$0xff]
      %v739 = vld [vmem:[%s729 + $0x48] sm:$0xff]
      %v740 = vld [vmem:[%s729 + $0x50] sm:$0xff]
      %v741 = vld [vmem:[%s729 + $0x58] sm:$0xff]
      %v742 = vld [vmem:[%s729 + $0x60] sm:$0xff]
      %v743 = vld [vmem:[%s729 + $0x68] sm:$0xff]
      %v744 = vld [vmem:[%s729 + $0x70] sm:$0xff]
      %v745 = vld [vmem:[%s729 + $0x78] sm:$0xff]
      %v746 = vld [vmem:[%s729 + $0x80] sm:$0xff]
      %v747 = vld [vmem:[%s729 + $0x88] sm:$0xff]
      %v748 = vld [vmem:[%s729 + $0x90] sm:$0xff]
      %v749 = vld [vmem:[%s729 + $0x98] sm:$0xff]
      %v750 = vld [vmem:[%s729 + $0xa0] sm:$0xff]
      %v751 = vld [vmem:[%s729 + $0xa8] sm:$0xff]
      %v752 = vld [vmem:[%s729 + $0xb0] sm:$0xff]
      %v753 = vld [vmem:[%s729 + $0xb8] sm:$0xff]
      %v754 = vld [vmem:[%s729 + $0xc0] sm:$0x1]
      %v755 = vld [vmem:[%s729 + $0xc8] sm:$0x1]
      %v756 = vld [vmem:[%s729 + $0xd0] sm:$0x1]
      %v757 = vld [vmem:[%s729 + $0xd8] sm:$0x1]
      %v759 = vsel %vm250, %v733, 0
      %v762 = vsel %vm250, %v737, 0
      %v765 = vsel %vm250, %v741, 0
      %v768 = vsel %vm250, %v745, 0
      %v771 = vsel %vm250, %v749, 0
      %v774 = vsel %vm250, %v753, 0
      %v777 = vsel %vm250, %v757, 0
      %779 = vmatprep.subr.mxu0 0.0
      %780 = vmatpush1.msra.mxu0 %v171
      %781 = vmatprep.subr.mxu0 0.0
      %782 = vmatpush1.msra.mxu0 %v172
      %783 = vmatprep.subr.mxu0 0.0
      %784 = vmatpush1.msra.mxu0 %v173
      %785 = vmatprep.subr.mxu0 0.0
      %786 = vmatpush1.msra.mxu0 %v174
      %787 = vmatprep.subr.mxu0 0.0
      %788 = vmatpush1.msra.mxu0 %v175
      %789 = vmatprep.subr.mxu0 0.0
      %790 = vmatpush1.msra.mxu0 %v176
      %791 = vmatprep.subr.mxu0 0.0
      %792 = vmatpush1.msra.mxu0 %v177
      %793 = vmatprep.subr.mxu0 0.0
      %794 = vmatpush1.msra.mxu0 %v178
      %795 = vmatprep.subr.mxu0 0.0
      %796 = vmatpush1.msra.mxu0 %v179
      %797 = vmatprep.subr.mxu0 0.0
      %798 = vmatpush1.msra.mxu0 %v180
      %799 = vmatprep.subr.mxu0 0.0
      %800 = vmatpush1.msra.mxu0 %v181
      %801 = vmatprep.subr.mxu0 0.0
      %802 = vmatpush1.msra.mxu0 %v182
      %803 = vmatprep.subr.mxu0 0.0
      %804 = vmatpush1.msra.mxu0 %v183
      %805 = vmatprep.subr.mxu0 0.0
      %806 = vmatpush1.msra.mxu0 %v184
      %807 = vmatprep.subr.mxu0 0.0
      %808 = vmatpush1.msra.mxu0 %v185
      %809 = vmatprep.subr.mxu0 0.0
      %810 = vmatpush1.msra.mxu0 %v186
      %811 = vmatprep.subr.mxu0 0.0
      %812 = vmatpush1.msra.mxu0 %v187
      %813 = vmatprep.subr.mxu0 0.0
      %814 = vmatpush1.msra.mxu0 %v188
      %815 = vmatprep.subr.mxu0 0.0
      %816 = vmatpush1.msra.mxu0 %v189
      %817 = vmatprep.subr.mxu0 0.0
      %818 = vmatpush1.msra.mxu0 %v190
      %819 = vmatprep.subr.mxu0 0.0
      %820 = vmatpush1.msra.mxu0 %v191
      %821 = vmatprep.subr.mxu0 0.0
      %822 = vmatpush1.msra.mxu0 %v192
      %823 = vmatprep.subr.mxu0 0.0
      %824 = vmatpush1.msra.mxu0 %v193
      %825 = vmatprep.subr.mxu0 0.0
      %826 = vmatpush1.msra.mxu0 %v194
      %827 = vmatprep.subr.mxu0 0.0
      %828 = vmatpush1.msra.mxu0 %v195
      %829 = vmatprep.subr.mxu0 0.0
      %830 = vmatpush1.msra.mxu0 %v196
      %831 = vmatprep.subr.mxu0 0.0
      %832 = vmatpush1.msra.mxu0 %v197
      %833 = vmatprep.subr.mxu0 0.0
      %834 = vmatpush1.msra.mxu0 %v198
      %835 = vmatprep.subr.mxu0 0.0
      %836 = vmatpush1.msra.mxu0 %v199
      %837 = vmatprep.subr.mxu0 0.0
      %838 = vmatpush1.msra.mxu0 %v200
      %839 = vmatprep.subr.mxu0 0.0
      %840 = vmatpush1.msra.mxu0 %v201
      %841 = vmatprep.subr.mxu0 0.0
      %842 = vmatpush1.msra.mxu0 %v202
      %843 = vmatprep.mubr.f32.mxu0 %v731
      %844 = vmatmul.mubr.f32.gmra.mrb[0].mxu0 %v730
      %v845 = vpop.f32.mrb[0].mxu0
      %v846 = vadd.f32 0.0, %v845
      %v847 = vpop.f32.mrb[0].mxu0
      %848 = vmatprep.mubr.f32.mxu0 %v735
      %849 = vmatmul.mubr.f32.gmra.mrb[0].mxu0 %v734
      %v850 = vpop.f32.mrb[0].mxu0
      %v851 = vadd.f32 0.0, %v850
      %v852 = vpop.f32.mrb[0].mxu0
      %853 = vmatprep.mubr.f32.mxu0 %v739
      %854 = vmatmul.mubr.f32.gmra.mrb[0].mxu0 %v738
      %v855 = vpop.f32.mrb[0].mxu0
      %v856 = vadd.f32 0.0, %v855
      %v857 = vpop.f32.mrb[0].mxu0
      %858 = vmatprep.mubr.f32.mxu0 %v743
      %859 = vmatmul.mubr.f32.gmra.mrb[0].mxu0 %v742
      %v860 = vpop.f32.mrb[0].mxu0
      %v861 = vadd.f32 0.0, %v860
      %v862 = vpop.f32.mrb[0].mxu0
      %863 = vmatprep.mubr.f32.mxu0 %v747
      %864 = vmatmul.mubr.f32.gmra.mrb[0].mxu0 %v746
      %v865 = vpop.f32.mrb[0].mxu0
      %v866 = vadd.f32 0.0, %v865
      %v867 = vpop.f32.mrb[0].mxu0
      %868 = vmatprep.mubr.f32.mxu0 %v751
      %869 = vmatmul.mubr.f32.gmra.mrb[0].mxu0 %v750
      %v870 = vpop.f32.mrb[0].mxu0
      %v871 = vadd.f32 0.0, %v870
      %v872 = vpop.f32.mrb[0].mxu0
      %873 = vmatprep.mubr.f32.mxu0 %v755
      %874 = vmatmul.mubr.f32.gmra.mrb[0].mxu0 %v754
      %v875 = vpop.f32.mrb[0].mxu0
      %v876 = vadd.f32 0.0, %v875
      %v877 = vpop.f32.mrb[0].mxu0
      %878 = vdwg.mxu0
      %879 = vmatprep.subr.mxu0 0.0
      %880 = vmatpush1.msra.mxu0 %v203
      %881 = vmatprep.subr.mxu0 0.0
      %882 = vmatpush1.msra.mxu0 %v204
      %883 = vmatprep.subr.mxu0 0.0
      %884 = vmatpush1.msra.mxu0 %v205
      %885 = vmatprep.subr.mxu0 0.0
      %886 = vmatpush1.msra.mxu0 %v206
      %887 = vmatprep.subr.mxu0 0.0
      %888 = vmatpush1.msra.mxu0 %v207
      %889 = vmatprep.subr.mxu0 0.0
      %890 = vmatpush1.msra.mxu0 %v208
      %891 = vmatprep.subr.mxu0 0.0
      %892 = vmatpush1.msra.mxu0 %v209
      %893 = vmatprep.subr.mxu0 0.0
      %894 = vmatpush1.msra.mxu0 %v210
      %895 = vmatprep.subr.mxu0 0.0
      %896 = vmatpush1.msra.mxu0 %v211
      %897 = vmatprep.subr.mxu0 0.0
      %898 = vmatpush1.msra.mxu0 %v212
      %899 = vmatprep.subr.mxu0 0.0
      %900 = vmatpush1.msra.mxu0 %v213
      %901 = vmatprep.subr.mxu0 0.0
      %902 = vmatpush1.msra.mxu0 %v214
      %903 = vmatprep.subr.mxu0 0.0
      %904 = vmatpush1.msra.mxu0 %v215
      %905 = vmatprep.subr.mxu0 0.0
      %906 = vmatpush1.msra.mxu0 %v216
      %907 = vmatprep.subr.mxu0 0.0
      %908 = vmatpush1.msra.mxu0 %v217
      %909 = vmatprep.subr.mxu0 0.0
      %910 = vmatpush1.msra.mxu0 %v218
      %911 = vmatprep.subr.mxu0 0.0
      %912 = vmatpush1.msra.mxu0 %v219
      %913 = vmatprep.subr.mxu0 0.0
      %914 = vmatpush1.msra.mxu0 %v220
      %915 = vmatprep.subr.mxu0 0.0
      %916 = vmatpush1.msra.mxu0 0.0
      %917 = vmatprep.subr.mxu0 0.0
      %918 = vmatpush1.msra.mxu0 0.0
      %919 = vmatprep.subr.mxu0 0.0
      %920 = vmatpush1.msra.mxu0 0.0
      %921 = vmatprep.subr.mxu0 0.0
      %922 = vmatpush1.msra.mxu0 0.0
      %923 = vmatprep.subr.mxu0 0.0
      %924 = vmatpush1.msra.mxu0 0.0
      %925 = vmatprep.subr.mxu0 0.0
      %926 = vmatpush1.msra.mxu0 0.0
      %927 = vmatprep.subr.mxu0 0.0
      %928 = vmatpush1.msra.mxu0 0.0
      %929 = vmatprep.subr.mxu0 0.0
      %930 = vmatpush1.msra.mxu0 0.0
      %931 = vmatprep.subr.mxu0 0.0
      %932 = vmatpush1.msra.mxu0 0.0
      %933 = vmatprep.subr.mxu0 0.0
      %934 = vmatpush1.msra.mxu0 0.0
      %935 = vmatprep.subr.mxu0 0.0
      %936 = vmatpush1.msra.mxu0 0.0
      %937 = vmatprep.subr.mxu0 0.0
      %938 = vmatpush1.msra.mxu0 0.0
      %939 = vmatprep.subr.mxu0 0.0
      %940 = vmatpush1.msra.mxu0 0.0
      %941 = vmatprep.subr.mxu0 0.0
      %942 = vmatpush1.msra.mxu0 0.0
      %943 = vmatprep.mubr.f32.mxu0 %v759
      %944 = vmatmul.mubr.f32.gmra.mrb[0].mxu0 %v732
      %v945 = vpop.f32.mrb[0].mxu0
      %v946 = vadd.f32 %v846, %v945
      %v947 = vpop.f32.mrb[0].mxu0
      %948 = vmatprep.mubr.f32.mxu0 %v762
      %949 = vmatmul.mubr.f32.gmra.mrb[0].mxu0 %v736
      %v950 = vpop.f32.mrb[0].mxu0
      %v951 = vadd.f32 %v851, %v950
      %v952 = vpop.f32.mrb[0].mxu0
      %953 = vmatprep.mubr.f32.mxu0 %v765
      %954 = vmatmul.mubr.f32.gmra.mrb[0].mxu0 %v740
      %v955 = vpop.f32.mrb[0].mxu0
      %v956 = vadd.f32 %v856, %v955
      %v957 = vpop.f32.mrb[0].mxu0
      %958 = vmatprep.mubr.f32.mxu0 %v768
      %959 = vmatmul.mubr.f32.gmra.mrb[0].mxu0 %v744
      %v960 = vpop.f32.mrb[0].mxu0
      %v961 = vadd.f32 %v861, %v960
      %v962 = vpop.f32.mrb[0].mxu0
      %963 = vmatprep.mubr.f32.mxu0 %v771
      %964 = vmatmul.mubr.f32.gmra.mrb[0].mxu0 %v748
      %v965 = vpop.f32.mrb[0].mxu0
      %v966 = vadd.f32 %v866, %v965
      %v967 = vpop.f32.mrb[0].mxu0
      %968 = vmatprep.mubr.f32.mxu0 %v774
      %969 = vmatmul.mubr.f32.gmra.mrb[0].mxu0 %v752
      %v970 = vpop.f32.mrb[0].mxu0
      %v971 = vadd.f32 %v871, %v970
      %v972 = vpop.f32.mrb[0].mxu0
      %973 = vmatprep.mubr.f32.mxu0 %v777
      %974 = vmatmul.mubr.f32.gmra.mrb[0].mxu0 %v756
      %v975 = vpop.f32.mrb[0].mxu0
      %v976 = vadd.f32 %v876, %v975
      %v977 = vpop.f32.mrb[0].mxu0
      %978 = vdwg.mxu0
      %v979 = vmax.f32 %v722, %v946
      %v980 = vmax.f32 %v723, %v951
      %v981 = vmax.f32 %v724, %v956
      %v982 = vmax.f32 %v725, %v961
      %v983 = vmax.f32 %v726, %v966
      %v984 = vmax.f32 %v727, %v971
      %v985 = vmax.f32 %v728, %v976
      %s986 = scalar_lea.vmem %s165, 672
      %v987 = vld [vmem:[%s986] sm:$0xff]
      %v988 = vld [vmem:[%s986 + $0x8] sm:$0xff]
      %v989 = vld [vmem:[%s986 + $0x10] sm:$0xff]
      %v990 = vld [vmem:[%s986 + $0x18] sm:$0xff]
      %v991 = vld [vmem:[%s986 + $0x20] sm:$0xff]
      %v992 = vld [vmem:[%s986 + $0x28] sm:$0xff]
      %v993 = vld [vmem:[%s986 + $0x30] sm:$0xff]
      %v994 = vld [vmem:[%s986 + $0x38] sm:$0xff]
      %v995 = vld [vmem:[%s986 + $0x40] sm:$0xff]
      %v996 = vld [vmem:[%s986 + $0x48] sm:$0xff]
      %v997 = vld [vmem:[%s986 + $0x50] sm:$0xff]
      %v998 = vld [vmem:[%s986 + $0x58] sm:$0xff]
      %v999 = vld [vmem:[%s986 + $0x60] sm:$0xff]
      %v1000 = vld [vmem:[%s986 + $0x68] sm:$0xff]
      %v1001 = vld [vmem:[%s986 + $0x70] sm:$0xff]
      %v1002 = vld [vmem:[%s986 + $0x78] sm:$0xff]
      %v1003 = vld [vmem:[%s986 + $0x80] sm:$0xff]
      %v1004 = vld [vmem:[%s986 + $0x88] sm:$0xff]
      %v1005 = vld [vmem:[%s986 + $0x90] sm:$0xff]
      %v1006 = vld [vmem:[%s986 + $0x98] sm:$0xff]
      %v1007 = vld [vmem:[%s986 + $0xa0] sm:$0xff]
      %v1008 = vld [vmem:[%s986 + $0xa8] sm:$0xff]
      %v1009 = vld [vmem:[%s986 + $0xb0] sm:$0xff]
      %v1010 = vld [vmem:[%s986 + $0xb8] sm:$0xff]
      %v1011 = vld [vmem:[%s986 + $0xc0] sm:$0x1]
      %v1012 = vld [vmem:[%s986 + $0xc8] sm:$0x1]
      %v1013 = vld [vmem:[%s986 + $0xd0] sm:$0x1]
      %v1014 = vld [vmem:[%s986 + $0xd8] sm:$0x1]
      %v1016 = vsel %vm250, %v990, 0
      %v1019 = vsel %vm250, %v994, 0
      %v1022 = vsel %vm250, %v998, 0
      %v1025 = vsel %vm250, %v1002, 0
      %v1028 = vsel %vm250, %v1006, 0
      %v1031 = vsel %vm250, %v1010, 0
      %v1034 = vsel %vm250, %v1014, 0
      %1036 = vmatprep.subr.mxu0 0.0
      %1037 = vmatpush1.msra.mxu0 %v171
      %1038 = vmatprep.subr.mxu0 0.0
      %1039 = vmatpush1.msra.mxu0 %v172
      %1040 = vmatprep.subr.mxu0 0.0
      %1041 = vmatpush1.msra.mxu0 %v173
      %1042 = vmatprep.subr.mxu0 0.0
      %1043 = vmatpush1.msra.mxu0 %v174
      %1044 = vmatprep.subr.mxu0 0.0
      %1045 = vmatpush1.msra.mxu0 %v175
      %1046 = vmatprep.subr.mxu0 0.0
      %1047 = vmatpush1.msra.mxu0 %v176
      %1048 = vmatprep.subr.mxu0 0.0
      %1049 = vmatpush1.msra.mxu0 %v177
      %1050 = vmatprep.subr.mxu0 0.0
      %1051 = vmatpush1.msra.mxu0 %v178
      %1052 = vmatprep.subr.mxu0 0.0
      %1053 = vmatpush1.msra.mxu0 %v179
      %1054 = vmatprep.subr.mxu0 0.0
      %1055 = vmatpush1.msra.mxu0 %v180
      %1056 = vmatprep.subr.mxu0 0.0
      %1057 = vmatpush1.msra.mxu0 %v181
      %1058 = vmatprep.subr.mxu0 0.0
      %1059 = vmatpush1.msra.mxu0 %v182
      %1060 = vmatprep.subr.mxu0 0.0
      %1061 = vmatpush1.msra.mxu0 %v183
      %1062 = vmatprep.subr.mxu0 0.0
      %1063 = vmatpush1.msra.mxu0 %v184
      %1064 = vmatprep.subr.mxu0 0.0
      %1065 = vmatpush1.msra.mxu0 %v185
      %1066 = vmatprep.subr.mxu0 0.0
      %1067 = vmatpush1.msra.mxu0 %v186
      %1068 = vmatprep.subr.mxu0 0.0
      %1069 = vmatpush1.msra.mxu0 %v187
      %1070 = vmatprep.subr.mxu0 0.0
      %1071 = vmatpush1.msra.mxu0 %v188
      %1072 = vmatprep.subr.mxu0 0.0
      %1073 = vmatpush1.msra.mxu0 %v189
      %1074 = vmatprep.subr.mxu0 0.0
      %1075 = vmatpush1.msra.mxu0 %v190
      %1076 = vmatprep.subr.mxu0 0.0
      %1077 = vmatpush1.msra.mxu0 %v191
      %1078 = vmatprep.subr.mxu0 0.0
      %1079 = vmatpush1.msra.mxu0 %v192
      %1080 = vmatprep.subr.mxu0 0.0
      %1081 = vmatpush1.msra.mxu0 %v193
      %1082 = vmatprep.subr.mxu0 0.0
      %1083 = vmatpush1.msra.mxu0 %v194
      %1084 = vmatprep.subr.mxu0 0.0
      %1085 = vmatpush1.msra.mxu0 %v195
      %1086 = vmatprep.subr.mxu0 0.0
      %1087 = vmatpush1.msra.mxu0 %v196
      %1088 = vmatprep.subr.mxu0 0.0
      %1089 = vmatpush1.msra.mxu0 %v197
      %1090 = vmatprep.subr.mxu0 0.0
      %1091 = vmatpush1.msra.mxu0 %v198
      %1092 = vmatprep.subr.mxu0 0.0
      %1093 = vmatpush1.msra.mxu0 %v199
      %1094 = vmatprep.subr.mxu0 0.0
      %1095 = vmatpush1.msra.mxu0 %v200
      %1096 = vmatprep.subr.mxu0 0.0
      %1097 = vmatpush1.msra.mxu0 %v201
      %1098 = vmatprep.subr.mxu0 0.0
      %1099 = vmatpush1.msra.mxu0 %v202
      %1100 = vmatprep.mubr.f32.mxu0 %v988
      %1101 = vmatmul.mubr.f32.gmra.mrb[0].mxu0 %v987
      %v1102 = vpop.f32.mrb[0].mxu0
      %v1103 = vadd.f32 0.0, %v1102
      %v1104 = vpop.f32.mrb[0].mxu0
      %1105 = vmatprep.mubr.f32.mxu0 %v992
      %1106 = vmatmul.mubr.f32.gmra.mrb[0].mxu0 %v991
      %v1107 = vpop.f32.mrb[0].mxu0
      %v1108 = vadd.f32 0.0, %v1107
      %v1109 = vpop.f32.mrb[0].mxu0
      %1110 = vmatprep.mubr.f32.mxu0 %v996
      %1111 = vmatmul.mubr.f32.gmra.mrb[0].mxu0 %v995
      %v1112 = vpop.f32.mrb[0].mxu0
      %v1113 = vadd.f32 0.0, %v1112
      %v1114 = vpop.f32.mrb[0].mxu0
      %1115 = vmatprep.mubr.f32.mxu0 %v1000
      %1116 = vmatmul.mubr.f32.gmra.mrb[0].mxu0 %v999
      %v1117 = vpop.f32.mrb[0].mxu0
      %v1118 = vadd.f32 0.0, %v1117
      %v1119 = vpop.f32.mrb[0].mxu0
      %1120 = vmatprep.mubr.f32.mxu0 %v1004
      %1121 = vmatmul.mubr.f32.gmra.mrb[0].mxu0 %v1003
      %v1122 = vpop.f32.mrb[0].mxu0
      %v1123 = vadd.f32 0.0, %v1122
      %v1124 = vpop.f32.mrb[0].mxu0
      %1125 = vmatprep.mubr.f32.mxu0 %v1008
      %1126 = vmatmul.mubr.f32.gmra.mrb[0].mxu0 %v1007
      %v1127 = vpop.f32.mrb[0].mxu0
      %v1128 = vadd.f32 0.0, %v1127
      %v1129 = vpop.f32.mrb[0].mxu0
      %1130 = vmatprep.mubr.f32.mxu0 %v1012
      %1131 = vmatmul.mubr.f32.gmra.mrb[0].mxu0 %v1011
      %v1132 = vpop.f32.mrb[0].mxu0
      %v1133 = vadd.f32 0.0, %v1132
      %v1134 = vpop.f32.mrb[0].mxu0
      %1135 = vdwg.mxu0
      %1136 = vmatprep.subr.mxu0 0.0
      %1137 = vmatpush1.msra.mxu0 %v203
      %1138 = vmatprep.subr.mxu0 0.0
      %1139 = vmatpush1.msra.mxu0 %v204
      %1140 = vmatprep.subr.mxu0 0.0
      %1141 = vmatpush1.msra.mxu0 %v205
      %1142 = vmatprep.subr.mxu0 0.0
      %1143 = vmatpush1.msra.mxu0 %v206
      %1144 = vmatprep.subr.mxu0 0.0
      %1145 = vmatpush1.msra.mxu0 %v207
      %1146 = vmatprep.subr.mxu0 0.0
      %1147 = vmatpush1.msra.mxu0 %v208
      %1148 = vmatprep.subr.mxu0 0.0
      %1149 = vmatpush1.msra.mxu0 %v209
      %1150 = vmatprep.subr.mxu0 0.0
      %1151 = vmatpush1.msra.mxu0 %v210
      %1152 = vmatprep.subr.mxu0 0.0
      %1153 = vmatpush1.msra.mxu0 %v211
      %1154 = vmatprep.subr.mxu0 0.0
      %1155 = vmatpush1.msra.mxu0 %v212
      %1156 = vmatprep.subr.mxu0 0.0
      %1157 = vmatpush1.msra.mxu0 %v213
      %1158 = vmatprep.subr.mxu0 0.0
      %1159 = vmatpush1.msra.mxu0 %v214
      %1160 = vmatprep.subr.mxu0 0.0
      %1161 = vmatpush1.msra.mxu0 %v215
      %1162 = vmatprep.subr.mxu0 0.0
      %1163 = vmatpush1.msra.mxu0 %v216
      %1164 = vmatprep.subr.mxu0 0.0
      %1165 = vmatpush1.msra.mxu0 %v217
      %1166 = vmatprep.subr.mxu0 0.0
      %1167 = vmatpush1.msra.mxu0 %v218
      %1168 = vmatprep.subr.mxu0 0.0
      %1169 = vmatpush1.msra.mxu0 %v219
      %1170 = vmatprep.subr.mxu0 0.0
      %1171 = vmatpush1.msra.mxu0 %v220
      %1172 = vmatprep.subr.mxu0 0.0
      %1173 = vmatpush1.msra.mxu0 0.0
      %1174 = vmatprep.subr.mxu0 0.0
      %1175 = vmatpush1.msra.mxu0 0.0
      %1176 = vmatprep.subr.mxu0 0.0
      %1177 = vmatpush1.msra.mxu0 0.0
      %1178 = vmatprep.subr.mxu0 0.0
      %1179 = vmatpush1.msra.mxu0 0.0
      %1180 = vmatprep.subr.mxu0 0.0
      %1181 = vmatpush1.msra.mxu0 0.0
      %1182 = vmatprep.subr.mxu0 0.0
      %1183 = vmatpush1.msra.mxu0 0.0
      %1184 = vmatprep.subr.mxu0 0.0
      %1185 = vmatpush1.msra.mxu0 0.0
      %1186 = vmatprep.subr.mxu0 0.0
      %1187 = vmatpush1.msra.mxu0 0.0
      %1188 = vmatprep.subr.mxu0 0.0
      %1189 = vmatpush1.msra.mxu0 0.0
      %1190 = vmatprep.subr.mxu0 0.0
      %1191 = vmatpush1.msra.mxu0 0.0
      %1192 = vmatprep.subr.mxu0 0.0
      %1193 = vmatpush1.msra.mxu0 0.0
      %1194 = vmatprep.subr.mxu0 0.0
      %1195 = vmatpush1.msra.mxu0 0.0
      %1196 = vmatprep.subr.mxu0 0.0
      %1197 = vmatpush1.msra.mxu0 0.0
      %1198 = vmatprep.subr.mxu0 0.0
      %1199 = vmatpush1.msra.mxu0 0.0
      %1200 = vmatprep.mubr.f32.mxu0 %v1016
      %1201 = vmatmul.mubr.f32.gmra.mrb[0].mxu0 %v989
      %v1202 = vpop.f32.mrb[0].mxu0
      %v1203 = vadd.f32 %v1103, %v1202
      %v1204 = vpop.f32.mrb[0].mxu0
      %1205 = vmatprep.mubr.f32.mxu0 %v1019
      %1206 = vmatmul.mubr.f32.gmra.mrb[0].mxu0 %v993
      %v1207 = vpop.f32.mrb[0].mxu0
      %v1208 = vadd.f32 %v1108, %v1207
      %v1209 = vpop.f32.mrb[0].mxu0
      %1210 = vmatprep.mubr.f32.mxu0 %v1022
      %1211 = vmatmul.mubr.f32.gmra.mrb[0].mxu0 %v997
      %v1212 = vpop.f32.mrb[0].mxu0
      %v1213 = vadd.f32 %v1113, %v1212
      %v1214 = vpop.f32.mrb[0].mxu0
      %1215 = vmatprep.mubr.f32.mxu0 %v1025
      %1216 = vmatmul.mubr.f32.gmra.mrb[0].mxu0 %v1001
      %v1217 = vpop.f32.mrb[0].mxu0
      %v1218 = vadd.f32 %v1118, %v1217
      %v1219 = vpop.f32.mrb[0].mxu0
      %1220 = vmatprep.mubr.f32.mxu0 %v1028
      %1221 = vmatmul.mubr.f32.gmra.mrb[0].mxu0 %v1005
      %v1222 = vpop.f32.mrb[0].mxu0
      %v1223 = vadd.f32 %v1123, %v1222
      %v1224 = vpop.f32.mrb[0].mxu0
      %1225 = vmatprep.mubr.f32.mxu0 %v1031
      %1226 = vmatmul.mubr.f32.gmra.mrb[0].mxu0 %v1009
      %v1227 = vpop.f32.mrb[0].mxu0
      %v1228 = vadd.f32 %v1128, %v1227
      %v1229 = vpop.f32.mrb[0].mxu0
      %1230 = vmatprep.mubr.f32.mxu0 %v1034
      %1231 = vmatmul.mubr.f32.gmra.mrb[0].mxu0 %v1013
      %v1232 = vpop.f32.mrb[0].mxu0
      %v1233 = vadd.f32 %v1133, %v1232
      %v1234 = vpop.f32.mrb[0].mxu0
      %1235 = vdwg.mxu0
      %v1236 = vmax.f32 %v979, %v1203
      %v1237 = vmax.f32 %v980, %v1208
      %v1238 = vmax.f32 %v981, %v1213
      %v1239 = vmax.f32 %v982, %v1218
      %v1240 = vmax.f32 %v983, %v1223
      %v1241 = vmax.f32 %v984, %v1228
      %v1242 = vmax.f32 %v985, %v1233
      %v1244 = vlaneseq
      %v1245 = vshrl.u32 %v1244, 7
      %v1246 = vsub.s32 0, %v1245
      %v1247 = vrot.slane %v221, %v1246
      %v1249 = vadd.f32 %v1236, %v1247
      %v1250 = vadd.f32 %v1237, %v1247
      %v1251 = vadd.f32 %v1238, %v1247
      %v1252 = vadd.f32 %v1239, %v1247
      %v1253 = vadd.f32 %v1240, %v1247
      %v1254 = vadd.f32 %v1241, %v1247
      %v1255 = vadd.f32 %v1242, %v1247
      %v1256 = vmax.f32 %v1249, 0.0
      %v1257 = vmax.f32 %v1250, 0.0
      %v1258 = vmax.f32 %v1251, 0.0
      %v1259 = vmax.f32 %v1252, 0.0
      %v1260 = vmax.f32 %v1253, 0.0
      %v1261 = vmax.f32 %v1254, 0.0
      %v1262 = vmax.f32 %v1255, 0.0
      %vm1263 = vcmask 261120
      %1264 = vst.msk [vmem:[%s170] sm:$0xff] %vm1263, %v1256
      %1265 = vst.msk [vmem:[%s170 + $0x8] sm:$0xff] %vm1263, %v1257
      %1266 = vst.msk [vmem:[%s170 + $0x10] sm:$0xff] %vm1263, %v1258
      %1267 = vst.msk [vmem:[%s170 + $0x18] sm:$0xff] %vm1263, %v1259
      %1268 = vst.msk [vmem:[%s170 + $0x20] sm:$0xff] %vm1263, %v1260
      %1269 = vst.msk [vmem:[%s170 + $0x28] sm:$0xff] %vm1263, %v1261
      %vm1270 = vcmask 253952
      %1271 = vst.msk [vmem:[%s170 + $0x30] sm:$0x1] %vm1270, %v1262
      %p1272 = scmp.lt.s32.totalorder %s14, 1
      %s1273 = scalar_select %p1272, %s14, 1
      %s1274 = smul.addr %s1273, 7
      %s1275 = smul.addr %s1274, 8
      %s1276 = scalar_lea.vmem %s3, %s1275
      // Predicated region
      $region33: #{cnn_forward.4} parent=31 // pred_check
        %p1277 = pneg %p100
      $region34: #{cnn_forward.4} parent=31 // pred_check_branch
        %1279 = sbr.rel (%p1277) target = $region36
      $region35: #{cnn_forward.4} parent=31 // pred_region
        _
      $region36: #{cnn_forward.4} parent=31 // pred_fallthru
        _
    $region32: #{cnn_forward.4} parent=5 // pred_fallthru
      _
    %p1280 = scmp.le.s32.totalorder 2, %s9
    // Predicated region
    $region37: #{cnn_forward.4} parent=5 // pred_check
      %p1281 = pneg %p1280
    $region38: #{cnn_forward.4} parent=5 // pred_check_branch
      %1283 = sbr.rel (%p1281) target = $region40
    $region39: #{cnn_forward.4} parent=5 // pred_region
      %s1284 = ssub.s32 %s9, 2
      // Predicated region
      $region41: #{cnn_forward.4} parent=39 // pred_check
        %p1285 = pneg %p106
      $region42: #{cnn_forward.4} parent=39 // pred_check_branch
        %1287 = sbr.rel (%p1285) target = $region44
      $region43: #{cnn_forward.4} parent=39 // pred_region
        %p1288 = scmp.lt.s32.totalorder %s15, 1
        %s1289 = scalar_select %p1288, %s15, 1
        %s1290 = smul.addr %s1289, 7
        %s1291 = smul.addr %s1290, 8
        %s1292 = scalar_lea.vmem %s3, %s1291
      $region44: #{cnn_forward.4} parent=39 // pred_fallthru
        _
    $region40: #{cnn_forward.4} parent=5 // pred_fallthru
      _
  $region6: #{cnn_forward.4} parent=0 // loop_footer
    %s13 = sadd.s32 1, %s9
  $region7: #{cnn_forward.4} parent=0 // loop_footer_branch
    %8 = sbr.rel target = $region3
  $region8: #{cnn_forward.4} parent=0 // loop_exit
    _

</llo_original>
